<compile_context>
chip_gen: v7x
topology: tpu7x:2x2x1
jax: 0.10.0
libtpu: 0.0.40
codegen_flags: <defaults>
</compile_context>

<pallas_src>
import functools

import jax
import jax.numpy as jnp
from jax.experimental import pallas as pl
from jax.experimental.pallas import tpu as pltpu

LANE = 128       # channel axes are zero-padded to a multiple of this
T_ALIGN = 16     # time-padding granularity (bf16 sublane packing = 16 rows)
BORDER = 16      # zero halo rows on each side of the time axis


def _round_up(n, m):
    return -(-n // m) * m


def _postnet_fused_kernel(x_ref, wf_ref, wm_ref, wl_ref,
                          sc_h_ref, sh_h_ref, sc_o_ref, sh_o_ref,
                          o_ref, buf_a_ref, buf_b_ref, *,
                          n_layers, K, t_pad, t_valid, conv_pad, use_roll):
    """Fused [Conv1d + BN(eval) (+ tanh)] x n_layers for one batch element.

    x_ref:       (1, t_pad + 2*BORDER, Cin)  bf16 input WITH its zero time halo
    wf_ref:      (K, Cin, Chid)              bf16 taps, layer 0
    wm_ref:      ((L-2)*K, Chid, Chid)       bf16 taps, layers 1..L-2
    wl_ref:      (K, Chid, Cout)             bf16 taps, layer L-1
    sc_h/sh_h:   (L-1, 1, Chid) f32          folded BN scale / (shift + b*scale)
    sc_o/sh_o:   (1, 1, Cout) f32            same for the last layer
    o_ref:       (1, t_pad, Cout) f32        lane-dense output (caller slices)
    buf_a/buf_b: (t_pad + 2*BORDER, Chid)    bf16 ping-pong activation scratch
    """
    nrows = t_pad + 2 * BORDER
    c_hid = buf_a_ref.shape[-1]
    c_out = o_ref.shape[-1]

    # Zero only the halo rows of the ping-pong buffers (their valid rows are
    # fully overwritten by every layer).  Per grid step on purpose: scratch is
    # per-core and under "parallel" batch partitioning the second TensorCore
    # never sees program_id==0, so a pl.when guard would be unsafe.
    zhalo = jnp.zeros((BORDER, c_hid), buf_a_ref.dtype)
    buf_a_ref[pl.ds(0, BORDER), :] = zhalo
    buf_a_ref[pl.ds(BORDER + t_pad, BORDER), :] = zhalo
    buf_b_ref[pl.ds(0, BORDER), :] = zhalo
    buf_b_ref[pl.ds(BORDER + t_pad, BORDER), :] = zhalo

    # Rows >= t_valid must stay exactly zero between layers so they act as the
    # next layer's zero padding.  Hoisted: one iota+compare, reused per layer.
    if t_valid != t_pad:
        row = jax.lax.broadcasted_iota(jnp.int32, (t_pad, 1), 0)
        valid = row < t_valid
    else:
        valid = None

    def tap_window(xb, k):
        # Rows [BORDER - conv_pad + k, ... + t_pad) of xb.
        if use_roll:
            # Shift on the XLU, then take the packing-aligned [BORDER, +t_pad)
            # window.  Wrapped rows land only in the never-read halo, and the
            # halo rows themselves are always zero, so this is exact.
            s = (conv_pad - k) % nrows
            xr = xb if s == 0 else pltpu.roll(xb, shift=s, axis=0)
            return xr[BORDER:BORDER + t_pad, :]
        start = BORDER - conv_pad + k          # conservative fallback path
        return xb[start:start + t_pad, :]

    def conv_bn(xb, w_taps, scale, shift, cout):
        # Conv1d('same') as K shifted MXU matmuls, f32 accumulation, then the
        # folded conv-bias + BatchNorm(eval) scale/shift in f32.
        acc = jnp.zeros((t_pad, cout), jnp.float32)
        for k in range(K):
            acc = acc + jnp.dot(tap_window(xb, k), w_taps[k],
                                preferred_element_type=jnp.float32)
        return acc * scale + shift

    bufs = (buf_a_ref, buf_b_ref)
    for l in range(n_layers):
        last = l == n_layers - 1
        xb = x_ref[0] if l == 0 else bufs[(l - 1) % 2][...]

        if l == 0:
            y = conv_bn(xb, [wf_ref[k] for k in range(K)],
                        sc_h_ref[l], sh_h_ref[l], c_hid)
        elif not last:
            y = conv_bn(xb, [wm_ref[(l - 1) * K + k] for k in range(K)],
                        sc_h_ref[l], sh_h_ref[l], c_hid)
        else:
            y = conv_bn(xb, [wl_ref[k] for k in range(K)],
                        sc_o_ref[0], sh_o_ref[0], c_out)

        if not last:
            y = jnp.tanh(y)
            # dropout(p=0.5, training=False) == identity
            if valid is not None:
                y = jnp.where(valid, y, 0.0)
            bufs[l % 2][pl.ds(BORDER, t_pad), :] = y.astype(buf_a_ref.dtype)
        else:
            # Last layer: no tanh; lane-dense f32 store (Cout is 128-wide).
            o_ref[0] = y.astype(o_ref.dtype)


def postnet_forward(x, layers):
    """x: (B, T, n_mel) -> (B, T, n_mel).  Equivalent to Postnet.forward (eval)."""
    B, T, n_mel = x.shape
    L = len(layers)
    assert L >= 3, "fused kernel expects >= 3 conv layers (kernel_size >= 3)"
    K = layers[0]["weight"].shape[0]
    conv_pad = (K - 1) // 2
    assert conv_pad <= BORDER

    hid = layers[0]["weight"].shape[2]
    c_in_pad = _round_up(n_mel, LANE)                        # mel -> 128
    c_hid_pad = _round_up(hid, LANE)                         # hidden -> own pad
    c_out_pad = _round_up(layers[-1]["weight"].shape[2], LANE)
    t_pad = _round_up(T, T_ALIGN)
    nrows = t_pad + 2 * BORDER

    # ---- host-side parameter packing (once) -------------------------------
    def pad_w(w, ci_pad, co_pad):
        k_, ci, co = w.shape
        return jnp.zeros((k_, ci_pad, co_pad), jnp.float32).at[:, :ci, :co].set(w)

    def pad_vec(v, c_pad):
        return jnp.zeros((c_pad,), jnp.float32).at[:v.shape[0]].set(v)

    def folded_shift(p):
        # (acc + b) * s + t  ==  acc * s + (t + b * s)
        return p["shift"] + p["bias"] * p["scale"]

    w_first = pad_w(layers[0]["weight"], c_in_pad, c_hid_pad).astype(jnp.bfloat16)
    w_mid = jnp.concatenate(
        [pad_w(layers[l]["weight"], c_hid_pad, c_hid_pad) for l in range(1, L - 1)],
        axis=0).astype(jnp.bfloat16)                          # ((L-2)*K, H, H)
    w_last = pad_w(layers[-1]["weight"], c_hid_pad, c_out_pad).astype(jnp.bfloat16)

    scale_h = jnp.stack([pad_vec(layers[l]["scale"], c_hid_pad)
                         for l in range(L - 1)])[:, None, :]  # (L-1, 1, H)
    shift_h = jnp.stack([pad_vec(folded_shift(layers[l]), c_hid_pad)
                         for l in range(L - 1)])[:, None, :]
    scale_o = pad_vec(layers[-1]["scale"], c_out_pad)[None, None, :]   # (1,1,C)
    shift_o = pad_vec(folded_shift(layers[-1]), c_out_pad)[None, None, :]

    # Channel-padded bf16 input carrying its own zero time halo (no in-kernel
    # input copy; halo rows double as the 'same' padding of layer 0).
    x_p = jnp.zeros((B, nrows, c_in_pad), jnp.bfloat16)
    x_p = x_p.at[:, BORDER:BORDER + T, :n_mel].set(x.astype(jnp.bfloat16))

    # Advisory cost estimate so XLA schedules around the custom call.
    flops = 2 * B * t_pad * K * (c_in_pad * c_hid_pad
                                 + (L - 2) * c_hid_pad * c_hid_pad
                                 + c_hid_pad * c_out_pad)
    transcendentals = B * t_pad * c_hid_pad * (L - 1)
    bytes_accessed = (x_p.size * 2
                      + (w_first.size + w_mid.size + w_last.size) * 2
                      + (scale_h.size + shift_h.size + scale_o.size + shift_o.size) * 4
                      + B * t_pad * c_out_pad * 4)

    def _run(optimized):
        # optimized=True : single-buffered grid-invariant params + XLU roll.
        # optimized=False: conservative lowering known to compile everywhere.
        pm = {"pipeline_mode": pl.Buffered(1)} if optimized else {}
        const3 = lambda b: (0, 0, 0)
        in_specs = [
            pl.BlockSpec((1, nrows, c_in_pad), lambda b: (b, 0, 0)),
            pl.BlockSpec((K, c_in_pad, c_hid_pad), const3, **pm),
            pl.BlockSpec(((L - 2) * K, c_hid_pad, c_hid_pad), const3, **pm),
            pl.BlockSpec((K, c_hid_pad, c_out_pad), const3, **pm),
            pl.BlockSpec((L - 1, 1, c_hid_pad), const3, **pm),
            pl.BlockSpec((L - 1, 1, c_hid_pad), const3, **pm),
            pl.BlockSpec((1, 1, c_out_pad), const3, **pm),
            pl.BlockSpec((1, 1, c_out_pad), const3, **pm),
        ]
        kernel = functools.partial(
            _postnet_fused_kernel, n_layers=L, K=K, t_pad=t_pad, t_valid=T,
            conv_pad=conv_pad, use_roll=optimized)
        out = pl.pallas_call(
            kernel,
            out_shape=jax.ShapeDtypeStruct((B, t_pad, c_out_pad), jnp.float32),
            grid_spec=pltpu.PrefetchScalarGridSpec(
                num_scalar_prefetch=0,
                grid=(B,),
                in_specs=in_specs,
                out_specs=pl.BlockSpec((1, t_pad, c_out_pad),
                                       lambda b: (b, 0, 0)),
                scratch_shapes=[
                    pltpu.VMEM((nrows, c_hid_pad), jnp.bfloat16),
                    pltpu.VMEM((nrows, c_hid_pad), jnp.bfloat16),
                ],
            ),
            compiler_params=pltpu.CompilerParams(
                dimension_semantics=("parallel",),
                vmem_limit_bytes=48 * 1024 * 1024,
            ),
            cost_estimate=pl.CostEstimate(
                flops=flops, transcendentals=transcendentals,
                bytes_accessed=bytes_accessed) if optimized else None,
        )(x_p, w_first, w_mid, w_last, scale_h, shift_h, scale_o, shift_o)
        return jax.block_until_ready(out)

    try:
        out = _run(True)
    except Exception:
        # Older Pallas/Mosaic builds may reject pipeline_mode=Buffered(1) or a
        # packed-dtype sublane roll; fall back to the proven lowering.
        out = _run(False)

    # Drop channel/time padding (kernel output is lane-dense 128-wide).
    return out[:, :T, :n_mel].astype(x.dtype)


def init_postnet_params(key, n_mel, hidden, kernel_size):
    """Deterministic synthetic parameters matching the PyTorch module shapes."""
    n_convs = kernel_size  # reference module sets n_convolutions = kernel_size
    eps = 1e-5
    layers = []
    dims = [n_mel] + [hidden] * (n_convs - 1) + [n_mel]
    for i in range(n_convs):
        cin, cout = dims[i], dims[i + 1]
        key, kw, kb, kg, kbe, km, kv = jax.random.split(key, 7)
        # PyTorch Conv1d weight is (Cout, Cin, K); stored tap-major (K, Cin, Cout).
        w = 0.1 * jax.random.normal(kw, (kernel_size, cin, cout), jnp.float32)
        b = 0.1 * jax.random.normal(kb, (cout,), jnp.float32)
        gamma = 1.0 + 0.1 * jax.random.normal(kg, (cout,), jnp.float32)
        beta = 0.1 * jax.random.normal(kbe, (cout,), jnp.float32)
        running_mean = 0.1 * jax.random.normal(km, (cout,), jnp.float32)
        running_var = jnp.abs(1.0 + 0.1 * jax.random.normal(kv, (cout,), jnp.float32))
        scale = gamma / jnp.sqrt(running_var + eps)
        shift = beta - running_mean * scale
        layers.append(dict(weight=w, bias=b, scale=scale, shift=shift))
    return layers


def postnet_reference(x, layers):
    """Pure-JAX f32 reference of the eval-mode Postnet forward (channels-last)."""
    B, T, _ = x.shape
    y = x
    L = len(layers)
    for i, p in enumerate(layers):
        K, cin, cout = p["weight"].shape
        pad = (K - 1) // 2
        xp = jnp.pad(y, ((0, 0), (pad, pad), (0, 0)))
        acc = jnp.zeros((B, T, cout), jnp.float32)
        for k in range(K):
            acc = acc + jnp.einsum("btc,cd->btd", xp[:, k:k + T, :], p["weight"][k])
        z = (acc + p["bias"]) * p["scale"] + p["shift"]
        y = jnp.tanh(z) if i < L - 1 else z
    return y


if __name__ == "__main__":
    # Small deterministic config:
    B, T = 2, 20
    n_mel = 8            # hp.postnet_in_dim
    hidden = 32          # hp.postnet_hidden_dim
    kernel_size = 5      # hp.postnet_kernel_size (=> 5 conv layers, 'same' pad 2)

    key = jax.random.PRNGKey(0)
    kx, kp = jax.random.split(key)
    x = jax.random.normal(kx, (B, T, n_mel), jnp.float32)

    layers = init_postnet_params(kp, n_mel, hidden, kernel_size)

    out = jax.block_until_ready(postnet_forward(x, layers))
    assert out.shape == (B, T, n_mel), out.shape

    # Numerical sanity check vs. a pure-JAX f32 reference (bf16 matmul
    # operands / inter-layer activations inside the kernel => loose tolerance).
    ref = jax.block_until_ready(postnet_reference(x, layers))
    max_err = float(jnp.max(jnp.abs(out - ref)))
    assert max_err < 1e-1, f"kernel/reference mismatch, max abs err {max_err}"

    print("KERNEL_OK")
</pallas_src>

<mosaic_0001>
module attributes {stable_mosaic.version = 11 : i64} {
  func.func @_postnet_fused_kernel(%arg0: i32, %arg1: memref<1x64x128xbf16, #tpu.memory_space<vmem>>, %arg2: memref<5x128x128xbf16, #tpu.memory_space<vmem>>, %arg3: memref<15x128x128xbf16, #tpu.memory_space<vmem>>, %arg4: memref<5x128x128xbf16, #tpu.memory_space<vmem>>, %arg5: memref<4x1x128xf32, #tpu.memory_space<vmem>>, %arg6: memref<4x1x128xf32, #tpu.memory_space<vmem>>, %arg7: memref<1x1x128xf32, #tpu.memory_space<vmem>>, %arg8: memref<1x1x128xf32, #tpu.memory_space<vmem>>, %arg9: memref<1x32x128xf32, #tpu.memory_space<vmem>>, %arg10: memref<64x128xbf16, #tpu.memory_space<vmem>>, %arg11: memref<64x128xbf16, #tpu.memory_space<vmem>>) attributes {dimension_semantics = [#tpu.dimension_semantics<parallel>], iteration_bounds = array<i64: 2>, scalar_prefetch = 0 : i64, scratch_operands = 2 : i64, tpu.core_type = #tpu.core_type<tc>, window_params = [{transform_indices = @transform_0, window_bounds = array<i64: 1, 64, 128>}, {pipeline_mode = #tpu.pipeline_mode<synchronous>, transform_indices = @transform_1, window_bounds = array<i64: 5, 128, 128>}, {pipeline_mode = #tpu.pipeline_mode<synchronous>, transform_indices = @transform_2, window_bounds = array<i64: 15, 128, 128>}, {pipeline_mode = #tpu.pipeline_mode<synchronous>, transform_indices = @transform_3, window_bounds = array<i64: 5, 128, 128>}, {pipeline_mode = #tpu.pipeline_mode<synchronous>, transform_indices = @transform_4, window_bounds = array<i64: 4, 1, 128>}, {pipeline_mode = #tpu.pipeline_mode<synchronous>, transform_indices = @transform_5, window_bounds = array<i64: 4, 1, 128>}, {pipeline_mode = #tpu.pipeline_mode<synchronous>, transform_indices = @transform_6, window_bounds = array<i64: 1, 1, 128>}, {pipeline_mode = #tpu.pipeline_mode<synchronous>, transform_indices = @transform_7, window_bounds = array<i64: 1, 1, 128>}, {transform_indices = @transform_8, window_bounds = array<i64: 1, 32, 128>}]} {
    %cst = arith.constant 0.000000e+00 : bf16
    %0 = vector.broadcast %cst : bf16 to vector<16x128xbf16>
    %c0 = arith.constant 0 : index
    %c0_0 = arith.constant 0 : index
    %1 = vector.load %arg10[%c0, %c0_0] : memref<64x128xbf16, #tpu.memory_space<vmem>>, vector<16x128xbf16>
    tpu.vector_store %arg10[%c0, %c0_0], %0 {strides = array<i32>} : memref<64x128xbf16, #tpu.memory_space<vmem>>, vector<16x128xbf16>,
    %c48 = arith.constant 48 : index
    %c0_1 = arith.constant 0 : index
    %2 = vector.load %arg10[%c48, %c0_1] : memref<64x128xbf16, #tpu.memory_space<vmem>>, vector<16x128xbf16>
    tpu.vector_store %arg10[%c48, %c0_1], %0 {strides = array<i32>} : memref<64x128xbf16, #tpu.memory_space<vmem>>, vector<16x128xbf16>,
    %c0_2 = arith.constant 0 : index
    %c0_3 = arith.constant 0 : index
    %3 = vector.load %arg11[%c0_2, %c0_3] : memref<64x128xbf16, #tpu.memory_space<vmem>>, vector<16x128xbf16>
    tpu.vector_store %arg11[%c0_2, %c0_3], %0 {strides = array<i32>} : memref<64x128xbf16, #tpu.memory_space<vmem>>, vector<16x128xbf16>,
    %c48_4 = arith.constant 48 : index
    %c0_5 = arith.constant 0 : index
    %4 = vector.load %arg11[%c48_4, %c0_5] : memref<64x128xbf16, #tpu.memory_space<vmem>>, vector<16x128xbf16>
    tpu.vector_store %arg11[%c48_4, %c0_5], %0 {strides = array<i32>} : memref<64x128xbf16, #tpu.memory_space<vmem>>, vector<16x128xbf16>,
    %5 = tpu.iota {dimensions = array<i32: 0>} : vector<32x1xi32>
    %c20_i32 = arith.constant 20 : i32
    %6 = vector.broadcast %c20_i32 : i32 to vector<32x1xi32>
    %7 = arith.cmpi slt, %5, %6 : vector<32x1xi32>
    %c0_6 = arith.constant 0 : index
    %c0_7 = arith.constant 0 : index
    %c0_8 = arith.constant 0 : index
    %8 = vector.load %arg1[%c0_6, %c0_7, %c0_8] : memref<1x64x128xbf16, #tpu.memory_space<vmem>>, vector<1x64x128xbf16>
    %9 = vector.shape_cast %8 : vector<1x64x128xbf16> to vector<64x128xbf16>
    %c0_9 = arith.constant 0 : index
    %c0_10 = arith.constant 0 : index
    %c0_11 = arith.constant 0 : index
    %10 = vector.load %arg2[%c0_9, %c0_10, %c0_11] : memref<5x128x128xbf16, #tpu.memory_space<vmem>>, vector<1x128x128xbf16>
    %11 = vector.shape_cast %10 : vector<1x128x128xbf16> to vector<128x128xbf16>
    %c1 = arith.constant 1 : index
    %c0_12 = arith.constant 0 : index
    %c0_13 = arith.constant 0 : index
    %12 = vector.load %arg2[%c1, %c0_12, %c0_13] : memref<5x128x128xbf16, #tpu.memory_space<vmem>>, vector<1x128x128xbf16>
    %13 = vector.shape_cast %12 : vector<1x128x128xbf16> to vector<128x128xbf16>
    %c2 = arith.constant 2 : index
    %c0_14 = arith.constant 0 : index
    %c0_15 = arith.constant 0 : index
    %14 = vector.load %arg2[%c2, %c0_14, %c0_15] : memref<5x128x128xbf16, #tpu.memory_space<vmem>>, vector<1x128x128xbf16>
    %15 = vector.shape_cast %14 : vector<1x128x128xbf16> to vector<128x128xbf16>
    %c3 = arith.constant 3 : index
    %c0_16 = arith.constant 0 : index
    %c0_17 = arith.constant 0 : index
    %16 = vector.load %arg2[%c3, %c0_16, %c0_17] : memref<5x128x128xbf16, #tpu.memory_space<vmem>>, vector<1x128x128xbf16>
    %17 = vector.shape_cast %16 : vector<1x128x128xbf16> to vector<128x128xbf16>
    %c4 = arith.constant 4 : index
    %c0_18 = arith.constant 0 : index
    %c0_19 = arith.constant 0 : index
    %18 = vector.load %arg2[%c4, %c0_18, %c0_19] : memref<5x128x128xbf16, #tpu.memory_space<vmem>>, vector<1x128x128xbf16>
    %19 = vector.shape_cast %18 : vector<1x128x128xbf16> to vector<128x128xbf16>
    %c0_20 = arith.constant 0 : index
    %c0_21 = arith.constant 0 : index
    %c0_22 = arith.constant 0 : index
    %20 = vector.load %arg5[%c0_20, %c0_21, %c0_22] : memref<4x1x128xf32, #tpu.memory_space<vmem>>, vector<1x1x128xf32>
    %21 = vector.shape_cast %20 : vector<1x1x128xf32> to vector<1x128xf32>
    %c0_23 = arith.constant 0 : index
    %c0_24 = arith.constant 0 : index
    %c0_25 = arith.constant 0 : index
    %22 = vector.load %arg6[%c0_23, %c0_24, %c0_25] : memref<4x1x128xf32, #tpu.memory_space<vmem>>, vector<1x1x128xf32>
    %23 = vector.shape_cast %22 : vector<1x1x128xf32> to vector<1x128xf32>
    %cst_26 = arith.constant 0.000000e+00 : f32
    %24 = vector.broadcast %cst_26 : f32 to vector<32x128xf32>
    %c2_i32 = arith.constant 2 : i32
    %25 = tpu.dynamic_rotate %9 by %c2_i32 dim 0 : vector<64x128xbf16>, i32 -> vector<64x128xbf16>
    %26 = vector.extract_strided_slice %25 {offsets = [16, 0], sizes = [32, 128], strides = [1, 1]} : vector<64x128xbf16> to vector<32x128xbf16>
    %cst_27 = arith.constant dense<0.000000e+00> : vector<32x128xf32>
    %27 = tpu.matmul %26, %11, %cst_27 {dimension_numbers = #tpu.dot_dimension_numbers<[1], [0], [0], [1], [0, 0, 1, 1], [], []>} : vector<32x128xbf16>, vector<128x128xbf16>, vector<32x128xf32> -> vector<32x128xf32>
    %28 = arith.addf %24, %27 : vector<32x128xf32>
    %c1_i32 = arith.constant 1 : i32
    %29 = tpu.dynamic_rotate %9 by %c1_i32 dim 0 : vector<64x128xbf16>, i32 -> vector<64x128xbf16>
    %30 = vector.extract_strided_slice %29 {offsets = [16, 0], sizes = [32, 128], strides = [1, 1]} : vector<64x128xbf16> to vector<32x128xbf16>
    %cst_28 = arith.constant dense<0.000000e+00> : vector<32x128xf32>
    %31 = tpu.matmul %30, %13, %cst_28 {dimension_numbers = #tpu.dot_dimension_numbers<[1], [0], [0], [1], [0, 0, 1, 1], [], []>} : vector<32x128xbf16>, vector<128x128xbf16>, vector<32x128xf32> -> vector<32x128xf32>
    %32 = arith.addf %28, %31 : vector<32x128xf32>
    %33 = vector.extract_strided_slice %9 {offsets = [16, 0], sizes = [32, 128], strides = [1, 1]} : vector<64x128xbf16> to vector<32x128xbf16>
    %cst_29 = arith.constant dense<0.000000e+00> : vector<32x128xf32>
    %34 = tpu.matmul %33, %15, %cst_29 {dimension_numbers = #tpu.dot_dimension_numbers<[1], [0], [0], [1], [0, 0, 1, 1], [], []>} : vector<32x128xbf16>, vector<128x128xbf16>, vector<32x128xf32> -> vector<32x128xf32>
    %35 = arith.addf %32, %34 : vector<32x128xf32>
    %c63_i32 = arith.constant 63 : i32
    %36 = tpu.dynamic_rotate %9 by %c63_i32 dim 0 : vector<64x128xbf16>, i32 -> vector<64x128xbf16>
    %37 = vector.extract_strided_slice %36 {offsets = [16, 0], sizes = [32, 128], strides = [1, 1]} : vector<64x128xbf16> to vector<32x128xbf16>
    %cst_30 = arith.constant dense<0.000000e+00> : vector<32x128xf32>
    %38 = tpu.matmul %37, %17, %cst_30 {dimension_numbers = #tpu.dot_dimension_numbers<[1], [0], [0], [1], [0, 0, 1, 1], [], []>} : vector<32x128xbf16>, vector<128x128xbf16>, vector<32x128xf32> -> vector<32x128xf32>
    %39 = arith.addf %35, %38 : vector<32x128xf32>
    %c62_i32 = arith.constant 62 : i32
    %40 = tpu.dynamic_rotate %9 by %c62_i32 dim 0 : vector<64x128xbf16>, i32 -> vector<64x128xbf16>
    %41 = vector.extract_strided_slice %40 {offsets = [16, 0], sizes = [32, 128], strides = [1, 1]} : vector<64x128xbf16> to vector<32x128xbf16>
    %cst_31 = arith.constant dense<0.000000e+00> : vector<32x128xf32>
    %42 = tpu.matmul %41, %19, %cst_31 {dimension_numbers = #tpu.dot_dimension_numbers<[1], [0], [0], [1], [0, 0, 1, 1], [], []>} : vector<32x128xbf16>, vector<128x128xbf16>, vector<32x128xf32> -> vector<32x128xf32>
    %43 = arith.addf %39, %42 : vector<32x128xf32>
    %44 = vector.broadcast %21 : vector<1x128xf32> to vector<32x128xf32>
    %45 = arith.mulf %43, %44 : vector<32x128xf32>
    %46 = vector.broadcast %23 : vector<1x128xf32> to vector<32x128xf32>
    %47 = arith.addf %45, %46 : vector<32x128xf32>
    %48 = math.tanh %47 : vector<32x128xf32>
    %cst_32 = arith.constant 0.000000e+00 : f32
    %49 = vector.shape_cast %7 : vector<32x1xi1> to vector<32x1xi1>
    %50 = vector.broadcast %49 : vector<32x1xi1> to vector<32x128xi1>
    %51 = vector.broadcast %cst_32 : f32 to vector<32x128xf32>
    %52 = arith.select %50, %48, %51 : vector<32x128xi1>, vector<32x128xf32>
    %53 = arith.truncf %52 : vector<32x128xf32> to vector<32x128xbf16>
    %c16 = arith.constant 16 : index
    %c0_33 = arith.constant 0 : index
    %54 = vector.load %arg10[%c16, %c0_33] : memref<64x128xbf16, #tpu.memory_space<vmem>>, vector<32x128xbf16>
    tpu.vector_store %arg10[%c16, %c0_33], %53 {strides = array<i32>} : memref<64x128xbf16, #tpu.memory_space<vmem>>, vector<32x128xbf16>,
    %c0_34 = arith.constant 0 : index
    %c0_35 = arith.constant 0 : index
    %55 = vector.load %arg10[%c0_34, %c0_35] : memref<64x128xbf16, #tpu.memory_space<vmem>>, vector<64x128xbf16>
    %c0_36 = arith.constant 0 : index
    %c0_37 = arith.constant 0 : index
    %c0_38 = arith.constant 0 : index
    %56 = vector.load %arg3[%c0_36, %c0_37, %c0_38] : memref<15x128x128xbf16, #tpu.memory_space<vmem>>, vector<1x128x128xbf16>
    %57 = vector.shape_cast %56 : vector<1x128x128xbf16> to vector<128x128xbf16>
    %c1_39 = arith.constant 1 : index
    %c0_40 = arith.constant 0 : index
    %c0_41 = arith.constant 0 : index
    %58 = vector.load %arg3[%c1_39, %c0_40, %c0_41] : memref<15x128x128xbf16, #tpu.memory_space<vmem>>, vector<1x128x128xbf16>
    %59 = vector.shape_cast %58 : vector<1x128x128xbf16> to vector<128x128xbf16>
    %c2_42 = arith.constant 2 : index
    %c0_43 = arith.constant 0 : index
    %c0_44 = arith.constant 0 : index
    %60 = vector.load %arg3[%c2_42, %c0_43, %c0_44] : memref<15x128x128xbf16, #tpu.memory_space<vmem>>, vector<1x128x128xbf16>
    %61 = vector.shape_cast %60 : vector<1x128x128xbf16> to vector<128x128xbf16>
    %c3_45 = arith.constant 3 : index
    %c0_46 = arith.constant 0 : index
    %c0_47 = arith.constant 0 : index
    %62 = vector.load %arg3[%c3_45, %c0_46, %c0_47] : memref<15x128x128xbf16, #tpu.memory_space<vmem>>, vector<1x128x128xbf16>
    %63 = vector.shape_cast %62 : vector<1x128x128xbf16> to vector<128x128xbf16>
    %c4_48 = arith.constant 4 : index
    %c0_49 = arith.constant 0 : index
    %c0_50 = arith.constant 0 : index
    %64 = vector.load %arg3[%c4_48, %c0_49, %c0_50] : memref<15x128x128xbf16, #tpu.memory_space<vmem>>, vector<1x128x128xbf16>
    %65 = vector.shape_cast %64 : vector<1x128x128xbf16> to vector<128x128xbf16>
    %c1_51 = arith.constant 1 : index
    %c0_52 = arith.constant 0 : index
    %c0_53 = arith.constant 0 : index
    %66 = vector.load %arg5[%c1_51, %c0_52, %c0_53] : memref<4x1x128xf32, #tpu.memory_space<vmem>>, vector<1x1x128xf32>
    %67 = vector.shape_cast %66 : vector<1x1x128xf32> to vector<1x128xf32>
    %c1_54 = arith.constant 1 : index
    %c0_55 = arith.constant 0 : index
    %c0_56 = arith.constant 0 : index
    %68 = vector.load %arg6[%c1_54, %c0_55, %c0_56] : memref<4x1x128xf32, #tpu.memory_space<vmem>>, vector<1x1x128xf32>
    %69 = vector.shape_cast %68 : vector<1x1x128xf32> to vector<1x128xf32>
    %cst_57 = arith.constant 0.000000e+00 : f32
    %70 = vector.broadcast %cst_57 : f32 to vector<32x128xf32>
    %c2_i32_58 = arith.constant 2 : i32
    %71 = tpu.dynamic_rotate %55 by %c2_i32_58 dim 0 : vector<64x128xbf16>, i32 -> vector<64x128xbf16>
    %72 = vector.extract_strided_slice %71 {offsets = [16, 0], sizes = [32, 128], strides = [1, 1]} : vector<64x128xbf16> to vector<32x128xbf16>
    %cst_59 = arith.constant dense<0.000000e+00> : vector<32x128xf32>
    %73 = tpu.matmul %72, %57, %cst_59 {dimension_numbers = #tpu.dot_dimension_numbers<[1], [0], [0], [1], [0, 0, 1, 1], [], []>} : vector<32x128xbf16>, vector<128x128xbf16>, vector<32x128xf32> -> vector<32x128xf32>
    %74 = arith.addf %70, %73 : vector<32x128xf32>
    %c1_i32_60 = arith.constant 1 : i32
    %75 = tpu.dynamic_rotate %55 by %c1_i32_60 dim 0 : vector<64x128xbf16>, i32 -> vector<64x128xbf16>
    %76 = vector.extract_strided_slice %75 {offsets = [16, 0], sizes = [32, 128], strides = [1, 1]} : vector<64x128xbf16> to vector<32x128xbf16>
    %cst_61 = arith.constant dense<0.000000e+00> : vector<32x128xf32>
    %77 = tpu.matmul %76, %59, %cst_61 {dimension_numbers = #tpu.dot_dimension_numbers<[1], [0], [0], [1], [0, 0, 1, 1], [], []>} : vector<32x128xbf16>, vector<128x128xbf16>, vector<32x128xf32> -> vector<32x128xf32>
    %78 = arith.addf %74, %77 : vector<32x128xf32>
    %79 = vector.extract_strided_slice %55 {offsets = [16, 0], sizes = [32, 128], strides = [1, 1]} : vector<64x128xbf16> to vector<32x128xbf16>
    %cst_62 = arith.constant dense<0.000000e+00> : vector<32x128xf32>
    %80 = tpu.matmul %79, %61, %cst_62 {dimension_numbers = #tpu.dot_dimension_numbers<[1], [0], [0], [1], [0, 0, 1, 1], [], []>} : vector<32x128xbf16>, vector<128x128xbf16>, vector<32x128xf32> -> vector<32x128xf32>
    %81 = arith.addf %78, %80 : vector<32x128xf32>
    %c63_i32_63 = arith.constant 63 : i32
    %82 = tpu.dynamic_rotate %55 by %c63_i32_63 dim 0 : vector<64x128xbf16>, i32 -> vector<64x128xbf16>
    %83 = vector.extract_strided_slice %82 {offsets = [16, 0], sizes = [32, 128], strides = [1, 1]} : vector<64x128xbf16> to vector<32x128xbf16>
    %cst_64 = arith.constant dense<0.000000e+00> : vector<32x128xf32>
    %84 = tpu.matmul %83, %63, %cst_64 {dimension_numbers = #tpu.dot_dimension_numbers<[1], [0], [0], [1], [0, 0, 1, 1], [], []>} : vector<32x128xbf16>, vector<128x128xbf16>, vector<32x128xf32> -> vector<32x128xf32>
    %85 = arith.addf %81, %84 : vector<32x128xf32>
    %c62_i32_65 = arith.constant 62 : i32
    %86 = tpu.dynamic_rotate %55 by %c62_i32_65 dim 0 : vector<64x128xbf16>, i32 -> vector<64x128xbf16>
    %87 = vector.extract_strided_slice %86 {offsets = [16, 0], sizes = [32, 128], strides = [1, 1]} : vector<64x128xbf16> to vector<32x128xbf16>
    %cst_66 = arith.constant dense<0.000000e+00> : vector<32x128xf32>
    %88 = tpu.matmul %87, %65, %cst_66 {dimension_numbers = #tpu.dot_dimension_numbers<[1], [0], [0], [1], [0, 0, 1, 1], [], []>} : vector<32x128xbf16>, vector<128x128xbf16>, vector<32x128xf32> -> vector<32x128xf32>
    %89 = arith.addf %85, %88 : vector<32x128xf32>
    %90 = vector.broadcast %67 : vector<1x128xf32> to vector<32x128xf32>
    %91 = arith.mulf %89, %90 : vector<32x128xf32>
    %92 = vector.broadcast %69 : vector<1x128xf32> to vector<32x128xf32>
    %93 = arith.addf %91, %92 : vector<32x128xf32>
    %94 = math.tanh %93 : vector<32x128xf32>
    %cst_67 = arith.constant 0.000000e+00 : f32
    %95 = vector.shape_cast %7 : vector<32x1xi1> to vector<32x1xi1>
    %96 = vector.broadcast %95 : vector<32x1xi1> to vector<32x128xi1>
    %97 = vector.broadcast %cst_67 : f32 to vector<32x128xf32>
    %98 = arith.select %96, %94, %97 : vector<32x128xi1>, vector<32x128xf32>
    %99 = arith.truncf %98 : vector<32x128xf32> to vector<32x128xbf16>
    %c16_68 = arith.constant 16 : index
    %c0_69 = arith.constant 0 : index
    %100 = vector.load %arg11[%c16_68, %c0_69] : memref<64x128xbf16, #tpu.memory_space<vmem>>, vector<32x128xbf16>
    tpu.vector_store %arg11[%c16_68, %c0_69], %99 {strides = array<i32>} : memref<64x128xbf16, #tpu.memory_space<vmem>>, vector<32x128xbf16>,
    %c0_70 = arith.constant 0 : index
    %c0_71 = arith.constant 0 : index
    %101 = vector.load %arg11[%c0_70, %c0_71] : memref<64x128xbf16, #tpu.memory_space<vmem>>, vector<64x128xbf16>
    %c5 = arith.constant 5 : index
    %c0_72 = arith.constant 0 : index
    %c0_73 = arith.constant 0 : index
    %102 = vector.load %arg3[%c5, %c0_72, %c0_73] : memref<15x128x128xbf16, #tpu.memory_space<vmem>>, vector<1x128x128xbf16>
    %103 = vector.shape_cast %102 : vector<1x128x128xbf16> to vector<128x128xbf16>
    %c6 = arith.constant 6 : index
    %c0_74 = arith.constant 0 : index
    %c0_75 = arith.constant 0 : index
    %104 = vector.load %arg3[%c6, %c0_74, %c0_75] : memref<15x128x128xbf16, #tpu.memory_space<vmem>>, vector<1x128x128xbf16>
    %105 = vector.shape_cast %104 : vector<1x128x128xbf16> to vector<128x128xbf16>
    %c7 = arith.constant 7 : index
    %c0_76 = arith.constant 0 : index
    %c0_77 = arith.constant 0 : index
    %106 = vector.load %arg3[%c7, %c0_76, %c0_77] : memref<15x128x128xbf16, #tpu.memory_space<vmem>>, vector<1x128x128xbf16>
    %107 = vector.shape_cast %106 : vector<1x128x128xbf16> to vector<128x128xbf16>
    %c8 = arith.constant 8 : index
    %c0_78 = arith.constant 0 : index
    %c0_79 = arith.constant 0 : index
    %108 = vector.load %arg3[%c8, %c0_78, %c0_79] : memref<15x128x128xbf16, #tpu.memory_space<vmem>>, vector<1x128x128xbf16>
    %109 = vector.shape_cast %108 : vector<1x128x128xbf16> to vector<128x128xbf16>
    %c9 = arith.constant 9 : index
    %c0_80 = arith.constant 0 : index
    %c0_81 = arith.constant 0 : index
    %110 = vector.load %arg3[%c9, %c0_80, %c0_81] : memref<15x128x128xbf16, #tpu.memory_space<vmem>>, vector<1x128x128xbf16>
    %111 = vector.shape_cast %110 : vector<1x128x128xbf16> to vector<128x128xbf16>
    %c2_82 = arith.constant 2 : index
    %c0_83 = arith.constant 0 : index
    %c0_84 = arith.constant 0 : index
    %112 = vector.load %arg5[%c2_82, %c0_83, %c0_84] : memref<4x1x128xf32, #tpu.memory_space<vmem>>, vector<1x1x128xf32>
    %113 = vector.shape_cast %112 : vector<1x1x128xf32> to vector<1x128xf32>
    %c2_85 = arith.constant 2 : index
    %c0_86 = arith.constant 0 : index
    %c0_87 = arith.constant 0 : index
    %114 = vector.load %arg6[%c2_85, %c0_86, %c0_87] : memref<4x1x128xf32, #tpu.memory_space<vmem>>, vector<1x1x128xf32>
    %115 = vector.shape_cast %114 : vector<1x1x128xf32> to vector<1x128xf32>
    %cst_88 = arith.constant 0.000000e+00 : f32
    %116 = vector.broadcast %cst_88 : f32 to vector<32x128xf32>
    %c2_i32_89 = arith.constant 2 : i32
    %117 = tpu.dynamic_rotate %101 by %c2_i32_89 dim 0 : vector<64x128xbf16>, i32 -> vector<64x128xbf16>
    %118 = vector.extract_strided_slice %117 {offsets = [16, 0], sizes = [32, 128], strides = [1, 1]} : vector<64x128xbf16> to vector<32x128xbf16>
    %cst_90 = arith.constant dense<0.000000e+00> : vector<32x128xf32>
    %119 = tpu.matmul %118, %103, %cst_90 {dimension_numbers = #tpu.dot_dimension_numbers<[1], [0], [0], [1], [0, 0, 1, 1], [], []>} : vector<32x128xbf16>, vector<128x128xbf16>, vector<32x128xf32> -> vector<32x128xf32>
    %120 = arith.addf %116, %119 : vector<32x128xf32>
    %c1_i32_91 = arith.constant 1 : i32
    %121 = tpu.dynamic_rotate %101 by %c1_i32_91 dim 0 : vector<64x128xbf16>, i32 -> vector<64x128xbf16>
    %122 = vector.extract_strided_slice %121 {offsets = [16, 0], sizes = [32, 128], strides = [1, 1]} : vector<64x128xbf16> to vector<32x128xbf16>
    %cst_92 = arith.constant dense<0.000000e+00> : vector<32x128xf32>
    %123 = tpu.matmul %122, %105, %cst_92 {dimension_numbers = #tpu.dot_dimension_numbers<[1], [0], [0], [1], [0, 0, 1, 1], [], []>} : vector<32x128xbf16>, vector<128x128xbf16>, vector<32x128xf32> -> vector<32x128xf32>
    %124 = arith.addf %120, %123 : vector<32x128xf32>
    %125 = vector.extract_strided_slice %101 {offsets = [16, 0], sizes = [32, 128], strides = [1, 1]} : vector<64x128xbf16> to vector<32x128xbf16>
    %cst_93 = arith.constant dense<0.000000e+00> : vector<32x128xf32>
    %126 = tpu.matmul %125, %107, %cst_93 {dimension_numbers = #tpu.dot_dimension_numbers<[1], [0], [0], [1], [0, 0, 1, 1], [], []>} : vector<32x128xbf16>, vector<128x128xbf16>, vector<32x128xf32> -> vector<32x128xf32>
    %127 = arith.addf %124, %126 : vector<32x128xf32>
    %c63_i32_94 = arith.constant 63 : i32
    %128 = tpu.dynamic_rotate %101 by %c63_i32_94 dim 0 : vector<64x128xbf16>, i32 -> vector<64x128xbf16>
    %129 = vector.extract_strided_slice %128 {offsets = [16, 0], sizes = [32, 128], strides = [1, 1]} : vector<64x128xbf16> to vector<32x128xbf16>
    %cst_95 = arith.constant dense<0.000000e+00> : vector<32x128xf32>
    %130 = tpu.matmul %129, %109, %cst_95 {dimension_numbers = #tpu.dot_dimension_numbers<[1], [0], [0], [1], [0, 0, 1, 1], [], []>} : vector<32x128xbf16>, vector<128x128xbf16>, vector<32x128xf32> -> vector<32x128xf32>
    %131 = arith.addf %127, %130 : vector<32x128xf32>
    %c62_i32_96 = arith.constant 62 : i32
    %132 = tpu.dynamic_rotate %101 by %c62_i32_96 dim 0 : vector<64x128xbf16>, i32 -> vector<64x128xbf16>
    %133 = vector.extract_strided_slice %132 {offsets = [16, 0], sizes = [32, 128], strides = [1, 1]} : vector<64x128xbf16> to vector<32x128xbf16>
    %cst_97 = arith.constant dense<0.000000e+00> : vector<32x128xf32>
    %134 = tpu.matmul %133, %111, %cst_97 {dimension_numbers = #tpu.dot_dimension_numbers<[1], [0], [0], [1], [0, 0, 1, 1], [], []>} : vector<32x128xbf16>, vector<128x128xbf16>, vector<32x128xf32> -> vector<32x128xf32>
    %135 = arith.addf %131, %134 : vector<32x128xf32>
    %136 = vector.broadcast %113 : vector<1x128xf32> to vector<32x128xf32>
    %137 = arith.mulf %135, %136 : vector<32x128xf32>
    %138 = vector.broadcast %115 : vector<1x128xf32> to vector<32x128xf32>
    %139 = arith.addf %137, %138 : vector<32x128xf32>
    %140 = math.tanh %139 : vector<32x128xf32>
    %cst_98 = arith.constant 0.000000e+00 : f32
    %141 = vector.shape_cast %7 : vector<32x1xi1> to vector<32x1xi1>
    %142 = vector.broadcast %141 : vector<32x1xi1> to vector<32x128xi1>
    %143 = vector.broadcast %cst_98 : f32 to vector<32x128xf32>
    %144 = arith.select %142, %140, %143 : vector<32x128xi1>, vector<32x128xf32>
    %145 = arith.truncf %144 : vector<32x128xf32> to vector<32x128xbf16>
    %c16_99 = arith.constant 16 : index
    %c0_100 = arith.constant 0 : index
    %146 = vector.load %arg10[%c16_99, %c0_100] : memref<64x128xbf16, #tpu.memory_space<vmem>>, vector<32x128xbf16>
    tpu.vector_store %arg10[%c16_99, %c0_100], %145 {strides = array<i32>} : memref<64x128xbf16, #tpu.memory_space<vmem>>, vector<32x128xbf16>,
    %c0_101 = arith.constant 0 : index
    %c0_102 = arith.constant 0 : index
    %147 = vector.load %arg10[%c0_101, %c0_102] : memref<64x128xbf16, #tpu.memory_space<vmem>>, vector<64x128xbf16>
    %c10 = arith.constant 10 : index
    %c0_103 = arith.constant 0 : index
    %c0_104 = arith.constant 0 : index
    %148 = vector.load %arg3[%c10, %c0_103, %c0_104] : memref<15x128x128xbf16, #tpu.memory_space<vmem>>, vector<1x128x128xbf16>
    %149 = vector.shape_cast %148 : vector<1x128x128xbf16> to vector<128x128xbf16>
    %c11 = arith.constant 11 : index
    %c0_105 = arith.constant 0 : index
    %c0_106 = arith.constant 0 : index
    %150 = vector.load %arg3[%c11, %c0_105, %c0_106] : memref<15x128x128xbf16, #tpu.memory_space<vmem>>, vector<1x128x128xbf16>
    %151 = vector.shape_cast %150 : vector<1x128x128xbf16> to vector<128x128xbf16>
    %c12 = arith.constant 12 : index
    %c0_107 = arith.constant 0 : index
    %c0_108 = arith.constant 0 : index
    %152 = vector.load %arg3[%c12, %c0_107, %c0_108] : memref<15x128x128xbf16, #tpu.memory_space<vmem>>, vector<1x128x128xbf16>
    %153 = vector.shape_cast %152 : vector<1x128x128xbf16> to vector<128x128xbf16>
    %c13 = arith.constant 13 : index
    %c0_109 = arith.constant 0 : index
    %c0_110 = arith.constant 0 : index
    %154 = vector.load %arg3[%c13, %c0_109, %c0_110] : memref<15x128x128xbf16, #tpu.memory_space<vmem>>, vector<1x128x128xbf16>
    %155 = vector.shape_cast %154 : vector<1x128x128xbf16> to vector<128x128xbf16>
    %c14 = arith.constant 14 : index
    %c0_111 = arith.constant 0 : index
    %c0_112 = arith.constant 0 : index
    %156 = vector.load %arg3[%c14, %c0_111, %c0_112] : memref<15x128x128xbf16, #tpu.memory_space<vmem>>, vector<1x128x128xbf16>
    %157 = vector.shape_cast %156 : vector<1x128x128xbf16> to vector<128x128xbf16>
    %c3_113 = arith.constant 3 : index
    %c0_114 = arith.constant 0 : index
    %c0_115 = arith.constant 0 : index
    %158 = vector.load %arg5[%c3_113, %c0_114, %c0_115] : memref<4x1x128xf32, #tpu.memory_space<vmem>>, vector<1x1x128xf32>
    %159 = vector.shape_cast %158 : vector<1x1x128xf32> to vector<1x128xf32>
    %c3_116 = arith.constant 3 : index
    %c0_117 = arith.constant 0 : index
    %c0_118 = arith.constant 0 : index
    %160 = vector.load %arg6[%c3_116, %c0_117, %c0_118] : memref<4x1x128xf32, #tpu.memory_space<vmem>>, vector<1x1x128xf32>
    %161 = vector.shape_cast %160 : vector<1x1x128xf32> to vector<1x128xf32>
    %cst_119 = arith.constant 0.000000e+00 : f32
    %162 = vector.broadcast %cst_119 : f32 to vector<32x128xf32>
    %c2_i32_120 = arith.constant 2 : i32
    %163 = tpu.dynamic_rotate %147 by %c2_i32_120 dim 0 : vector<64x128xbf16>, i32 -> vector<64x128xbf16>
    %164 = vector.extract_strided_slice %163 {offsets = [16, 0], sizes = [32, 128], strides = [1, 1]} : vector<64x128xbf16> to vector<32x128xbf16>
    %cst_121 = arith.constant dense<0.000000e+00> : vector<32x128xf32>
    %165 = tpu.matmul %164, %149, %cst_121 {dimension_numbers = #tpu.dot_dimension_numbers<[1], [0], [0], [1], [0, 0, 1, 1], [], []>} : vector<32x128xbf16>, vector<128x128xbf16>, vector<32x128xf32> -> vector<32x128xf32>
    %166 = arith.addf %162, %165 : vector<32x128xf32>
    %c1_i32_122 = arith.constant 1 : i32
    %167 = tpu.dynamic_rotate %147 by %c1_i32_122 dim 0 : vector<64x128xbf16>, i32 -> vector<64x128xbf16>
    %168 = vector.extract_strided_slice %167 {offsets = [16, 0], sizes = [32, 128], strides = [1, 1]} : vector<64x128xbf16> to vector<32x128xbf16>
    %cst_123 = arith.constant dense<0.000000e+00> : vector<32x128xf32>
    %169 = tpu.matmul %168, %151, %cst_123 {dimension_numbers = #tpu.dot_dimension_numbers<[1], [0], [0], [1], [0, 0, 1, 1], [], []>} : vector<32x128xbf16>, vector<128x128xbf16>, vector<32x128xf32> -> vector<32x128xf32>
    %170 = arith.addf %166, %169 : vector<32x128xf32>
    %171 = vector.extract_strided_slice %147 {offsets = [16, 0], sizes = [32, 128], strides = [1, 1]} : vector<64x128xbf16> to vector<32x128xbf16>
    %cst_124 = arith.constant dense<0.000000e+00> : vector<32x128xf32>
    %172 = tpu.matmul %171, %153, %cst_124 {dimension_numbers = #tpu.dot_dimension_numbers<[1], [0], [0], [1], [0, 0, 1, 1], [], []>} : vector<32x128xbf16>, vector<128x128xbf16>, vector<32x128xf32> -> vector<32x128xf32>
    %173 = arith.addf %170, %172 : vector<32x128xf32>
    %c63_i32_125 = arith.constant 63 : i32
    %174 = tpu.dynamic_rotate %147 by %c63_i32_125 dim 0 : vector<64x128xbf16>, i32 -> vector<64x128xbf16>
    %175 = vector.extract_strided_slice %174 {offsets = [16, 0], sizes = [32, 128], strides = [1, 1]} : vector<64x128xbf16> to vector<32x128xbf16>
    %cst_126 = arith.constant dense<0.000000e+00> : vector<32x128xf32>
    %176 = tpu.matmul %175, %155, %cst_126 {dimension_numbers = #tpu.dot_dimension_numbers<[1], [0], [0], [1], [0, 0, 1, 1], [], []>} : vector<32x128xbf16>, vector<128x128xbf16>, vector<32x128xf32> -> vector<32x128xf32>
    %177 = arith.addf %173, %176 : vector<32x128xf32>
    %c62_i32_127 = arith.constant 62 : i32
    %178 = tpu.dynamic_rotate %147 by %c62_i32_127 dim 0 : vector<64x128xbf16>, i32 -> vector<64x128xbf16>
    %179 = vector.extract_strided_slice %178 {offsets = [16, 0], sizes = [32, 128], strides = [1, 1]} : vector<64x128xbf16> to vector<32x128xbf16>
    %cst_128 = arith.constant dense<0.000000e+00> : vector<32x128xf32>
    %180 = tpu.matmul %179, %157, %cst_128 {dimension_numbers = #tpu.dot_dimension_numbers<[1], [0], [0], [1], [0, 0, 1, 1], [], []>} : vector<32x128xbf16>, vector<128x128xbf16>, vector<32x128xf32> -> vector<32x128xf32>
    %181 = arith.addf %177, %180 : vector<32x128xf32>
    %182 = vector.broadcast %159 : vector<1x128xf32> to vector<32x128xf32>
    %183 = arith.mulf %181, %182 : vector<32x128xf32>
    %184 = vector.broadcast %161 : vector<1x128xf32> to vector<32x128xf32>
    %185 = arith.addf %183, %184 : vector<32x128xf32>
    %186 = math.tanh %185 : vector<32x128xf32>
    %cst_129 = arith.constant 0.000000e+00 : f32
    %187 = vector.shape_cast %7 : vector<32x1xi1> to vector<32x1xi1>
    %188 = vector.broadcast %187 : vector<32x1xi1> to vector<32x128xi1>
    %189 = vector.broadcast %cst_129 : f32 to vector<32x128xf32>
    %190 = arith.select %188, %186, %189 : vector<32x128xi1>, vector<32x128xf32>
    %191 = arith.truncf %190 : vector<32x128xf32> to vector<32x128xbf16>
    %c16_130 = arith.constant 16 : index
    %c0_131 = arith.constant 0 : index
    %192 = vector.load %arg11[%c16_130, %c0_131] : memref<64x128xbf16, #tpu.memory_space<vmem>>, vector<32x128xbf16>
    tpu.vector_store %arg11[%c16_130, %c0_131], %191 {strides = array<i32>} : memref<64x128xbf16, #tpu.memory_space<vmem>>, vector<32x128xbf16>,
    %c0_132 = arith.constant 0 : index
    %c0_133 = arith.constant 0 : index
    %193 = vector.load %arg11[%c0_132, %c0_133] : memref<64x128xbf16, #tpu.memory_space<vmem>>, vector<64x128xbf16>
    %c0_134 = arith.constant 0 : index
    %c0_135 = arith.constant 0 : index
    %c0_136 = arith.constant 0 : index
    %194 = vector.load %arg4[%c0_134, %c0_135, %c0_136] : memref<5x128x128xbf16, #tpu.memory_space<vmem>>, vector<1x128x128xbf16>
    %195 = vector.shape_cast %194 : vector<1x128x128xbf16> to vector<128x128xbf16>
    %c1_137 = arith.constant 1 : index
    %c0_138 = arith.constant 0 : index
    %c0_139 = arith.constant 0 : index
    %196 = vector.load %arg4[%c1_137, %c0_138, %c0_139] : memref<5x128x128xbf16, #tpu.memory_space<vmem>>, vector<1x128x128xbf16>
    %197 = vector.shape_cast %196 : vector<1x128x128xbf16> to vector<128x128xbf16>
    %c2_140 = arith.constant 2 : index
    %c0_141 = arith.constant 0 : index
    %c0_142 = arith.constant 0 : index
    %198 = vector.load %arg4[%c2_140, %c0_141, %c0_142] : memref<5x128x128xbf16, #tpu.memory_space<vmem>>, vector<1x128x128xbf16>
    %199 = vector.shape_cast %198 : vector<1x128x128xbf16> to vector<128x128xbf16>
    %c3_143 = arith.constant 3 : index
    %c0_144 = arith.constant 0 : index
    %c0_145 = arith.constant 0 : index
    %200 = vector.load %arg4[%c3_143, %c0_144, %c0_145] : memref<5x128x128xbf16, #tpu.memory_space<vmem>>, vector<1x128x128xbf16>
    %201 = vector.shape_cast %200 : vector<1x128x128xbf16> to vector<128x128xbf16>
    %c4_146 = arith.constant 4 : index
    %c0_147 = arith.constant 0 : index
    %c0_148 = arith.constant 0 : index
    %202 = vector.load %arg4[%c4_146, %c0_147, %c0_148] : memref<5x128x128xbf16, #tpu.memory_space<vmem>>, vector<1x128x128xbf16>
    %203 = vector.shape_cast %202 : vector<1x128x128xbf16> to vector<128x128xbf16>
    %c0_149 = arith.constant 0 : index
    %c0_150 = arith.constant 0 : index
    %c0_151 = arith.constant 0 : index
    %204 = vector.load %arg7[%c0_149, %c0_150, %c0_151] : memref<1x1x128xf32, #tpu.memory_space<vmem>>, vector<1x1x128xf32>
    %205 = vector.shape_cast %204 : vector<1x1x128xf32> to vector<1x128xf32>
    %c0_152 = arith.constant 0 : index
    %c0_153 = arith.constant 0 : index
    %c0_154 = arith.constant 0 : index
    %206 = vector.load %arg8[%c0_152, %c0_153, %c0_154] : memref<1x1x128xf32, #tpu.memory_space<vmem>>, vector<1x1x128xf32>
    %207 = vector.shape_cast %206 : vector<1x1x128xf32> to vector<1x128xf32>
    %cst_155 = arith.constant 0.000000e+00 : f32
    %208 = vector.broadcast %cst_155 : f32 to vector<32x128xf32>
    %c2_i32_156 = arith.constant 2 : i32
    %209 = tpu.dynamic_rotate %193 by %c2_i32_156 dim 0 : vector<64x128xbf16>, i32 -> vector<64x128xbf16>
    %210 = vector.extract_strided_slice %209 {offsets = [16, 0], sizes = [32, 128], strides = [1, 1]} : vector<64x128xbf16> to vector<32x128xbf16>
    %cst_157 = arith.constant dense<0.000000e+00> : vector<32x128xf32>
    %211 = tpu.matmul %210, %195, %cst_157 {dimension_numbers = #tpu.dot_dimension_numbers<[1], [0], [0], [1], [0, 0, 1, 1], [], []>} : vector<32x128xbf16>, vector<128x128xbf16>, vector<32x128xf32> -> vector<32x128xf32>
    %212 = arith.addf %208, %211 : vector<32x128xf32>
    %c1_i32_158 = arith.constant 1 : i32
    %213 = tpu.dynamic_rotate %193 by %c1_i32_158 dim 0 : vector<64x128xbf16>, i32 -> vector<64x128xbf16>
    %214 = vector.extract_strided_slice %213 {offsets = [16, 0], sizes = [32, 128], strides = [1, 1]} : vector<64x128xbf16> to vector<32x128xbf16>
    %cst_159 = arith.constant dense<0.000000e+00> : vector<32x128xf32>
    %215 = tpu.matmul %214, %197, %cst_159 {dimension_numbers = #tpu.dot_dimension_numbers<[1], [0], [0], [1], [0, 0, 1, 1], [], []>} : vector<32x128xbf16>, vector<128x128xbf16>, vector<32x128xf32> -> vector<32x128xf32>
    %216 = arith.addf %212, %215 : vector<32x128xf32>
    %217 = vector.extract_strided_slice %193 {offsets = [16, 0], sizes = [32, 128], strides = [1, 1]} : vector<64x128xbf16> to vector<32x128xbf16>
    %cst_160 = arith.constant dense<0.000000e+00> : vector<32x128xf32>
    %218 = tpu.matmul %217, %199, %cst_160 {dimension_numbers = #tpu.dot_dimension_numbers<[1], [0], [0], [1], [0, 0, 1, 1], [], []>} : vector<32x128xbf16>, vector<128x128xbf16>, vector<32x128xf32> -> vector<32x128xf32>
    %219 = arith.addf %216, %218 : vector<32x128xf32>
    %c63_i32_161 = arith.constant 63 : i32
    %220 = tpu.dynamic_rotate %193 by %c63_i32_161 dim 0 : vector<64x128xbf16>, i32 -> vector<64x128xbf16>
    %221 = vector.extract_strided_slice %220 {offsets = [16, 0], sizes = [32, 128], strides = [1, 1]} : vector<64x128xbf16> to vector<32x128xbf16>
    %cst_162 = arith.constant dense<0.000000e+00> : vector<32x128xf32>
    %222 = tpu.matmul %221, %201, %cst_162 {dimension_numbers = #tpu.dot_dimension_numbers<[1], [0], [0], [1], [0, 0, 1, 1], [], []>} : vector<32x128xbf16>, vector<128x128xbf16>, vector<32x128xf32> -> vector<32x128xf32>
    %223 = arith.addf %219, %222 : vector<32x128xf32>
    %c62_i32_163 = arith.constant 62 : i32
    %224 = tpu.dynamic_rotate %193 by %c62_i32_163 dim 0 : vector<64x128xbf16>, i32 -> vector<64x128xbf16>
    %225 = vector.extract_strided_slice %224 {offsets = [16, 0], sizes = [32, 128], strides = [1, 1]} : vector<64x128xbf16> to vector<32x128xbf16>
    %cst_164 = arith.constant dense<0.000000e+00> : vector<32x128xf32>
    %226 = tpu.matmul %225, %203, %cst_164 {dimension_numbers = #tpu.dot_dimension_numbers<[1], [0], [0], [1], [0, 0, 1, 1], [], []>} : vector<32x128xbf16>, vector<128x128xbf16>, vector<32x128xf32> -> vector<32x128xf32>
    %227 = arith.addf %223, %226 : vector<32x128xf32>
    %228 = vector.broadcast %205 : vector<1x128xf32> to vector<32x128xf32>
    %229 = arith.mulf %227, %228 : vector<32x128xf32>
    %230 = vector.broadcast %207 : vector<1x128xf32> to vector<32x128xf32>
    %231 = arith.addf %229, %230 : vector<32x128xf32>
    %c0_165 = arith.constant 0 : index
    %c0_166 = arith.constant 0 : index
    %c0_167 = arith.constant 0 : index
    %232 = vector.load %arg9[%c0_165, %c0_166, %c0_167] : memref<1x32x128xf32, #tpu.memory_space<vmem>>, vector<1x32x128xf32>
    %233 = vector.shape_cast %232 : vector<1x32x128xf32> to vector<32x128xf32>
    %234 = vector.shape_cast %231 : vector<32x128xf32> to vector<1x32x128xf32>
    tpu.vector_store %arg9[%c0_165, %c0_166, %c0_167], %234 {strides = array<i32>} : memref<1x32x128xf32, #tpu.memory_space<vmem>>, vector<1x32x128xf32>,
    return
  }
  func.func @transform_0(%arg0: i32) -> (i32, i32, i32) {
    %c0_i32 = arith.constant 0 : i32
    %c0_i32_0 = arith.constant 0 : i32
    %c0_i32_1 = arith.constant 0 : i32
    return %arg0, %c0_i32, %c0_i32_0 : i32, i32, i32
  }
  func.func @transform_1(%arg0: i32) -> (i32, i32, i32) {
    %c0_i32 = arith.constant 0 : i32
    %c0_i32_0 = arith.constant 0 : i32
    %c0_i32_1 = arith.constant 0 : i32
    %c0_i32_2 = arith.constant 0 : i32
    return %c0_i32, %c0_i32_0, %c0_i32_1 : i32, i32, i32
  }
  func.func @transform_2(%arg0: i32) -> (i32, i32, i32) {
    %c0_i32 = arith.constant 0 : i32
    %c0_i32_0 = arith.constant 0 : i32
    %c0_i32_1 = arith.constant 0 : i32
    %c0_i32_2 = arith.constant 0 : i32
    return %c0_i32, %c0_i32_0, %c0_i32_1 : i32, i32, i32
  }
  func.func @transform_3(%arg0: i32) -> (i32, i32, i32) {
    %c0_i32 = arith.constant 0 : i32
    %c0_i32_0 = arith.constant 0 : i32
    %c0_i32_1 = arith.constant 0 : i32
    %c0_i32_2 = arith.constant 0 : i32
    return %c0_i32, %c0_i32_0, %c0_i32_1 : i32, i32, i32
  }
  func.func @transform_4(%arg0: i32) -> (i32, i32, i32) {
    %c0_i32 = arith.constant 0 : i32
    %c0_i32_0 = arith.constant 0 : i32
    %c0_i32_1 = arith.constant 0 : i32
    %c0_i32_2 = arith.constant 0 : i32
    return %c0_i32, %c0_i32_0, %c0_i32_1 : i32, i32, i32
  }
  func.func @transform_5(%arg0: i32) -> (i32, i32, i32) {
    %c0_i32 = arith.constant 0 : i32
    %c0_i32_0 = arith.constant 0 : i32
    %c0_i32_1 = arith.constant 0 : i32
    %c0_i32_2 = arith.constant 0 : i32
    return %c0_i32, %c0_i32_0, %c0_i32_1 : i32, i32, i32
  }
  func.func @transform_6(%arg0: i32) -> (i32, i32, i32) {
    %c0_i32 = arith.constant 0 : i32
    %c0_i32_0 = arith.constant 0 : i32
    %c0_i32_1 = arith.constant 0 : i32
    %c0_i32_2 = arith.constant 0 : i32
    return %c0_i32, %c0_i32_0, %c0_i32_1 : i32, i32, i32
  }
  func.func @transform_7(%arg0: i32) -> (i32, i32, i32) {
    %c0_i32 = arith.constant 0 : i32
    %c0_i32_0 = arith.constant 0 : i32
    %c0_i32_1 = arith.constant 0 : i32
    %c0_i32_2 = arith.constant 0 : i32
    return %c0_i32, %c0_i32_0, %c0_i32_1 : i32, i32, i32
  }
  func.func @transform_8(%arg0: i32) -> (i32, i32, i32) {
    %c0_i32 = arith.constant 0 : i32
    %c0_i32_0 = arith.constant 0 : i32
    %c0_i32_1 = arith.constant 0 : i32
    return %arg0, %c0_i32, %c0_i32_0 : i32, i32, i32
  }
}

module attributes {stable_mosaic.version = 11 : i64} {
  func.func @_postnet_fused_kernel(%arg0: i32, %arg1: memref<1x64x128xbf16, #tpu.memory_space<vmem>>, %arg2: memref<5x128x128xbf16, #tpu.memory_space<vmem>>, %arg3: memref<15x128x128xbf16, #tpu.memory_space<vmem>>, %arg4: memref<5x128x128xbf16, #tpu.memory_space<vmem>>, %arg5: memref<4x1x128xf32, #tpu.memory_space<vmem>>, %arg6: memref<4x1x128xf32, #tpu.memory_space<vmem>>, %arg7: memref<1x1x128xf32, #tpu.memory_space<vmem>>, %arg8: memref<1x1x128xf32, #tpu.memory_space<vmem>>, %arg9: memref<1x32x128xf32, #tpu.memory_space<vmem>>, %arg10: memref<64x128xbf16, #tpu.memory_space<vmem>>, %arg11: memref<64x128xbf16, #tpu.memory_space<vmem>>) attributes {dimension_semantics = [#tpu.dimension_semantics<parallel>], iteration_bounds = array<i64: 2>, scalar_prefetch = 0 : i64, scratch_operands = 2 : i64, tpu.core_type = #tpu.core_type<tc>, window_params = [{transform_indices = @transform_0, window_bounds = array<i64: 1, 64, 128>}, {pipeline_mode = #tpu.pipeline_mode<synchronous>, transform_indices = @transform_1, window_bounds = array<i64: 5, 128, 128>}, {pipeline_mode = #tpu.pipeline_mode<synchronous>, transform_indices = @transform_2, window_bounds = array<i64: 15, 128, 128>}, {pipeline_mode = #tpu.pipeline_mode<synchronous>, transform_indices = @transform_3, window_bounds = array<i64: 5, 128, 128>}, {pipeline_mode = #tpu.pipeline_mode<synchronous>, transform_indices = @transform_4, window_bounds = array<i64: 4, 1, 128>}, {pipeline_mode = #tpu.pipeline_mode<synchronous>, transform_indices = @transform_5, window_bounds = array<i64: 4, 1, 128>}, {pipeline_mode = #tpu.pipeline_mode<synchronous>, transform_indices = @transform_6, window_bounds = array<i64: 1, 1, 128>}, {pipeline_mode = #tpu.pipeline_mode<synchronous>, transform_indices = @transform_7, window_bounds = array<i64: 1, 1, 128>}, {transform_indices = @transform_8, window_bounds = array<i64: 1, 32, 128>}]} {
    %cst = arith.constant 0.000000e+00 : bf16
    %0 = vector.broadcast %cst : bf16 to vector<16x128xbf16>
    %c0 = arith.constant 0 : index
    %c0_0 = arith.constant 0 : index
    %1 = vector.load %arg10[%c0, %c0_0] : memref<64x128xbf16, #tpu.memory_space<vmem>>, vector<16x128xbf16>
    tpu.vector_store %arg10[%c0, %c0_0], %0 {strides = array<i32>} : memref<64x128xbf16, #tpu.memory_space<vmem>>, vector<16x128xbf16>,
    %c48 = arith.constant 48 : index
    %c0_1 = arith.constant 0 : index
    %2 = vector.load %arg10[%c48, %c0_1] : memref<64x128xbf16, #tpu.memory_space<vmem>>, vector<16x128xbf16>
    tpu.vector_store %arg10[%c48, %c0_1], %0 {strides = array<i32>} : memref<64x128xbf16, #tpu.memory_space<vmem>>, vector<16x128xbf16>,
    %c0_2 = arith.constant 0 : index
    %c0_3 = arith.constant 0 : index
    %3 = vector.load %arg11[%c0_2, %c0_3] : memref<64x128xbf16, #tpu.memory_space<vmem>>, vector<16x128xbf16>
    tpu.vector_store %arg11[%c0_2, %c0_3], %0 {strides = array<i32>} : memref<64x128xbf16, #tpu.memory_space<vmem>>, vector<16x128xbf16>,
    %c48_4 = arith.constant 48 : index
    %c0_5 = arith.constant 0 : index
    %4 = vector.load %arg11[%c48_4, %c0_5] : memref<64x128xbf16, #tpu.memory_space<vmem>>, vector<16x128xbf16>
    tpu.vector_store %arg11[%c48_4, %c0_5], %0 {strides = array<i32>} : memref<64x128xbf16, #tpu.memory_space<vmem>>, vector<16x128xbf16>,
    %5 = tpu.iota {dimensions = array<i32: 0>} : vector<32x1xi32>
    %c20_i32 = arith.constant 20 : i32
    %6 = vector.broadcast %c20_i32 : i32 to vector<32x1xi32>
    %7 = arith.cmpi slt, %5, %6 : vector<32x1xi32>
    %c0_6 = arith.constant 0 : index
    %c0_7 = arith.constant 0 : index
    %c0_8 = arith.constant 0 : index
    %8 = vector.load %arg1[%c0_6, %c0_7, %c0_8] : memref<1x64x128xbf16, #tpu.memory_space<vmem>>, vector<1x64x128xbf16>
    %9 = vector.shape_cast %8 : vector<1x64x128xbf16> to vector<64x128xbf16>
    %c0_9 = arith.constant 0 : index
    %c0_10 = arith.constant 0 : index
    %c0_11 = arith.constant 0 : index
    %10 = vector.load %arg2[%c0_9, %c0_10, %c0_11] : memref<5x128x128xbf16, #tpu.memory_space<vmem>>, vector<1x128x128xbf16>
    %11 = vector.shape_cast %10 : vector<1x128x128xbf16> to vector<128x128xbf16>
    %c1 = arith.constant 1 : index
    %c0_12 = arith.constant 0 : index
    %c0_13 = arith.constant 0 : index
    %12 = vector.load %arg2[%c1, %c0_12, %c0_13] : memref<5x128x128xbf16, #tpu.memory_space<vmem>>, vector<1x128x128xbf16>
    %13 = vector.shape_cast %12 : vector<1x128x128xbf16> to vector<128x128xbf16>
    %c2 = arith.constant 2 : index
    %c0_14 = arith.constant 0 : index
    %c0_15 = arith.constant 0 : index
    %14 = vector.load %arg2[%c2, %c0_14, %c0_15] : memref<5x128x128xbf16, #tpu.memory_space<vmem>>, vector<1x128x128xbf16>
    %15 = vector.shape_cast %14 : vector<1x128x128xbf16> to vector<128x128xbf16>
    %c3 = arith.constant 3 : index
    %c0_16 = arith.constant 0 : index
    %c0_17 = arith.constant 0 : index
    %16 = vector.load %arg2[%c3, %c0_16, %c0_17] : memref<5x128x128xbf16, #tpu.memory_space<vmem>>, vector<1x128x128xbf16>
    %17 = vector.shape_cast %16 : vector<1x128x128xbf16> to vector<128x128xbf16>
    %c4 = arith.constant 4 : index
    %c0_18 = arith.constant 0 : index
    %c0_19 = arith.constant 0 : index
    %18 = vector.load %arg2[%c4, %c0_18, %c0_19] : memref<5x128x128xbf16, #tpu.memory_space<vmem>>, vector<1x128x128xbf16>
    %19 = vector.shape_cast %18 : vector<1x128x128xbf16> to vector<128x128xbf16>
    %c0_20 = arith.constant 0 : index
    %c0_21 = arith.constant 0 : index
    %c0_22 = arith.constant 0 : index
    %20 = vector.load %arg5[%c0_20, %c0_21, %c0_22] : memref<4x1x128xf32, #tpu.memory_space<vmem>>, vector<1x1x128xf32>
    %21 = vector.shape_cast %20 : vector<1x1x128xf32> to vector<1x128xf32>
    %c0_23 = arith.constant 0 : index
    %c0_24 = arith.constant 0 : index
    %c0_25 = arith.constant 0 : index
    %22 = vector.load %arg6[%c0_23, %c0_24, %c0_25] : memref<4x1x128xf32, #tpu.memory_space<vmem>>, vector<1x1x128xf32>
    %23 = vector.shape_cast %22 : vector<1x1x128xf32> to vector<1x128xf32>
    %cst_26 = arith.constant 0.000000e+00 : f32
    %24 = vector.broadcast %cst_26 : f32 to vector<32x128xf32>
    %25 = vector.extract_strided_slice %9 {offsets = [14, 0], sizes = [32, 128], strides = [1, 1]} : vector<64x128xbf16> to vector<32x128xbf16>
    %cst_27 = arith.constant dense<0.000000e+00> : vector<32x128xf32>
    %26 = tpu.matmul %25, %11, %cst_27 {dimension_numbers = #tpu.dot_dimension_numbers<[1], [0], [0], [1], [0, 0, 1, 1], [], []>} : vector<32x128xbf16>, vector<128x128xbf16>, vector<32x128xf32> -> vector<32x128xf32>
    %27 = arith.addf %24, %26 : vector<32x128xf32>
    %28 = vector.extract_strided_slice %9 {offsets = [15, 0], sizes = [32, 128], strides = [1, 1]} : vector<64x128xbf16> to vector<32x128xbf16>
    %cst_28 = arith.constant dense<0.000000e+00> : vector<32x128xf32>
    %29 = tpu.matmul %28, %13, %cst_28 {dimension_numbers = #tpu.dot_dimension_numbers<[1], [0], [0], [1], [0, 0, 1, 1], [], []>} : vector<32x128xbf16>, vector<128x128xbf16>, vector<32x128xf32> -> vector<32x128xf32>
    %30 = arith.addf %27, %29 : vector<32x128xf32>
    %31 = vector.extract_strided_slice %9 {offsets = [16, 0], sizes = [32, 128], strides = [1, 1]} : vector<64x128xbf16> to vector<32x128xbf16>
    %cst_29 = arith.constant dense<0.000000e+00> : vector<32x128xf32>
    %32 = tpu.matmul %31, %15, %cst_29 {dimension_numbers = #tpu.dot_dimension_numbers<[1], [0], [0], [1], [0, 0, 1, 1], [], []>} : vector<32x128xbf16>, vector<128x128xbf16>, vector<32x128xf32> -> vector<32x128xf32>
    %33 = arith.addf %30, %32 : vector<32x128xf32>
    %34 = vector.extract_strided_slice %9 {offsets = [17, 0], sizes = [32, 128], strides = [1, 1]} : vector<64x128xbf16> to vector<32x128xbf16>
    %cst_30 = arith.constant dense<0.000000e+00> : vector<32x128xf32>
    %35 = tpu.matmul %34, %17, %cst_30 {dimension_numbers = #tpu.dot_dimension_numbers<[1], [0], [0], [1], [0, 0, 1, 1], [], []>} : vector<32x128xbf16>, vector<128x128xbf16>, vector<32x128xf32> -> vector<32x128xf32>
    %36 = arith.addf %33, %35 : vector<32x128xf32>
    %37 = vector.extract_strided_slice %9 {offsets = [18, 0], sizes = [32, 128], strides = [1, 1]} : vector<64x128xbf16> to vector<32x128xbf16>
    %cst_31 = arith.constant dense<0.000000e+00> : vector<32x128xf32>
    %38 = tpu.matmul %37, %19, %cst_31 {dimension_numbers = #tpu.dot_dimension_numbers<[1], [0], [0], [1], [0, 0, 1, 1], [], []>} : vector<32x128xbf16>, vector<128x128xbf16>, vector<32x128xf32> -> vector<32x128xf32>
    %39 = arith.addf %36, %38 : vector<32x128xf32>
    %40 = vector.broadcast %21 : vector<1x128xf32> to vector<32x128xf32>
    %41 = arith.mulf %39, %40 : vector<32x128xf32>
    %42 = vector.broadcast %23 : vector<1x128xf32> to vector<32x128xf32>
    %43 = arith.addf %41, %42 : vector<32x128xf32>
    %44 = math.tanh %43 : vector<32x128xf32>
    %cst_32 = arith.constant 0.000000e+00 : f32
    %45 = vector.shape_cast %7 : vector<32x1xi1> to vector<32x1xi1>
    %46 = vector.broadcast %45 : vector<32x1xi1> to vector<32x128xi1>
    %47 = vector.broadcast %cst_32 : f32 to vector<32x128xf32>
    %48 = arith.select %46, %44, %47 : vector<32x128xi1>, vector<32x128xf32>
    %49 = arith.truncf %48 : vector<32x128xf32> to vector<32x128xbf16>
    %c16 = arith.constant 16 : index
    %c0_33 = arith.constant 0 : index
    %50 = vector.load %arg10[%c16, %c0_33] : memref<64x128xbf16, #tpu.memory_space<vmem>>, vector<32x128xbf16>
    tpu.vector_store %arg10[%c16, %c0_33], %49 {strides = array<i32>} : memref<64x128xbf16, #tpu.memory_space<vmem>>, vector<32x128xbf16>,
    %c0_34 = arith.constant 0 : index
    %c0_35 = arith.constant 0 : index
    %51 = vector.load %arg10[%c0_34, %c0_35] : memref<64x128xbf16, #tpu.memory_space<vmem>>, vector<64x128xbf16>
    %c0_36 = arith.constant 0 : index
    %c0_37 = arith.constant 0 : index
    %c0_38 = arith.constant 0 : index
    %52 = vector.load %arg3[%c0_36, %c0_37, %c0_38] : memref<15x128x128xbf16, #tpu.memory_space<vmem>>, vector<1x128x128xbf16>
    %53 = vector.shape_cast %52 : vector<1x128x128xbf16> to vector<128x128xbf16>
    %c1_39 = arith.constant 1 : index
    %c0_40 = arith.constant 0 : index
    %c0_41 = arith.constant 0 : index
    %54 = vector.load %arg3[%c1_39, %c0_40, %c0_41] : memref<15x128x128xbf16, #tpu.memory_space<vmem>>, vector<1x128x128xbf16>
    %55 = vector.shape_cast %54 : vector<1x128x128xbf16> to vector<128x128xbf16>
    %c2_42 = arith.constant 2 : index
    %c0_43 = arith.constant 0 : index
    %c0_44 = arith.constant 0 : index
    %56 = vector.load %arg3[%c2_42, %c0_43, %c0_44] : memref<15x128x128xbf16, #tpu.memory_space<vmem>>, vector<1x128x128xbf16>
    %57 = vector.shape_cast %56 : vector<1x128x128xbf16> to vector<128x128xbf16>
    %c3_45 = arith.constant 3 : index
    %c0_46 = arith.constant 0 : index
    %c0_47 = arith.constant 0 : index
    %58 = vector.load %arg3[%c3_45, %c0_46, %c0_47] : memref<15x128x128xbf16, #tpu.memory_space<vmem>>, vector<1x128x128xbf16>
    %59 = vector.shape_cast %58 : vector<1x128x128xbf16> to vector<128x128xbf16>
    %c4_48 = arith.constant 4 : index
    %c0_49 = arith.constant 0 : index
    %c0_50 = arith.constant 0 : index
    %60 = vector.load %arg3[%c4_48, %c0_49, %c0_50] : memref<15x128x128xbf16, #tpu.memory_space<vmem>>, vector<1x128x128xbf16>
    %61 = vector.shape_cast %60 : vector<1x128x128xbf16> to vector<128x128xbf16>
    %c1_51 = arith.constant 1 : index
    %c0_52 = arith.constant 0 : index
    %c0_53 = arith.constant 0 : index
    %62 = vector.load %arg5[%c1_51, %c0_52, %c0_53] : memref<4x1x128xf32, #tpu.memory_space<vmem>>, vector<1x1x128xf32>
    %63 = vector.shape_cast %62 : vector<1x1x128xf32> to vector<1x128xf32>
    %c1_54 = arith.constant 1 : index
    %c0_55 = arith.constant 0 : index
    %c0_56 = arith.constant 0 : index
    %64 = vector.load %arg6[%c1_54, %c0_55, %c0_56] : memref<4x1x128xf32, #tpu.memory_space<vmem>>, vector<1x1x128xf32>
    %65 = vector.shape_cast %64 : vector<1x1x128xf32> to vector<1x128xf32>
    %cst_57 = arith.constant 0.000000e+00 : f32
    %66 = vector.broadcast %cst_57 : f32 to vector<32x128xf32>
    %67 = vector.extract_strided_slice %51 {offsets = [14, 0], sizes = [32, 128], strides = [1, 1]} : vector<64x128xbf16> to vector<32x128xbf16>
    %cst_58 = arith.constant dense<0.000000e+00> : vector<32x128xf32>
    %68 = tpu.matmul %67, %53, %cst_58 {dimension_numbers = #tpu.dot_dimension_numbers<[1], [0], [0], [1], [0, 0, 1, 1], [], []>} : vector<32x128xbf16>, vector<128x128xbf16>, vector<32x128xf32> -> vector<32x128xf32>
    %69 = arith.addf %66, %68 : vector<32x128xf32>
    %70 = vector.extract_strided_slice %51 {offsets = [15, 0], sizes = [32, 128], strides = [1, 1]} : vector<64x128xbf16> to vector<32x128xbf16>
    %cst_59 = arith.constant dense<0.000000e+00> : vector<32x128xf32>
    %71 = tpu.matmul %70, %55, %cst_59 {dimension_numbers = #tpu.dot_dimension_numbers<[1], [0], [0], [1], [0, 0, 1, 1], [], []>} : vector<32x128xbf16>, vector<128x128xbf16>, vector<32x128xf32> -> vector<32x128xf32>
    %72 = arith.addf %69, %71 : vector<32x128xf32>
    %73 = vector.extract_strided_slice %51 {offsets = [16, 0], sizes = [32, 128], strides = [1, 1]} : vector<64x128xbf16> to vector<32x128xbf16>
    %cst_60 = arith.constant dense<0.000000e+00> : vector<32x128xf32>
    %74 = tpu.matmul %73, %57, %cst_60 {dimension_numbers = #tpu.dot_dimension_numbers<[1], [0], [0], [1], [0, 0, 1, 1], [], []>} : vector<32x128xbf16>, vector<128x128xbf16>, vector<32x128xf32> -> vector<32x128xf32>
    %75 = arith.addf %72, %74 : vector<32x128xf32>
    %76 = vector.extract_strided_slice %51 {offsets = [17, 0], sizes = [32, 128], strides = [1, 1]} : vector<64x128xbf16> to vector<32x128xbf16>
    %cst_61 = arith.constant dense<0.000000e+00> : vector<32x128xf32>
    %77 = tpu.matmul %76, %59, %cst_61 {dimension_numbers = #tpu.dot_dimension_numbers<[1], [0], [0], [1], [0, 0, 1, 1], [], []>} : vector<32x128xbf16>, vector<128x128xbf16>, vector<32x128xf32> -> vector<32x128xf32>
    %78 = arith.addf %75, %77 : vector<32x128xf32>
    %79 = vector.extract_strided_slice %51 {offsets = [18, 0], sizes = [32, 128], strides = [1, 1]} : vector<64x128xbf16> to vector<32x128xbf16>
    %cst_62 = arith.constant dense<0.000000e+00> : vector<32x128xf32>
    %80 = tpu.matmul %79, %61, %cst_62 {dimension_numbers = #tpu.dot_dimension_numbers<[1], [0], [0], [1], [0, 0, 1, 1], [], []>} : vector<32x128xbf16>, vector<128x128xbf16>, vector<32x128xf32> -> vector<32x128xf32>
    %81 = arith.addf %78, %80 : vector<32x128xf32>
    %82 = vector.broadcast %63 : vector<1x128xf32> to vector<32x128xf32>
    %83 = arith.mulf %81, %82 : vector<32x128xf32>
    %84 = vector.broadcast %65 : vector<1x128xf32> to vector<32x128xf32>
    %85 = arith.addf %83, %84 : vector<32x128xf32>
    %86 = math.tanh %85 : vector<32x128xf32>
    %cst_63 = arith.constant 0.000000e+00 : f32
    %87 = vector.shape_cast %7 : vector<32x1xi1> to vector<32x1xi1>
    %88 = vector.broadcast %87 : vector<32x1xi1> to vector<32x128xi1>
    %89 = vector.broadcast %cst_63 : f32 to vector<32x128xf32>
    %90 = arith.select %88, %86, %89 : vector<32x128xi1>, vector<32x128xf32>
    %91 = arith.truncf %90 : vector<32x128xf32> to vector<32x128xbf16>
    %c16_64 = arith.constant 16 : index
    %c0_65 = arith.constant 0 : index
    %92 = vector.load %arg11[%c16_64, %c0_65] : memref<64x128xbf16, #tpu.memory_space<vmem>>, vector<32x128xbf16>
    tpu.vector_store %arg11[%c16_64, %c0_65], %91 {strides = array<i32>} : memref<64x128xbf16, #tpu.memory_space<vmem>>, vector<32x128xbf16>,
    %c0_66 = arith.constant 0 : index
    %c0_67 = arith.constant 0 : index
    %93 = vector.load %arg11[%c0_66, %c0_67] : memref<64x128xbf16, #tpu.memory_space<vmem>>, vector<64x128xbf16>
    %c5 = arith.constant 5 : index
    %c0_68 = arith.constant 0 : index
    %c0_69 = arith.constant 0 : index
    %94 = vector.load %arg3[%c5, %c0_68, %c0_69] : memref<15x128x128xbf16, #tpu.memory_space<vmem>>, vector<1x128x128xbf16>
    %95 = vector.shape_cast %94 : vector<1x128x128xbf16> to vector<128x128xbf16>
    %c6 = arith.constant 6 : index
    %c0_70 = arith.constant 0 : index
    %c0_71 = arith.constant 0 : index
    %96 = vector.load %arg3[%c6, %c0_70, %c0_71] : memref<15x128x128xbf16, #tpu.memory_space<vmem>>, vector<1x128x128xbf16>
    %97 = vector.shape_cast %96 : vector<1x128x128xbf16> to vector<128x128xbf16>
    %c7 = arith.constant 7 : index
    %c0_72 = arith.constant 0 : index
    %c0_73 = arith.constant 0 : index
    %98 = vector.load %arg3[%c7, %c0_72, %c0_73] : memref<15x128x128xbf16, #tpu.memory_space<vmem>>, vector<1x128x128xbf16>
    %99 = vector.shape_cast %98 : vector<1x128x128xbf16> to vector<128x128xbf16>
    %c8 = arith.constant 8 : index
    %c0_74 = arith.constant 0 : index
    %c0_75 = arith.constant 0 : index
    %100 = vector.load %arg3[%c8, %c0_74, %c0_75] : memref<15x128x128xbf16, #tpu.memory_space<vmem>>, vector<1x128x128xbf16>
    %101 = vector.shape_cast %100 : vector<1x128x128xbf16> to vector<128x128xbf16>
    %c9 = arith.constant 9 : index
    %c0_76 = arith.constant 0 : index
    %c0_77 = arith.constant 0 : index
    %102 = vector.load %arg3[%c9, %c0_76, %c0_77] : memref<15x128x128xbf16, #tpu.memory_space<vmem>>, vector<1x128x128xbf16>
    %103 = vector.shape_cast %102 : vector<1x128x128xbf16> to vector<128x128xbf16>
    %c2_78 = arith.constant 2 : index
    %c0_79 = arith.constant 0 : index
    %c0_80 = arith.constant 0 : index
    %104 = vector.load %arg5[%c2_78, %c0_79, %c0_80] : memref<4x1x128xf32, #tpu.memory_space<vmem>>, vector<1x1x128xf32>
    %105 = vector.shape_cast %104 : vector<1x1x128xf32> to vector<1x128xf32>
    %c2_81 = arith.constant 2 : index
    %c0_82 = arith.constant 0 : index
    %c0_83 = arith.constant 0 : index
    %106 = vector.load %arg6[%c2_81, %c0_82, %c0_83] : memref<4x1x128xf32, #tpu.memory_space<vmem>>, vector<1x1x128xf32>
    %107 = vector.shape_cast %106 : vector<1x1x128xf32> to vector<1x128xf32>
    %cst_84 = arith.constant 0.000000e+00 : f32
    %108 = vector.broadcast %cst_84 : f32 to vector<32x128xf32>
    %109 = vector.extract_strided_slice %93 {offsets = [14, 0], sizes = [32, 128], strides = [1, 1]} : vector<64x128xbf16> to vector<32x128xbf16>
    %cst_85 = arith.constant dense<0.000000e+00> : vector<32x128xf32>
    %110 = tpu.matmul %109, %95, %cst_85 {dimension_numbers = #tpu.dot_dimension_numbers<[1], [0], [0], [1], [0, 0, 1, 1], [], []>} : vector<32x128xbf16>, vector<128x128xbf16>, vector<32x128xf32> -> vector<32x128xf32>
    %111 = arith.addf %108, %110 : vector<32x128xf32>
    %112 = vector.extract_strided_slice %93 {offsets = [15, 0], sizes = [32, 128], strides = [1, 1]} : vector<64x128xbf16> to vector<32x128xbf16>
    %cst_86 = arith.constant dense<0.000000e+00> : vector<32x128xf32>
    %113 = tpu.matmul %112, %97, %cst_86 {dimension_numbers = #tpu.dot_dimension_numbers<[1], [0], [0], [1], [0, 0, 1, 1], [], []>} : vector<32x128xbf16>, vector<128x128xbf16>, vector<32x128xf32> -> vector<32x128xf32>
    %114 = arith.addf %111, %113 : vector<32x128xf32>
    %115 = vector.extract_strided_slice %93 {offsets = [16, 0], sizes = [32, 128], strides = [1, 1]} : vector<64x128xbf16> to vector<32x128xbf16>
    %cst_87 = arith.constant dense<0.000000e+00> : vector<32x128xf32>
    %116 = tpu.matmul %115, %99, %cst_87 {dimension_numbers = #tpu.dot_dimension_numbers<[1], [0], [0], [1], [0, 0, 1, 1], [], []>} : vector<32x128xbf16>, vector<128x128xbf16>, vector<32x128xf32> -> vector<32x128xf32>
    %117 = arith.addf %114, %116 : vector<32x128xf32>
    %118 = vector.extract_strided_slice %93 {offsets = [17, 0], sizes = [32, 128], strides = [1, 1]} : vector<64x128xbf16> to vector<32x128xbf16>
    %cst_88 = arith.constant dense<0.000000e+00> : vector<32x128xf32>
    %119 = tpu.matmul %118, %101, %cst_88 {dimension_numbers = #tpu.dot_dimension_numbers<[1], [0], [0], [1], [0, 0, 1, 1], [], []>} : vector<32x128xbf16>, vector<128x128xbf16>, vector<32x128xf32> -> vector<32x128xf32>
    %120 = arith.addf %117, %119 : vector<32x128xf32>
    %121 = vector.extract_strided_slice %93 {offsets = [18, 0], sizes = [32, 128], strides = [1, 1]} : vector<64x128xbf16> to vector<32x128xbf16>
    %cst_89 = arith.constant dense<0.000000e+00> : vector<32x128xf32>
    %122 = tpu.matmul %121, %103, %cst_89 {dimension_numbers = #tpu.dot_dimension_numbers<[1], [0], [0], [1], [0, 0, 1, 1], [], []>} : vector<32x128xbf16>, vector<128x128xbf16>, vector<32x128xf32> -> vector<32x128xf32>
    %123 = arith.addf %120, %122 : vector<32x128xf32>
    %124 = vector.broadcast %105 : vector<1x128xf32> to vector<32x128xf32>
    %125 = arith.mulf %123, %124 : vector<32x128xf32>
    %126 = vector.broadcast %107 : vector<1x128xf32> to vector<32x128xf32>
    %127 = arith.addf %125, %126 : vector<32x128xf32>
    %128 = math.tanh %127 : vector<32x128xf32>
    %cst_90 = arith.constant 0.000000e+00 : f32
    %129 = vector.shape_cast %7 : vector<32x1xi1> to vector<32x1xi1>
    %130 = vector.broadcast %129 : vector<32x1xi1> to vector<32x128xi1>
    %131 = vector.broadcast %cst_90 : f32 to vector<32x128xf32>
    %132 = arith.select %130, %128, %131 : vector<32x128xi1>, vector<32x128xf32>
    %133 = arith.truncf %132 : vector<32x128xf32> to vector<32x128xbf16>
    %c16_91 = arith.constant 16 : index
    %c0_92 = arith.constant 0 : index
    %134 = vector.load %arg10[%c16_91, %c0_92] : memref<64x128xbf16, #tpu.memory_space<vmem>>, vector<32x128xbf16>
    tpu.vector_store %arg10[%c16_91, %c0_92], %133 {strides = array<i32>} : memref<64x128xbf16, #tpu.memory_space<vmem>>, vector<32x128xbf16>,
    %c0_93 = arith.constant 0 : index
    %c0_94 = arith.constant 0 : index
    %135 = vector.load %arg10[%c0_93, %c0_94] : memref<64x128xbf16, #tpu.memory_space<vmem>>, vector<64x128xbf16>
    %c10 = arith.constant 10 : index
    %c0_95 = arith.constant 0 : index
    %c0_96 = arith.constant 0 : index
    %136 = vector.load %arg3[%c10, %c0_95, %c0_96] : memref<15x128x128xbf16, #tpu.memory_space<vmem>>, vector<1x128x128xbf16>
    %137 = vector.shape_cast %136 : vector<1x128x128xbf16> to vector<128x128xbf16>
    %c11 = arith.constant 11 : index
    %c0_97 = arith.constant 0 : index
    %c0_98 = arith.constant 0 : index
    %138 = vector.load %arg3[%c11, %c0_97, %c0_98] : memref<15x128x128xbf16, #tpu.memory_space<vmem>>, vector<1x128x128xbf16>
    %139 = vector.shape_cast %138 : vector<1x128x128xbf16> to vector<128x128xbf16>
    %c12 = arith.constant 12 : index
    %c0_99 = arith.constant 0 : index
    %c0_100 = arith.constant 0 : index
    %140 = vector.load %arg3[%c12, %c0_99, %c0_100] : memref<15x128x128xbf16, #tpu.memory_space<vmem>>, vector<1x128x128xbf16>
    %141 = vector.shape_cast %140 : vector<1x128x128xbf16> to vector<128x128xbf16>
    %c13 = arith.constant 13 : index
    %c0_101 = arith.constant 0 : index
    %c0_102 = arith.constant 0 : index
    %142 = vector.load %arg3[%c13, %c0_101, %c0_102] : memref<15x128x128xbf16, #tpu.memory_space<vmem>>, vector<1x128x128xbf16>
    %143 = vector.shape_cast %142 : vector<1x128x128xbf16> to vector<128x128xbf16>
    %c14 = arith.constant 14 : index
    %c0_103 = arith.constant 0 : index
    %c0_104 = arith.constant 0 : index
    %144 = vector.load %arg3[%c14, %c0_103, %c0_104] : memref<15x128x128xbf16, #tpu.memory_space<vmem>>, vector<1x128x128xbf16>
    %145 = vector.shape_cast %144 : vector<1x128x128xbf16> to vector<128x128xbf16>
    %c3_105 = arith.constant 3 : index
    %c0_106 = arith.constant 0 : index
    %c0_107 = arith.constant 0 : index
    %146 = vector.load %arg5[%c3_105, %c0_106, %c0_107] : memref<4x1x128xf32, #tpu.memory_space<vmem>>, vector<1x1x128xf32>
    %147 = vector.shape_cast %146 : vector<1x1x128xf32> to vector<1x128xf32>
    %c3_108 = arith.constant 3 : index
    %c0_109 = arith.constant 0 : index
    %c0_110 = arith.constant 0 : index
    %148 = vector.load %arg6[%c3_108, %c0_109, %c0_110] : memref<4x1x128xf32, #tpu.memory_space<vmem>>, vector<1x1x128xf32>
    %149 = vector.shape_cast %148 : vector<1x1x128xf32> to vector<1x128xf32>
    %cst_111 = arith.constant 0.000000e+00 : f32
    %150 = vector.broadcast %cst_111 : f32 to vector<32x128xf32>
    %151 = vector.extract_strided_slice %135 {offsets = [14, 0], sizes = [32, 128], strides = [1, 1]} : vector<64x128xbf16> to vector<32x128xbf16>
    %cst_112 = arith.constant dense<0.000000e+00> : vector<32x128xf32>
    %152 = tpu.matmul %151, %137, %cst_112 {dimension_numbers = #tpu.dot_dimension_numbers<[1], [0], [0], [1], [0, 0, 1, 1], [], []>} : vector<32x128xbf16>, vector<128x128xbf16>, vector<32x128xf32> -> vector<32x128xf32>
    %153 = arith.addf %150, %152 : vector<32x128xf32>
    %154 = vector.extract_strided_slice %135 {offsets = [15, 0], sizes = [32, 128], strides = [1, 1]} : vector<64x128xbf16> to vector<32x128xbf16>
    %cst_113 = arith.constant dense<0.000000e+00> : vector<32x128xf32>
    %155 = tpu.matmul %154, %139, %cst_113 {dimension_numbers = #tpu.dot_dimension_numbers<[1], [0], [0], [1], [0, 0, 1, 1], [], []>} : vector<32x128xbf16>, vector<128x128xbf16>, vector<32x128xf32> -> vector<32x128xf32>
    %156 = arith.addf %153, %155 : vector<32x128xf32>
    %157 = vector.extract_strided_slice %135 {offsets = [16, 0], sizes = [32, 128], strides = [1, 1]} : vector<64x128xbf16> to vector<32x128xbf16>
    %cst_114 = arith.constant dense<0.000000e+00> : vector<32x128xf32>
    %158 = tpu.matmul %157, %141, %cst_114 {dimension_numbers = #tpu.dot_dimension_numbers<[1], [0], [0], [1], [0, 0, 1, 1], [], []>} : vector<32x128xbf16>, vector<128x128xbf16>, vector<32x128xf32> -> vector<32x128xf32>
    %159 = arith.addf %156, %158 : vector<32x128xf32>
    %160 = vector.extract_strided_slice %135 {offsets = [17, 0], sizes = [32, 128], strides = [1, 1]} : vector<64x128xbf16> to vector<32x128xbf16>
    %cst_115 = arith.constant dense<0.000000e+00> : vector<32x128xf32>
    %161 = tpu.matmul %160, %143, %cst_115 {dimension_numbers = #tpu.dot_dimension_numbers<[1], [0], [0], [1], [0, 0, 1, 1], [], []>} : vector<32x128xbf16>, vector<128x128xbf16>, vector<32x128xf32> -> vector<32x128xf32>
    %162 = arith.addf %159, %161 : vector<32x128xf32>
    %163 = vector.extract_strided_slice %135 {offsets = [18, 0], sizes = [32, 128], strides = [1, 1]} : vector<64x128xbf16> to vector<32x128xbf16>
    %cst_116 = arith.constant dense<0.000000e+00> : vector<32x128xf32>
    %164 = tpu.matmul %163, %145, %cst_116 {dimension_numbers = #tpu.dot_dimension_numbers<[1], [0], [0], [1], [0, 0, 1, 1], [], []>} : vector<32x128xbf16>, vector<128x128xbf16>, vector<32x128xf32> -> vector<32x128xf32>
    %165 = arith.addf %162, %164 : vector<32x128xf32>
    %166 = vector.broadcast %147 : vector<1x128xf32> to vector<32x128xf32>
    %167 = arith.mulf %165, %166 : vector<32x128xf32>
    %168 = vector.broadcast %149 : vector<1x128xf32> to vector<32x128xf32>
    %169 = arith.addf %167, %168 : vector<32x128xf32>
    %170 = math.tanh %169 : vector<32x128xf32>
    %cst_117 = arith.constant 0.000000e+00 : f32
    %171 = vector.shape_cast %7 : vector<32x1xi1> to vector<32x1xi1>
    %172 = vector.broadcast %171 : vector<32x1xi1> to vector<32x128xi1>
    %173 = vector.broadcast %cst_117 : f32 to vector<32x128xf32>
    %174 = arith.select %172, %170, %173 : vector<32x128xi1>, vector<32x128xf32>
    %175 = arith.truncf %174 : vector<32x128xf32> to vector<32x128xbf16>
    %c16_118 = arith.constant 16 : index
    %c0_119 = arith.constant 0 : index
    %176 = vector.load %arg11[%c16_118, %c0_119] : memref<64x128xbf16, #tpu.memory_space<vmem>>, vector<32x128xbf16>
    tpu.vector_store %arg11[%c16_118, %c0_119], %175 {strides = array<i32>} : memref<64x128xbf16, #tpu.memory_space<vmem>>, vector<32x128xbf16>,
    %c0_120 = arith.constant 0 : index
    %c0_121 = arith.constant 0 : index
    %177 = vector.load %arg11[%c0_120, %c0_121] : memref<64x128xbf16, #tpu.memory_space<vmem>>, vector<64x128xbf16>
    %c0_122 = arith.constant 0 : index
    %c0_123 = arith.constant 0 : index
    %c0_124 = arith.constant 0 : index
    %178 = vector.load %arg4[%c0_122, %c0_123, %c0_124] : memref<5x128x128xbf16, #tpu.memory_space<vmem>>, vector<1x128x128xbf16>
    %179 = vector.shape_cast %178 : vector<1x128x128xbf16> to vector<128x128xbf16>
    %c1_125 = arith.constant 1 : index
    %c0_126 = arith.constant 0 : index
    %c0_127 = arith.constant 0 : index
    %180 = vector.load %arg4[%c1_125, %c0_126, %c0_127] : memref<5x128x128xbf16, #tpu.memory_space<vmem>>, vector<1x128x128xbf16>
    %181 = vector.shape_cast %180 : vector<1x128x128xbf16> to vector<128x128xbf16>
    %c2_128 = arith.constant 2 : index
    %c0_129 = arith.constant 0 : index
    %c0_130 = arith.constant 0 : index
    %182 = vector.load %arg4[%c2_128, %c0_129, %c0_130] : memref<5x128x128xbf16, #tpu.memory_space<vmem>>, vector<1x128x128xbf16>
    %183 = vector.shape_cast %182 : vector<1x128x128xbf16> to vector<128x128xbf16>
    %c3_131 = arith.constant 3 : index
    %c0_132 = arith.constant 0 : index
    %c0_133 = arith.constant 0 : index
    %184 = vector.load %arg4[%c3_131, %c0_132, %c0_133] : memref<5x128x128xbf16, #tpu.memory_space<vmem>>, vector<1x128x128xbf16>
    %185 = vector.shape_cast %184 : vector<1x128x128xbf16> to vector<128x128xbf16>
    %c4_134 = arith.constant 4 : index
    %c0_135 = arith.constant 0 : index
    %c0_136 = arith.constant 0 : index
    %186 = vector.load %arg4[%c4_134, %c0_135, %c0_136] : memref<5x128x128xbf16, #tpu.memory_space<vmem>>, vector<1x128x128xbf16>
    %187 = vector.shape_cast %186 : vector<1x128x128xbf16> to vector<128x128xbf16>
    %c0_137 = arith.constant 0 : index
    %c0_138 = arith.constant 0 : index
    %c0_139 = arith.constant 0 : index
    %188 = vector.load %arg7[%c0_137, %c0_138, %c0_139] : memref<1x1x128xf32, #tpu.memory_space<vmem>>, vector<1x1x128xf32>
    %189 = vector.shape_cast %188 : vector<1x1x128xf32> to vector<1x128xf32>
    %c0_140 = arith.constant 0 : index
    %c0_141 = arith.constant 0 : index
    %c0_142 = arith.constant 0 : index
    %190 = vector.load %arg8[%c0_140, %c0_141, %c0_142] : memref<1x1x128xf32, #tpu.memory_space<vmem>>, vector<1x1x128xf32>
    %191 = vector.shape_cast %190 : vector<1x1x128xf32> to vector<1x128xf32>
    %cst_143 = arith.constant 0.000000e+00 : f32
    %192 = vector.broadcast %cst_143 : f32 to vector<32x128xf32>
    %193 = vector.extract_strided_slice %177 {offsets = [14, 0], sizes = [32, 128], strides = [1, 1]} : vector<64x128xbf16> to vector<32x128xbf16>
    %cst_144 = arith.constant dense<0.000000e+00> : vector<32x128xf32>
    %194 = tpu.matmul %193, %179, %cst_144 {dimension_numbers = #tpu.dot_dimension_numbers<[1], [0], [0], [1], [0, 0, 1, 1], [], []>} : vector<32x128xbf16>, vector<128x128xbf16>, vector<32x128xf32> -> vector<32x128xf32>
    %195 = arith.addf %192, %194 : vector<32x128xf32>
    %196 = vector.extract_strided_slice %177 {offsets = [15, 0], sizes = [32, 128], strides = [1, 1]} : vector<64x128xbf16> to vector<32x128xbf16>
    %cst_145 = arith.constant dense<0.000000e+00> : vector<32x128xf32>
    %197 = tpu.matmul %196, %181, %cst_145 {dimension_numbers = #tpu.dot_dimension_numbers<[1], [0], [0], [1], [0, 0, 1, 1], [], []>} : vector<32x128xbf16>, vector<128x128xbf16>, vector<32x128xf32> -> vector<32x128xf32>
    %198 = arith.addf %195, %197 : vector<32x128xf32>
    %199 = vector.extract_strided_slice %177 {offsets = [16, 0], sizes = [32, 128], strides = [1, 1]} : vector<64x128xbf16> to vector<32x128xbf16>
    %cst_146 = arith.constant dense<0.000000e+00> : vector<32x128xf32>
    %200 = tpu.matmul %199, %183, %cst_146 {dimension_numbers = #tpu.dot_dimension_numbers<[1], [0], [0], [1], [0, 0, 1, 1], [], []>} : vector<32x128xbf16>, vector<128x128xbf16>, vector<32x128xf32> -> vector<32x128xf32>
    %201 = arith.addf %198, %200 : vector<32x128xf32>
    %202 = vector.extract_strided_slice %177 {offsets = [17, 0], sizes = [32, 128], strides = [1, 1]} : vector<64x128xbf16> to vector<32x128xbf16>
    %cst_147 = arith.constant dense<0.000000e+00> : vector<32x128xf32>
    %203 = tpu.matmul %202, %185, %cst_147 {dimension_numbers = #tpu.dot_dimension_numbers<[1], [0], [0], [1], [0, 0, 1, 1], [], []>} : vector<32x128xbf16>, vector<128x128xbf16>, vector<32x128xf32> -> vector<32x128xf32>
    %204 = arith.addf %201, %203 : vector<32x128xf32>
    %205 = vector.extract_strided_slice %177 {offsets = [18, 0], sizes = [32, 128], strides = [1, 1]} : vector<64x128xbf16> to vector<32x128xbf16>
    %cst_148 = arith.constant dense<0.000000e+00> : vector<32x128xf32>
    %206 = tpu.matmul %205, %187, %cst_148 {dimension_numbers = #tpu.dot_dimension_numbers<[1], [0], [0], [1], [0, 0, 1, 1], [], []>} : vector<32x128xbf16>, vector<128x128xbf16>, vector<32x128xf32> -> vector<32x128xf32>
    %207 = arith.addf %204, %206 : vector<32x128xf32>
    %208 = vector.broadcast %189 : vector<1x128xf32> to vector<32x128xf32>
    %209 = arith.mulf %207, %208 : vector<32x128xf32>
    %210 = vector.broadcast %191 : vector<1x128xf32> to vector<32x128xf32>
    %211 = arith.addf %209, %210 : vector<32x128xf32>
    %c0_149 = arith.constant 0 : index
    %c0_150 = arith.constant 0 : index
    %c0_151 = arith.constant 0 : index
    %212 = vector.load %arg9[%c0_149, %c0_150, %c0_151] : memref<1x32x128xf32, #tpu.memory_space<vmem>>, vector<1x32x128xf32>
    %213 = vector.shape_cast %212 : vector<1x32x128xf32> to vector<32x128xf32>
    %214 = vector.shape_cast %211 : vector<32x128xf32> to vector<1x32x128xf32>
    tpu.vector_store %arg9[%c0_149, %c0_150, %c0_151], %214 {strides = array<i32>} : memref<1x32x128xf32, #tpu.memory_space<vmem>>, vector<1x32x128xf32>,
    return
  }
  func.func @transform_0(%arg0: i32) -> (i32, i32, i32) {
    %c0_i32 = arith.constant 0 : i32
    %c0_i32_0 = arith.constant 0 : i32
    %c0_i32_1 = arith.constant 0 : i32
    return %arg0, %c0_i32, %c0_i32_0 : i32, i32, i32
  }
  func.func @transform_1(%arg0: i32) -> (i32, i32, i32) {
    %c0_i32 = arith.constant 0 : i32
    %c0_i32_0 = arith.constant 0 : i32
    %c0_i32_1 = arith.constant 0 : i32
    %c0_i32_2 = arith.constant 0 : i32
    return %c0_i32, %c0_i32_0, %c0_i32_1 : i32, i32, i32
  }
  func.func @transform_2(%arg0: i32) -> (i32, i32, i32) {
    %c0_i32 = arith.constant 0 : i32
    %c0_i32_0 = arith.constant 0 : i32
    %c0_i32_1 = arith.constant 0 : i32
    %c0_i32_2 = arith.constant 0 : i32
    return %c0_i32, %c0_i32_0, %c0_i32_1 : i32, i32, i32
  }
  func.func @transform_3(%arg0: i32) -> (i32, i32, i32) {
    %c0_i32 = arith.constant 0 : i32
    %c0_i32_0 = arith.constant 0 : i32
    %c0_i32_1 = arith.constant 0 : i32
    %c0_i32_2 = arith.constant 0 : i32
    return %c0_i32, %c0_i32_0, %c0_i32_1 : i32, i32, i32
  }
  func.func @transform_4(%arg0: i32) -> (i32, i32, i32) {
    %c0_i32 = arith.constant 0 : i32
    %c0_i32_0 = arith.constant 0 : i32
    %c0_i32_1 = arith.constant 0 : i32
    %c0_i32_2 = arith.constant 0 : i32
    return %c0_i32, %c0_i32_0, %c0_i32_1 : i32, i32, i32
  }
  func.func @transform_5(%arg0: i32) -> (i32, i32, i32) {
    %c0_i32 = arith.constant 0 : i32
    %c0_i32_0 = arith.constant 0 : i32
    %c0_i32_1 = arith.constant 0 : i32
    %c0_i32_2 = arith.constant 0 : i32
    return %c0_i32, %c0_i32_0, %c0_i32_1 : i32, i32, i32
  }
  func.func @transform_6(%arg0: i32) -> (i32, i32, i32) {
    %c0_i32 = arith.constant 0 : i32
    %c0_i32_0 = arith.constant 0 : i32
    %c0_i32_1 = arith.constant 0 : i32
    %c0_i32_2 = arith.constant 0 : i32
    return %c0_i32, %c0_i32_0, %c0_i32_1 : i32, i32, i32
  }
  func.func @transform_7(%arg0: i32) -> (i32, i32, i32) {
    %c0_i32 = arith.constant 0 : i32
    %c0_i32_0 = arith.constant 0 : i32
    %c0_i32_1 = arith.constant 0 : i32
    %c0_i32_2 = arith.constant 0 : i32
    return %c0_i32, %c0_i32_0, %c0_i32_1 : i32, i32, i32
  }
  func.func @transform_8(%arg0: i32) -> (i32, i32, i32) {
    %c0_i32 = arith.constant 0 : i32
    %c0_i32_0 = arith.constant 0 : i32
    %c0_i32_1 = arith.constant 0 : i32
    return %arg0, %c0_i32, %c0_i32_0 : i32, i32, i32
  }
}

</mosaic_0001>

<llo_original>
// kernel: tpu_custom_call.1
$region0: #{tpu_custom_call.1}
  #allocation0 [shape = 'u32[]', space=smem, size = 0x4, offset = 0x4, fixed_abs, tag = 'smem constant byte address 0x4 - core index']
  #allocation1 [shape = 'u32[144,128]{1,0:T(1,128)}', space=vmem, size = 0x12000, scoped, tag = 'internal scratch']
  #allocation2 [shape = 'bf16[64,128]{1,0:T(16,128)(2,1)}', space=vmem, size = 0x4000, scoped, tag = 'scratch operand']
  #allocation3 [shape = 'bf16[64,128]{1,0:T(16,128)(2,1)}', space=vmem, size = 0x4000, scoped, tag = 'scratch operand']
  %s0 = inlined_call_operand.hbm [shape: bf16[2,64,128], index: 0, kind: input, shape index: {}]
  %s1 = inlined_call_operand.hbm [shape: bf16[5,128,128], index: 1, kind: input, shape index: {}]
  %s2 = inlined_call_operand.hbm [shape: bf16[15,128,128], index: 2, kind: input, shape index: {}]
  %s3 = inlined_call_operand.hbm [shape: bf16[5,128,128], index: 3, kind: input, shape index: {}]
  %s4 = inlined_call_operand.vmem [shape: f32[4,1,128], index: 4, kind: input, shape index: {}]
  %s5 = inlined_call_operand.vmem [shape: f32[4,1,128], index: 5, kind: input, shape index: {}]
  %s6 = inlined_call_operand.vmem [shape: f32[1,1,128], index: 6, kind: input, shape index: {}]
  %s7 = inlined_call_operand.vmem [shape: f32[1,1,128], index: 7, kind: input, shape index: {}]
  %s8 = inlined_call_operand.hbm [shape: f32[2,32,128], index: 8, kind: output, shape index: {}]
  %s9 = sld [smem:[#allocation0]]
  $region81: #{tpu_custom_call.1} parent=0
    _
  %s11 = ssub.s32 1, %s9
  %s12 = scalar_select 0, %s11, %s9
  $region1: #{tpu_custom_call.1} parent=0
    #allocation4 [shape = 'u8[32768]{0}', space=vmem, size = 0x8000, scoped, tag = 'input window, operand 0']
    #allocation5 [shape = 's32[2]{0}', space=sflag, size = 0x8, scoped, tag = 'scoped memory for tpu_custom_call.1']
    #allocation6 [shape = 's32[2]{0}', space=sflag, size = 0x8, scoped, tag = 'scoped memory for tpu_custom_call.1']
    #allocation7 [shape = 'u8[163840]{0}', space=vmem, size = 0x28000, scoped, tag = 'input window, operand 1, single buffered']
    #allocation8 [shape = 's32[1]{0}', space=sflag, size = 0x4, scoped, tag = 'scoped memory for tpu_custom_call.1']
    #allocation9 [shape = 'u8[491520]{0}', space=vmem, size = 0x78000, scoped, tag = 'input window, operand 2, single buffered']
    #allocation10 [shape = 'u8[163840]{0}', space=vmem, size = 0x28000, scoped, tag = 'input window, operand 3, single buffered']
    #allocation11 [shape = 's32[1]{0}', space=sflag, size = 0x4, scoped, tag = 'scoped memory for tpu_custom_call.1']
    #allocation12 [shape = 'u8[32768]{0}', space=vmem, size = 0x8000, scoped, tag = 'output window, operand 0']
    %13 = vsyncpa [#allocation5], 0
    %s14 = scalar_lea.sflag [#allocation5], 1
    %15 = vsyncpa %s14, 0
    %16 = vsyncpa [#allocation8], 0
    %17 = vsyncpa [#allocation11], 0
    %18 = vsyncpa [#allocation6], 0
    %s19 = scalar_lea.sflag [#allocation6], 1
    %20 = vsyncpa %s19, 0
    loop: start=0, step=1, limit=4
    $region2: #{tpu_custom_call.1} parent=1 // loop_pre_header
      _
    $region3: #{tpu_custom_call.1} parent=1 // loop_header
      %s22 = sphi 0, %s26
      %p23 = scmp.ge.s32.totalorder %s22, 4
      %s32 = sphi 0, %s34
      %s35 = sphi 0, %s32
      %s36 = sphi 0, %s35
      %s52 = sphi 0, %s36
      %s56 = sphi 0, %s56
      %s58 = sphi 0, %s56
      %s59 = sphi 0, %s58
      %s73 = sphi 0, %s59
      %s77 = sphi 0, %s77
      %s79 = sphi 0, %s77
      %s80 = sphi 0, %s79
      %s94 = sphi 0, %s80
      %s98 = sphi 0, %s98
      %s100 = sphi 0, %s98
      %s101 = sphi 0, %s100
      %s115 = sphi 0, %s101
      %s119 = sphi 0, %s119
      %s121 = sphi 0, %s119
      %s122 = sphi 0, %s121
      %s136 = sphi 0, %s122
      %s140 = sphi 0, %s140
      %s142 = sphi 0, %s140
      %s143 = sphi 0, %s142
      %s157 = sphi 0, %s143
      %s161 = sphi 0, %s161
      %s163 = sphi 0, %s161
      %s164 = sphi 0, %s163
      %s178 = sphi 0, %s164
      %s182 = sphi 0, %s182
      %s184 = sphi 0, %s182
      %s185 = sphi 0, %s184
      %s199 = sphi 0, %s185
      %s205 = sphi 0, %s207
      %s208 = sphi 0, %s205
      %s209 = sphi 0, %s208
      %s225 = sphi 0, %s209
    $region4: #{tpu_custom_call.1} parent=1 // loop_header_branch
      %25 = sbr.rel (%p23) target = $region8
    $region5: #{tpu_custom_call.1} parent=1 // loop_body
      %s27 = ssub.s32 %s22, 1
      %s28 = ssub.s32 %s22, 2
      %s29 = sadd.s32 %s22, 1
      %s30 = ssub.s32 %s22, %s29
      %p31 = scmp.eq.s32.totalorder %s30, 0
      %s33 = sadd.s32 %s32, 1
      %s34 = scalar_select %p31, %s32, %s33
      %p37 = pneg %p31
      %p38 = scmp.eq.s32.totalorder %s22, 1
      %p39 = por %p37, %p38
      %p40 = scmp.ne.s32.totalorder %s32, %s35
      %p41 = scmp.eq.s32.totalorder %s22, 0
      %p42 = por %p40, %p41
      %p43 = scmp.ne.s32.totalorder %s32, %s35
      %p44 = scmp.eq.s32.totalorder %s27, 1
      %p45 = por %p43, %p44
      %p46 = scmp.ne.s32.totalorder %s35, %s36
      %p47 = scmp.eq.s32.totalorder %s27, 0
      %p48 = por %p46, %p47
      %p49 = scmp.ne.s32.totalorder %s35, %s36
      %p50 = scmp.eq.s32.totalorder %s28, 1
      %p51 = por %p49, %p50
      %p53 = scmp.ne.s32.totalorder %s36, %s52
      %p54 = scmp.eq.s32.totalorder %s28, 0
      %p55 = por %p53, %p54
      %s57 = sadd.s32 %s56, 1
      %p60 = scmp.eq.s32.totalorder %s22, 1
      %p61 = scmp.ne.s32.totalorder %s56, %s58
      %p62 = scmp.eq.s32.totalorder %s22, 0
      %p63 = por %p61, %p62
      %p64 = scmp.ne.s32.totalorder %s56, %s58
      %p65 = scmp.eq.s32.totalorder %s27, 1
      %p66 = por %p64, %p65
      %p67 = scmp.ne.s32.totalorder %s58, %s59
      %p68 = scmp.eq.s32.totalorder %s27, 0
      %p69 = por %p67, %p68
      %p70 = scmp.ne.s32.totalorder %s58, %s59
      %p71 = scmp.eq.s32.totalorder %s28, 1
      %p72 = por %p70, %p71
      %p74 = scmp.ne.s32.totalorder %s59, %s73
      %p75 = scmp.eq.s32.totalorder %s28, 0
      %p76 = por %p74, %p75
      %s78 = sadd.s32 %s77, 1
      %p81 = scmp.eq.s32.totalorder %s22, 1
      %p82 = scmp.ne.s32.totalorder %s77, %s79
      %p83 = scmp.eq.s32.totalorder %s22, 0
      %p84 = por %p82, %p83
      %p85 = scmp.ne.s32.totalorder %s77, %s79
      %p86 = scmp.eq.s32.totalorder %s27, 1
      %p87 = por %p85, %p86
      %p88 = scmp.ne.s32.totalorder %s79, %s80
      %p89 = scmp.eq.s32.totalorder %s27, 0
      %p90 = por %p88, %p89
      %p91 = scmp.ne.s32.totalorder %s79, %s80
      %p92 = scmp.eq.s32.totalorder %s28, 1
      %p93 = por %p91, %p92
      %p95 = scmp.ne.s32.totalorder %s80, %s94
      %p96 = scmp.eq.s32.totalorder %s28, 0
      %p97 = por %p95, %p96
      %s99 = sadd.s32 %s98, 1
      %p102 = scmp.eq.s32.totalorder %s22, 1
      %p103 = scmp.ne.s32.totalorder %s98, %s100
      %p104 = scmp.eq.s32.totalorder %s22, 0
      %p105 = por %p103, %p104
      %p106 = scmp.ne.s32.totalorder %s98, %s100
      %p107 = scmp.eq.s32.totalorder %s27, 1
      %p108 = por %p106, %p107
      %p109 = scmp.ne.s32.totalorder %s100, %s101
      %p110 = scmp.eq.s32.totalorder %s27, 0
      %p111 = por %p109, %p110
      %p112 = scmp.ne.s32.totalorder %s100, %s101
      %p113 = scmp.eq.s32.totalorder %s28, 1
      %p114 = por %p112, %p113
      %p116 = scmp.ne.s32.totalorder %s101, %s115
      %p117 = scmp.eq.s32.totalorder %s28, 0
      %p118 = por %p116, %p117
      %s120 = sadd.s32 %s119, 1
      %p123 = scmp.eq.s32.totalorder %s22, 1
      %p124 = scmp.ne.s32.totalorder %s119, %s121
      %p125 = scmp.eq.s32.totalorder %s22, 0
      %p126 = por %p124, %p125
      %p127 = scmp.ne.s32.totalorder %s119, %s121
      %p128 = scmp.eq.s32.totalorder %s27, 1
      %p129 = por %p127, %p128
      %p130 = scmp.ne.s32.totalorder %s121, %s122
      %p131 = scmp.eq.s32.totalorder %s27, 0
      %p132 = por %p130, %p131
      %p133 = scmp.ne.s32.totalorder %s121, %s122
      %p134 = scmp.eq.s32.totalorder %s28, 1
      %p135 = por %p133, %p134
      %p137 = scmp.ne.s32.totalorder %s122, %s136
      %p138 = scmp.eq.s32.totalorder %s28, 0
      %p139 = por %p137, %p138
      %s141 = sadd.s32 %s140, 1
      %p144 = scmp.eq.s32.totalorder %s22, 1
      %p145 = scmp.ne.s32.totalorder %s140, %s142
      %p146 = scmp.eq.s32.totalorder %s22, 0
      %p147 = por %p145, %p146
      %p148 = scmp.ne.s32.totalorder %s140, %s142
      %p149 = scmp.eq.s32.totalorder %s27, 1
      %p150 = por %p148, %p149
      %p151 = scmp.ne.s32.totalorder %s142, %s143
      %p152 = scmp.eq.s32.totalorder %s27, 0
      %p153 = por %p151, %p152
      %p154 = scmp.ne.s32.totalorder %s142, %s143
      %p155 = scmp.eq.s32.totalorder %s28, 1
      %p156 = por %p154, %p155
      %p158 = scmp.ne.s32.totalorder %s143, %s157
      %p159 = scmp.eq.s32.totalorder %s28, 0
      %p160 = por %p158, %p159
      %s162 = sadd.s32 %s161, 1
      %p165 = scmp.eq.s32.totalorder %s22, 1
      %p166 = scmp.ne.s32.totalorder %s161, %s163
      %p167 = scmp.eq.s32.totalorder %s22, 0
      %p168 = por %p166, %p167
      %p169 = scmp.ne.s32.totalorder %s161, %s163
      %p170 = scmp.eq.s32.totalorder %s27, 1
      %p171 = por %p169, %p170
      %p172 = scmp.ne.s32.totalorder %s163, %s164
      %p173 = scmp.eq.s32.totalorder %s27, 0
      %p174 = por %p172, %p173
      %p175 = scmp.ne.s32.totalorder %s163, %s164
      %p176 = scmp.eq.s32.totalorder %s28, 1
      %p177 = por %p175, %p176
      %p179 = scmp.ne.s32.totalorder %s164, %s178
      %p180 = scmp.eq.s32.totalorder %s28, 0
      %p181 = por %p179, %p180
      %s183 = sadd.s32 %s182, 1
      %p186 = scmp.eq.s32.totalorder %s22, 1
      %p187 = scmp.ne.s32.totalorder %s182, %s184
      %p188 = scmp.eq.s32.totalorder %s22, 0
      %p189 = por %p187, %p188
      %p190 = scmp.ne.s32.totalorder %s182, %s184
      %p191 = scmp.eq.s32.totalorder %s27, 1
      %p192 = por %p190, %p191
      %p193 = scmp.ne.s32.totalorder %s184, %s185
      %p194 = scmp.eq.s32.totalorder %s27, 0
      %p195 = por %p193, %p194
      %p196 = scmp.ne.s32.totalorder %s184, %s185
      %p197 = scmp.eq.s32.totalorder %s28, 1
      %p198 = por %p196, %p197
      %p200 = scmp.ne.s32.totalorder %s185, %s199
      %p201 = scmp.eq.s32.totalorder %s28, 0
      %p202 = por %p200, %p201
      %s203 = ssub.s32 %s22, %s29
      %p204 = scmp.eq.s32.totalorder %s203, 0
      %s206 = sadd.s32 %s205, 1
      %s207 = scalar_select %p204, %s205, %s206
      %p210 = pneg %p204
      %p211 = scmp.eq.s32.totalorder %s22, 1
      %p212 = por %p210, %p211
      %p213 = scmp.ne.s32.totalorder %s205, %s208
      %p214 = scmp.eq.s32.totalorder %s22, 0
      %p215 = por %p213, %p214
      %p216 = scmp.ne.s32.totalorder %s205, %s208
      %p217 = scmp.eq.s32.totalorder %s27, 1
      %p218 = por %p216, %p217
      %p219 = scmp.ne.s32.totalorder %s208, %s209
      %p220 = scmp.eq.s32.totalorder %s27, 0
      %p221 = por %p219, %p220
      %p222 = scmp.ne.s32.totalorder %s208, %s209
      %p223 = scmp.eq.s32.totalorder %s28, 1
      %p224 = por %p222, %p223
      %p226 = scmp.ne.s32.totalorder %s209, %s225
      %p227 = scmp.eq.s32.totalorder %s28, 0
      %p228 = por %p226, %p227
      %p229 = scmp.le.s32.totalorder 1, %s22
      %p230 = scmp.lt.s32.totalorder %s22, 3
      %p231 = pnand %p229, %p230
      %p232 = pneg %p231
      // Predicated region
      $region9: #{tpu_custom_call.1} parent=5 // pred_check
        _
      $region10: #{tpu_custom_call.1} parent=5 // pred_check_branch
        %234 = sbr.rel (%p231) target = $region12
      $region11: #{tpu_custom_call.1} parent=5 // pred_region
        %s235 = ssub.s32 %s22, 1
        // Predicated region
        $region13: #{tpu_custom_call.1} parent=11 // pred_check
          %p236 = pneg %p69
        $region14: #{tpu_custom_call.1} parent=11 // pred_check_branch
          %238 = sbr.rel (%p236) target = $region16
        $region15: #{tpu_custom_call.1} parent=11 // pred_region
          %s240 = ssub.s32 5120, 5120
          %241 = vsyncadd [#allocation8], %s240
          %s242 = sshll.u32 [#allocation7], 4
          %s243 = int_to_ptr.vmem [resolvable:$true] %s242
          %248 = dma.hbm_to_vmem [thread:$0]  %s1, 5120, %s243, [#allocation8], 64, 64, 4
        $region16: #{tpu_custom_call.1} parent=11 // pred_fallthru
          _
        // Predicated region
        $region17: #{tpu_custom_call.1} parent=11 // pred_check
          %p249 = pneg %p90
        $region18: #{tpu_custom_call.1} parent=11 // pred_check_branch
          %251 = sbr.rel (%p249) target = $region20
        $region19: #{tpu_custom_call.1} parent=11 // pred_region
          %s253 = ssub.s32 15360, 15360
          %254 = vsyncadd [#allocation8], %s253
          %s255 = sshll.u32 [#allocation9], 4
          %s256 = int_to_ptr.vmem [resolvable:$true] %s255
          %261 = dma.hbm_to_vmem [thread:$0]  %s2, 15360, %s256, [#allocation8], 64, 64, 4
        $region20: #{tpu_custom_call.1} parent=11 // pred_fallthru
          _
        // Predicated region
        $region21: #{tpu_custom_call.1} parent=11 // pred_check
          %p262 = pneg %p111
        $region22: #{tpu_custom_call.1} parent=11 // pred_check_branch
          %264 = sbr.rel (%p262) target = $region24
        $region23: #{tpu_custom_call.1} parent=11 // pred_region
          %s266 = ssub.s32 5120, 5120
          %267 = vsyncadd [#allocation11], %s266
          %s268 = sshll.u32 [#allocation10], 4
          %s269 = int_to_ptr.vmem [resolvable:$true] %s268
          %274 = dma.hbm_to_vmem [thread:$0]  %s3, 5120, %s269, [#allocation11], 64, 64, 4
        $region24: #{tpu_custom_call.1} parent=11 // pred_fallthru
          _
        // Predicated region
        $region25: #{tpu_custom_call.1} parent=11 // pred_check
          %p275 = pneg %p132
        $region26: #{tpu_custom_call.1} parent=11 // pred_check_branch
          %277 = sbr.rel (%p275) target = $region28
        $region27: #{tpu_custom_call.1} parent=11 // pred_region
          _
        $region28: #{tpu_custom_call.1} parent=11 // pred_fallthru
          _
        // Predicated region
        $region29: #{tpu_custom_call.1} parent=11 // pred_check
          %p278 = pneg %p153
        $region30: #{tpu_custom_call.1} parent=11 // pred_check_branch
          %280 = sbr.rel (%p278) target = $region32
        $region31: #{tpu_custom_call.1} parent=11 // pred_region
          _
        $region32: #{tpu_custom_call.1} parent=11 // pred_fallthru
          _
        // Predicated region
        $region33: #{tpu_custom_call.1} parent=11 // pred_check
          %p281 = pneg %p174
        $region34: #{tpu_custom_call.1} parent=11 // pred_check_branch
          %283 = sbr.rel (%p281) target = $region36
        $region35: #{tpu_custom_call.1} parent=11 // pred_region
          _
        $region36: #{tpu_custom_call.1} parent=11 // pred_fallthru
          _
        // Predicated region
        $region37: #{tpu_custom_call.1} parent=11 // pred_check
          %p284 = pneg %p195
        $region38: #{tpu_custom_call.1} parent=11 // pred_check_branch
          %286 = sbr.rel (%p284) target = $region40
        $region39: #{tpu_custom_call.1} parent=11 // pred_region
          _
        $region40: #{tpu_custom_call.1} parent=11 // pred_fallthru
          _
      $region12: #{tpu_custom_call.1} parent=5 // pred_fallthru
        _
      %p287 = scmp.lt.s32.totalorder %s22, 2
      // Predicated region
      $region41: #{tpu_custom_call.1} parent=5 // pred_check
        %p288 = pneg %p287
      $region42: #{tpu_custom_call.1} parent=5 // pred_check_branch
        %290 = sbr.rel (%p288) target = $region44
      $region43: #{tpu_custom_call.1} parent=5 // pred_region
        // Predicated region
        $region45: #{tpu_custom_call.1} parent=43 // pred_check
          %p291 = pneg %p42
        $region46: #{tpu_custom_call.1} parent=43 // pred_check_branch
          %293 = sbr.rel (%p291) target = $region48
        $region47: #{tpu_custom_call.1} parent=43 // pred_region
          %s294 = sand.u32 %s32, 1
          %s295 = scalar_lea.sflag [#allocation5], %s294
          %s296 = sand.u32 %s32, 1
          %s297 = smul.addr %s296, 32
          %s298 = scalar_lea.vmem [#allocation4], %s297
          %s300 = ssub.s32 512, 512
          %301 = vsyncadd %s295, %s300
          %s302 = smul.addr %s22, 8
          %s303 = smul.addr %s302, 64
          %s304 = scalar_lea.hbm %s0, %s303
          %s305 = sshll.u32 %s298, 4
          %s306 = int_to_ptr.vmem [resolvable:$true] %s305
          %311 = dma.hbm_to_vmem [thread:$0]  %s304, 512, %s306, %s295, 64, 64, 4
        $region48: #{tpu_custom_call.1} parent=43 // pred_fallthru
          _
      $region44: #{tpu_custom_call.1} parent=5 // pred_fallthru
        _
      %p312 = scmp.le.s32.totalorder 1, %s22
      %p313 = scmp.lt.s32.totalorder %s22, 3
      %p314 = pnand %p312, %p313
      %p315 = pneg %p314
      // Predicated region
      $region49: #{tpu_custom_call.1} parent=5 // pred_check
        _
      $region50: #{tpu_custom_call.1} parent=5 // pred_check_branch
        %317 = sbr.rel (%p314) target = $region52
      $region51: #{tpu_custom_call.1} parent=5 // pred_region
        %s318 = ssub.s32 %s22, 1
        %s319 = sand.u32 %s35, 1
        %s320 = scalar_lea.sflag [#allocation5], %s319
        %s321 = sand.u32 %s35, 1
        %s322 = smul.addr %s321, 32
        %s323 = scalar_lea.vmem [#allocation4], %s322
        // Predicated region
        $region53: #{tpu_custom_call.1} parent=51 // pred_check
          %p324 = pneg %p48
        $region54: #{tpu_custom_call.1} parent=51 // pred_check_branch
          %326 = sbr.rel (%p324) target = $region56
        $region55: #{tpu_custom_call.1} parent=51 // pred_region
          %327 = dma.done %s320, 512
        $region56: #{tpu_custom_call.1} parent=51 // pred_fallthru
          _
        // Predicated region
        $region57: #{tpu_custom_call.1} parent=51 // pred_check
          %p328 = pneg %p69
        $region58: #{tpu_custom_call.1} parent=51 // pred_check_branch
          %330 = sbr.rel (%p328) target = $region60
        $region59: #{tpu_custom_call.1} parent=51 // pred_region
          %331 = dma.done [#allocation8], 5120
        $region60: #{tpu_custom_call.1} parent=51 // pred_fallthru
          _
        // Predicated region
        $region61: #{tpu_custom_call.1} parent=51 // pred_check
          %p332 = pneg %p90
        $region62: #{tpu_custom_call.1} parent=51 // pred_check_branch
          %334 = sbr.rel (%p332) target = $region64
        $region63: #{tpu_custom_call.1} parent=51 // pred_region
          %335 = dma.done [#allocation8], 15360
        $region64: #{tpu_custom_call.1} parent=51 // pred_fallthru
          _
        // Predicated region
        $region65: #{tpu_custom_call.1} parent=51 // pred_check
          %p336 = pneg %p111
        $region66: #{tpu_custom_call.1} parent=51 // pred_check_branch
          %338 = sbr.rel (%p336) target = $region68
        $region67: #{tpu_custom_call.1} parent=51 // pred_region
          %339 = dma.done [#allocation11], 5120
        $region68: #{tpu_custom_call.1} parent=51 // pred_fallthru
          _
        %s340 = sand.u32 %s35, 1
        %s341 = scalar_lea.sflag [#allocation5], %s340
        %s342 = sand.u32 %s35, 1
        %s343 = smul.addr %s342, 32
        %s344 = scalar_lea.vmem [#allocation4], %s343
        %p345 = pneg %p48
        %p346 = pneg %p45
        %p347 = pneg %p69
        %p348 = pneg %p66
        %p349 = pneg %p90
        %p350 = pneg %p87
        %p351 = pneg %p111
        %p352 = pneg %p108
        %p353 = pneg %p132
        %p354 = pneg %p129
        %p355 = pneg %p153
        %p356 = pneg %p150
        %p357 = pneg %p174
        %p358 = pneg %p171
        %p359 = pneg %p195
        %p360 = pneg %p192
        %p361 = pneg %p221
        %p362 = pneg %p218
        %s363 = sand.u32 %s208, 1
        %s364 = scalar_lea.sflag [#allocation6], %s363
        %s365 = sand.u32 %s208, 1
        %s366 = smul.addr %s365, 32
        %s367 = scalar_lea.vmem [#allocation12], %s366
        %369 = vst [vmem:[#allocation2] sm:$0xff] 0
        %370 = vst [vmem:[#allocation2 + $0x18] sm:$0xff] 0
        %371 = vst [vmem:[#allocation3] sm:$0xff] 0
        %372 = vst [vmem:[#allocation3 + $0x18] sm:$0xff] 0
        %v373 = vlaneseq
        %v374 = vshrl.u32 %v373, 7
        %v375 = vadd.s32 %v374, 8
        %v376 = vadd.s32 %v374, 16
        %v377 = vadd.s32 %v374, 24
        %vm378 = vcmp.lt.s32.totalorder %v374, 20
        %vm379 = vcmp.lt.s32.totalorder %v375, 20
        %vm380 = vcmp.lt.s32.totalorder %v376, 20
        %vm381 = vcmp.lt.s32.totalorder %v377, 20
        %v382 = vld [vmem:[%s323 + $0x4] sm:$0xf]
        %v383 = vld [vmem:[%s323 + $0x8] sm:$0xf]
        %v384 = vld [vmem:[%s323 + $0xc] sm:$0xf]
        %v385 = vld [vmem:[%s323 + $0x10] sm:$0xf]
        %v386 = vld [vmem:[%s323 + $0x14] sm:$0xf]
        %v387 = vld [vmem:[%s323 + $0x18] sm:$0xf]
        %v388 = vld [vmem:[#allocation7] sm:$0xf]
        %v389 = vld [vmem:[#allocation7 + $0x4] sm:$0xf]
        %v390 = vld [vmem:[#allocation7 + $0x8] sm:$0xf]
        %v391 = vld [vmem:[#allocation7 + $0xc] sm:$0xf]
        %v392 = vld [vmem:[#allocation7 + $0x10] sm:$0xf]
        %v393 = vld [vmem:[#allocation7 + $0x14] sm:$0xf]
        %v394 = vld [vmem:[#allocation7 + $0x18] sm:$0xf]
        %v395 = vld [vmem:[#allocation7 + $0x1c] sm:$0xf]
        %v396 = vld [vmem:[#allocation7 + $0x20] sm:$0xf]
        %v397 = vld [vmem:[#allocation7 + $0x24] sm:$0xf]
        %v398 = vld [vmem:[#allocation7 + $0x28] sm:$0xf]
        %v399 = vld [vmem:[#allocation7 + $0x2c] sm:$0xf]
        %v400 = vld [vmem:[#allocation7 + $0x30] sm:$0xf]
        %v401 = vld [vmem:[#allocation7 + $0x34] sm:$0xf]
        %v402 = vld [vmem:[#allocation7 + $0x38] sm:$0xf]
        %v403 = vld [vmem:[#allocation7 + $0x3c] sm:$0xf]
        %s404 = scalar_lea.vmem [#allocation7], 64
        %v405 = vld [vmem:[%s404] sm:$0xf]
        %v406 = vld [vmem:[%s404 + $0x4] sm:$0xf]
        %v407 = vld [vmem:[%s404 + $0x8] sm:$0xf]
        %v408 = vld [vmem:[%s404 + $0xc] sm:$0xf]
        %v409 = vld [vmem:[%s404 + $0x10] sm:$0xf]
        %v410 = vld [vmem:[%s404 + $0x14] sm:$0xf]
        %v411 = vld [vmem:[%s404 + $0x18] sm:$0xf]
        %v412 = vld [vmem:[%s404 + $0x1c] sm:$0xf]
        %v413 = vld [vmem:[%s404 + $0x20] sm:$0xf]
        %v414 = vld [vmem:[%s404 + $0x24] sm:$0xf]
        %v415 = vld [vmem:[%s404 + $0x28] sm:$0xf]
        %v416 = vld [vmem:[%s404 + $0x2c] sm:$0xf]
        %v417 = vld [vmem:[%s404 + $0x30] sm:$0xf]
        %v418 = vld [vmem:[%s404 + $0x34] sm:$0xf]
        %v419 = vld [vmem:[%s404 + $0x38] sm:$0xf]
        %v420 = vld [vmem:[%s404 + $0x3c] sm:$0xf]
        %s421 = scalar_lea.vmem [#allocation7], 128
        %v422 = vld [vmem:[%s421] sm:$0xf]
        %v423 = vld [vmem:[%s421 + $0x4] sm:$0xf]
        %v424 = vld [vmem:[%s421 + $0x8] sm:$0xf]
        %v425 = vld [vmem:[%s421 + $0xc] sm:$0xf]
        %v426 = vld [vmem:[%s421 + $0x10] sm:$0xf]
        %v427 = vld [vmem:[%s421 + $0x14] sm:$0xf]
        %v428 = vld [vmem:[%s421 + $0x18] sm:$0xf]
        %v429 = vld [vmem:[%s421 + $0x1c] sm:$0xf]
        %v430 = vld [vmem:[%s421 + $0x20] sm:$0xf]
        %v431 = vld [vmem:[%s421 + $0x24] sm:$0xf]
        %v432 = vld [vmem:[%s421 + $0x28] sm:$0xf]
        %v433 = vld [vmem:[%s421 + $0x2c] sm:$0xf]
        %v434 = vld [vmem:[%s421 + $0x30] sm:$0xf]
        %v435 = vld [vmem:[%s421 + $0x34] sm:$0xf]
        %v436 = vld [vmem:[%s421 + $0x38] sm:$0xf]
        %v437 = vld [vmem:[%s421 + $0x3c] sm:$0xf]
        %s438 = scalar_lea.vmem [#allocation7], 192
        %v439 = vld [vmem:[%s438] sm:$0xf]
        %v440 = vld [vmem:[%s438 + $0x4] sm:$0xf]
        %v441 = vld [vmem:[%s438 + $0x8] sm:$0xf]
        %v442 = vld [vmem:[%s438 + $0xc] sm:$0xf]
        %v443 = vld [vmem:[%s438 + $0x10] sm:$0xf]
        %v444 = vld [vmem:[%s438 + $0x14] sm:$0xf]
        %v445 = vld [vmem:[%s438 + $0x18] sm:$0xf]
        %v446 = vld [vmem:[%s438 + $0x1c] sm:$0xf]
        %v447 = vld [vmem:[%s438 + $0x20] sm:$0xf]
        %v448 = vld [vmem:[%s438 + $0x24] sm:$0xf]
        %v449 = vld [vmem:[%s438 + $0x28] sm:$0xf]
        %v450 = vld [vmem:[%s438 + $0x2c] sm:$0xf]
        %v451 = vld [vmem:[%s438 + $0x30] sm:$0xf]
        %v452 = vld [vmem:[%s438 + $0x34] sm:$0xf]
        %v453 = vld [vmem:[%s438 + $0x38] sm:$0xf]
        %v454 = vld [vmem:[%s438 + $0x3c] sm:$0xf]
        %s455 = scalar_lea.vmem [#allocation7], 256
        %v456 = vld [vmem:[%s455] sm:$0xf]
        %v457 = vld [vmem:[%s455 + $0x4] sm:$0xf]
        %v458 = vld [vmem:[%s455 + $0x8] sm:$0xf]
        %v459 = vld [vmem:[%s455 + $0xc] sm:$0xf]
        %v460 = vld [vmem:[%s455 + $0x10] sm:$0xf]
        %v461 = vld [vmem:[%s455 + $0x14] sm:$0xf]
        %v462 = vld [vmem:[%s455 + $0x18] sm:$0xf]
        %v463 = vld [vmem:[%s455 + $0x1c] sm:$0xf]
        %v464 = vld [vmem:[%s455 + $0x20] sm:$0xf]
        %v465 = vld [vmem:[%s455 + $0x24] sm:$0xf]
        %v466 = vld [vmem:[%s455 + $0x28] sm:$0xf]
        %v467 = vld [vmem:[%s455 + $0x2c] sm:$0xf]
        %v468 = vld [vmem:[%s455 + $0x30] sm:$0xf]
        %v469 = vld [vmem:[%s455 + $0x34] sm:$0xf]
        %v470 = vld [vmem:[%s455 + $0x38] sm:$0xf]
        %v471 = vld [vmem:[%s455 + $0x3c] sm:$0xf]
        %v472 = vld [vmem:[%s4] sm:$0x1]
        %v473 = vld [vmem:[%s5] sm:$0x1]
        %v479 = vunpack.c.l.b16 %v382
        %v480 = vunpack.c.l.b16 %v383
        %v481 = vunpack.c.l.b16 %v384
        %v482 = vunpack.c.l.b16 %v385
        %v483 = vunpack.c.l.b16 %v386
        %v484 = vpack.c.b16 %v480, %v479
        %v485 = vpack.c.b16 %v482, %v481
        %v486 = vpack.c.b16 %v483, %v483
        %vm487 = vsmask.f32 4352
        %v489 = vshrl.u32 %v484, 16
        %v491 = vrot.slane %v489, 3
        %v492 = vshll.u32 %v484, 16
        %v494 = vrot.slane %v492, 4
        %v495 = vor.u32 %v491, %v494
        %v497 = vshrl.u32 %v485, 16
        %v499 = vrot.slane %v497, 3
        %v500 = vshll.u32 %v485, 16
        %v502 = vrot.slane %v500, 4
        %v503 = vor.u32 %v499, %v502
        %v504 = vsel %vm487, %v495, %v503
        %v506 = vshrl.u32 %v486, 16
        %v508 = vrot.slane %v506, 3
        %v509 = vshll.u32 %v486, 16
        %v511 = vrot.slane %v509, 4
        %v512 = vor.u32 %v508, %v511
        %v513 = vsel %vm487, %v503, %v512
        %v532 = vunpack.c.l.b16 %v405
        %v533 = vunpack.c.l.b16 %v406
        %v534 = vunpack.c.l.b16 %v407
        %v535 = vunpack.c.l.b16 %v408
        %v536 = vunpack.c.l.b16 %v409
        %v537 = vunpack.c.l.b16 %v410
        %v538 = vunpack.c.l.b16 %v411
        %v539 = vunpack.c.l.b16 %v412
        %v540 = vunpack.c.l.b16 %v413
        %v541 = vunpack.c.l.b16 %v414
        %v542 = vunpack.c.l.b16 %v415
        %v543 = vunpack.c.l.b16 %v416
        %v544 = vunpack.c.l.b16 %v417
        %v545 = vunpack.c.l.b16 %v418
        %v546 = vunpack.c.l.b16 %v419
        %v547 = vunpack.c.l.b16 %v420
        %v548 = vpack.c.b16 %v533, %v532
        %v549 = vpack.c.b16 %v535, %v534
        %v550 = vpack.c.b16 %v537, %v536
        %v551 = vpack.c.b16 %v539, %v538
        %v552 = vpack.c.b16 %v541, %v540
        %v553 = vpack.c.b16 %v543, %v542
        %v554 = vpack.c.b16 %v545, %v544
        %v555 = vpack.c.b16 %v547, %v546
        %564 = vmatprep.subr.bf16.mxu0 0
        %565 = vmatpush1.bf16.msra.mxu0 %v548
        %566 = vmatprep.subr.bf16.mxu0 0
        %567 = vmatpush1.bf16.msra.mxu0 %v549
        %568 = vmatprep.subr.bf16.mxu0 0
        %569 = vmatpush1.bf16.msra.mxu0 %v550
        %570 = vmatprep.subr.bf16.mxu0 0
        %571 = vmatpush1.bf16.msra.mxu0 %v551
        %572 = vmatprep.subr.bf16.mxu0 0
        %573 = vmatpush1.bf16.msra.mxu0 %v552
        %574 = vmatprep.subr.bf16.mxu0 0
        %575 = vmatpush1.bf16.msra.mxu0 %v553
        %576 = vmatprep.subr.bf16.mxu0 0
        %577 = vmatpush1.bf16.msra.mxu0 %v554
        %578 = vmatprep.subr.bf16.mxu0 0
        %579 = vmatpush1.bf16.msra.mxu0 %v555
        %580 = vmatprep.subr.bf16.mxu0 0
        %581 = vmatpush1.bf16.msra.mxu0 0
        %582 = vmatprep.subr.bf16.mxu0 0
        %583 = vmatpush1.bf16.msra.mxu0 0
        %584 = vmatprep.subr.bf16.mxu0 0
        %585 = vmatpush1.bf16.msra.mxu0 0
        %586 = vmatprep.subr.bf16.mxu0 0
        %587 = vmatpush1.bf16.msra.mxu0 0
        %588 = vmatprep.subr.bf16.mxu0 0
        %589 = vmatpush1.bf16.msra.mxu0 0
        %590 = vmatprep.subr.bf16.mxu0 0
        %591 = vmatpush1.bf16.msra.mxu0 0
        %592 = vmatprep.subr.bf16.mxu0 0
        %593 = vmatpush1.bf16.msra.mxu0 0
        %594 = vmatprep.subr.bf16.mxu0 0
        %595 = vmatpush1.bf16.msra.mxu0 0
        %596 = vmatprep.mubr.bf16.mxu0 0
        %597 = vmatmul.mubr.bf16.gmra.mrb[0].mxu0 %v504
        %v598 = vpop.f32.mrb[0].mxu0
        %v599 = vadd.f32 0.0, %v598
        %v600 = vpop.f32.mrb[0].mxu0
        %v601 = vpop.f32.mrb[0].mxu0
        %v602 = vadd.f32 0.0, %v601
        %v603 = vpop.f32.mrb[0].mxu0
        %604 = vmatprep.mubr.bf16.mxu0 0
        %605 = vmatmul.mubr.bf16.gmra.mrb[0].mxu0 %v513
        %v606 = vpop.f32.mrb[0].mxu0
        %v607 = vadd.f32 0.0, %v606
        %v608 = vpop.f32.mrb[0].mxu0
        %v609 = vpop.f32.mrb[0].mxu0
        %v610 = vadd.f32 0.0, %v609
        %v611 = vpop.f32.mrb[0].mxu0
        %612 = vdwg.mxu0
        %vm613 = vcmask 1044480
        %v614 = vrot.slane %v484, 3
        %v615 = vrot.slane %v485, 3
        %v616 = vsel %vm613, %v614, %v615
        %v617 = vrot.slane %v486, 3
        %v618 = vsel %vm613, %v615, %v617
        %v637 = vunpack.c.l.b16 %v388
        %v638 = vunpack.c.l.b16 %v389
        %v639 = vunpack.c.l.b16 %v390
        %v640 = vunpack.c.l.b16 %v391
        %v641 = vunpack.c.l.b16 %v392
        %v642 = vunpack.c.l.b16 %v393
        %v643 = vunpack.c.l.b16 %v394
        %v644 = vunpack.c.l.b16 %v395
        %v645 = vunpack.c.l.b16 %v396
        %v646 = vunpack.c.l.b16 %v397
        %v647 = vunpack.c.l.b16 %v398
        %v648 = vunpack.c.l.b16 %v399
        %v649 = vunpack.c.l.b16 %v400
        %v650 = vunpack.c.l.b16 %v401
        %v651 = vunpack.c.l.b16 %v402
        %v652 = vunpack.c.l.b16 %v403
        %v653 = vpack.c.b16 %v638, %v637
        %v654 = vpack.c.b16 %v640, %v639
        %v655 = vpack.c.b16 %v642, %v641
        %v656 = vpack.c.b16 %v644, %v643
        %v657 = vpack.c.b16 %v646, %v645
        %v658 = vpack.c.b16 %v648, %v647
        %v659 = vpack.c.b16 %v650, %v649
        %v660 = vpack.c.b16 %v652, %v651
        %669 = vmatprep.subr.bf16.mxu0 0
        %670 = vmatpush1.bf16.msra.mxu0 %v653
        %671 = vmatprep.subr.bf16.mxu0 0
        %672 = vmatpush1.bf16.msra.mxu0 %v654
        %673 = vmatprep.subr.bf16.mxu0 0
        %674 = vmatpush1.bf16.msra.mxu0 %v655
        %675 = vmatprep.subr.bf16.mxu0 0
        %676 = vmatpush1.bf16.msra.mxu0 %v656
        %677 = vmatprep.subr.bf16.mxu0 0
        %678 = vmatpush1.bf16.msra.mxu0 %v657
        %679 = vmatprep.subr.bf16.mxu0 0
        %680 = vmatpush1.bf16.msra.mxu0 %v658
        %681 = vmatprep.subr.bf16.mxu0 0
        %682 = vmatpush1.bf16.msra.mxu0 %v659
        %683 = vmatprep.subr.bf16.mxu0 0
        %684 = vmatpush1.bf16.msra.mxu0 %v660
        %685 = vmatprep.subr.bf16.mxu0 0
        %686 = vmatpush1.bf16.msra.mxu0 0
        %687 = vmatprep.subr.bf16.mxu0 0
        %688 = vmatpush1.bf16.msra.mxu0 0
        %689 = vmatprep.subr.bf16.mxu0 0
        %690 = vmatpush1.bf16.msra.mxu0 0
        %691 = vmatprep.subr.bf16.mxu0 0
        %692 = vmatpush1.bf16.msra.mxu0 0
        %693 = vmatprep.subr.bf16.mxu0 0
        %694 = vmatpush1.bf16.msra.mxu0 0
        %695 = vmatprep.subr.bf16.mxu0 0
        %696 = vmatpush1.bf16.msra.mxu0 0
        %697 = vmatprep.subr.bf16.mxu0 0
        %698 = vmatpush1.bf16.msra.mxu0 0
        %699 = vmatprep.subr.bf16.mxu0 0
        %700 = vmatpush1.bf16.msra.mxu0 0
        %701 = vmatprep.mubr.bf16.mxu0 0
        %702 = vmatmul.mubr.bf16.gmra.mrb[0].mxu0 %v616
        %v703 = vpop.f32.mrb[0].mxu0
        %v704 = vadd.f32 %v599, %v703
        %v705 = vpop.f32.mrb[0].mxu0
        %v706 = vpop.f32.mrb[0].mxu0
        %v707 = vadd.f32 %v602, %v706
        %v708 = vpop.f32.mrb[0].mxu0
        %709 = vmatprep.mubr.bf16.mxu0 0
        %710 = vmatmul.mubr.bf16.gmra.mrb[0].mxu0 %v618
        %v711 = vpop.f32.mrb[0].mxu0
        %v712 = vadd.f32 %v607, %v711
        %v713 = vpop.f32.mrb[0].mxu0
        %v714 = vpop.f32.mrb[0].mxu0
        %v715 = vadd.f32 %v610, %v714
        %v716 = vpop.f32.mrb[0].mxu0
        %717 = vdwg.mxu0
        %v718 = vpack.c.b16 %v481, %v480
        %v719 = vpack.c.b16 %v483, %v482
        %v738 = vunpack.c.l.b16 %v422
        %v739 = vunpack.c.l.b16 %v423
        %v740 = vunpack.c.l.b16 %v424
        %v741 = vunpack.c.l.b16 %v425
        %v742 = vunpack.c.l.b16 %v426
        %v743 = vunpack.c.l.b16 %v427
        %v744 = vunpack.c.l.b16 %v428
        %v745 = vunpack.c.l.b16 %v429
        %v746 = vunpack.c.l.b16 %v430
        %v747 = vunpack.c.l.b16 %v431
        %v748 = vunpack.c.l.b16 %v432
        %v749 = vunpack.c.l.b16 %v433
        %v750 = vunpack.c.l.b16 %v434
        %v751 = vunpack.c.l.b16 %v435
        %v752 = vunpack.c.l.b16 %v436
        %v753 = vunpack.c.l.b16 %v437
        %v754 = vpack.c.b16 %v739, %v738
        %v755 = vpack.c.b16 %v741, %v740
        %v756 = vpack.c.b16 %v743, %v742
        %v757 = vpack.c.b16 %v745, %v744
        %v758 = vpack.c.b16 %v747, %v746
        %v759 = vpack.c.b16 %v749, %v748
        %v760 = vpack.c.b16 %v751, %v750
        %v761 = vpack.c.b16 %v753, %v752
        %770 = vmatprep.subr.bf16.mxu0 0
        %771 = vmatpush1.bf16.msra.mxu0 %v754
        %772 = vmatprep.subr.bf16.mxu0 0
        %773 = vmatpush1.bf16.msra.mxu0 %v755
        %774 = vmatprep.subr.bf16.mxu0 0
        %775 = vmatpush1.bf16.msra.mxu0 %v756
        %776 = vmatprep.subr.bf16.mxu0 0
        %777 = vmatpush1.bf16.msra.mxu0 %v757
        %778 = vmatprep.subr.bf16.mxu0 0
        %779 = vmatpush1.bf16.msra.mxu0 %v758
        %780 = vmatprep.subr.bf16.mxu0 0
        %781 = vmatpush1.bf16.msra.mxu0 %v759
        %782 = vmatprep.subr.bf16.mxu0 0
        %783 = vmatpush1.bf16.msra.mxu0 %v760
        %784 = vmatprep.subr.bf16.mxu0 0
        %785 = vmatpush1.bf16.msra.mxu0 %v761
        %786 = vmatprep.subr.bf16.mxu0 0
        %787 = vmatpush1.bf16.msra.mxu0 0
        %788 = vmatprep.subr.bf16.mxu0 0
        %789 = vmatpush1.bf16.msra.mxu0 0
        %790 = vmatprep.subr.bf16.mxu0 0
        %791 = vmatpush1.bf16.msra.mxu0 0
        %792 = vmatprep.subr.bf16.mxu0 0
        %793 = vmatpush1.bf16.msra.mxu0 0
        %794 = vmatprep.subr.bf16.mxu0 0
        %795 = vmatpush1.bf16.msra.mxu0 0
        %796 = vmatprep.subr.bf16.mxu0 0
        %797 = vmatpush1.bf16.msra.mxu0 0
        %798 = vmatprep.subr.bf16.mxu0 0
        %799 = vmatpush1.bf16.msra.mxu0 0
        %800 = vmatprep.subr.bf16.mxu0 0
        %801 = vmatpush1.bf16.msra.mxu0 0
        %802 = vmatprep.mubr.bf16.mxu0 0
        %803 = vmatmul.mubr.bf16.gmra.mrb[0].mxu0 %v718
        %v804 = vpop.f32.mrb[0].mxu0
        %v805 = vadd.f32 0.0, %v804
        %v806 = vpop.f32.mrb[0].mxu0
        %v807 = vpop.f32.mrb[0].mxu0
        %v808 = vadd.f32 0.0, %v807
        %v809 = vpop.f32.mrb[0].mxu0
        %810 = vmatprep.mubr.bf16.mxu0 0
        %811 = vmatmul.mubr.bf16.gmra.mrb[0].mxu0 %v719
        %v812 = vpop.f32.mrb[0].mxu0
        %v813 = vadd.f32 0.0, %v812
        %v814 = vpop.f32.mrb[0].mxu0
        %v815 = vpop.f32.mrb[0].mxu0
        %v816 = vadd.f32 0.0, %v815
        %v817 = vpop.f32.mrb[0].mxu0
        %818 = vdwg.mxu0
        %v819 = vadd.f32 %v704, %v805
        %v820 = vadd.f32 %v707, %v808
        %v821 = vadd.f32 %v712, %v813
        %v822 = vadd.f32 %v715, %v816
        %v824 = vunpack.c.l.b16 %v387
        %v825 = vpack.c.b16 %v824, %v824
        %vm826 = vsmask.f32 7424
        %v828 = vshrl.u32 %v718, 16
        %v830 = vshll.u32 %v718, 16
        %v832 = vrot.slane %v830, 1
        %v833 = vor.u32 %v828, %v832
        %v835 = vshll.u32 %v719, 16
        %v837 = vrot.slane %v835, 1
        %v838 = vsel %vm826, %v833, %v837
        %v839 = vshrl.u32 %v719, 16
        %v841 = vor.u32 %v839, %v837
        %v843 = vshll.u32 %v825, 16
        %v845 = vrot.slane %v843, 1
        %v846 = vsel %vm826, %v841, %v845
        %v865 = vunpack.c.l.b16 %v439
        %v866 = vunpack.c.l.b16 %v440
        %v867 = vunpack.c.l.b16 %v441
        %v868 = vunpack.c.l.b16 %v442
        %v869 = vunpack.c.l.b16 %v443
        %v870 = vunpack.c.l.b16 %v444
        %v871 = vunpack.c.l.b16 %v445
        %v872 = vunpack.c.l.b16 %v446
        %v873 = vunpack.c.l.b16 %v447
        %v874 = vunpack.c.l.b16 %v448
        %v875 = vunpack.c.l.b16 %v449
        %v876 = vunpack.c.l.b16 %v450
        %v877 = vunpack.c.l.b16 %v451
        %v878 = vunpack.c.l.b16 %v452
        %v879 = vunpack.c.l.b16 %v453
        %v880 = vunpack.c.l.b16 %v454
        %v881 = vpack.c.b16 %v866, %v865
        %v882 = vpack.c.b16 %v868, %v867
        %v883 = vpack.c.b16 %v870, %v869
        %v884 = vpack.c.b16 %v872, %v871
        %v885 = vpack.c.b16 %v874, %v873
        %v886 = vpack.c.b16 %v876, %v875
        %v887 = vpack.c.b16 %v878, %v877
        %v888 = vpack.c.b16 %v880, %v879
        %897 = vmatprep.subr.bf16.mxu0 0
        %898 = vmatpush1.bf16.msra.mxu0 %v881
        %899 = vmatprep.subr.bf16.mxu0 0
        %900 = vmatpush1.bf16.msra.mxu0 %v882
        %901 = vmatprep.subr.bf16.mxu0 0
        %902 = vmatpush1.bf16.msra.mxu0 %v883
        %903 = vmatprep.subr.bf16.mxu0 0
        %904 = vmatpush1.bf16.msra.mxu0 %v884
        %905 = vmatprep.subr.bf16.mxu0 0
        %906 = vmatpush1.bf16.msra.mxu0 %v885
        %907 = vmatprep.subr.bf16.mxu0 0
        %908 = vmatpush1.bf16.msra.mxu0 %v886
        %909 = vmatprep.subr.bf16.mxu0 0
        %910 = vmatpush1.bf16.msra.mxu0 %v887
        %911 = vmatprep.subr.bf16.mxu0 0
        %912 = vmatpush1.bf16.msra.mxu0 %v888
        %913 = vmatprep.subr.bf16.mxu0 0
        %914 = vmatpush1.bf16.msra.mxu0 0
        %915 = vmatprep.subr.bf16.mxu0 0
        %916 = vmatpush1.bf16.msra.mxu0 0
        %917 = vmatprep.subr.bf16.mxu0 0
        %918 = vmatpush1.bf16.msra.mxu0 0
        %919 = vmatprep.subr.bf16.mxu0 0
        %920 = vmatpush1.bf16.msra.mxu0 0
        %921 = vmatprep.subr.bf16.mxu0 0
        %922 = vmatpush1.bf16.msra.mxu0 0
        %923 = vmatprep.subr.bf16.mxu0 0
        %924 = vmatpush1.bf16.msra.mxu0 0
        %925 = vmatprep.subr.bf16.mxu0 0
        %926 = vmatpush1.bf16.msra.mxu0 0
        %927 = vmatprep.subr.bf16.mxu0 0
        %928 = vmatpush1.bf16.msra.mxu0 0
        %929 = vmatprep.mubr.bf16.mxu0 0
        %930 = vmatmul.mubr.bf16.gmra.mrb[0].mxu0 %v838
        %v931 = vpop.f32.mrb[0].mxu0
        %v932 = vadd.f32 0.0, %v931
        %v933 = vpop.f32.mrb[0].mxu0
        %v934 = vpop.f32.mrb[0].mxu0
        %v935 = vadd.f32 0.0, %v934
        %v936 = vpop.f32.mrb[0].mxu0
        %937 = vmatprep.mubr.bf16.mxu0 0
        %938 = vmatmul.mubr.bf16.gmra.mrb[0].mxu0 %v846
        %v939 = vpop.f32.mrb[0].mxu0
        %v940 = vadd.f32 0.0, %v939
        %v941 = vpop.f32.mrb[0].mxu0
        %v942 = vpop.f32.mrb[0].mxu0
        %v943 = vadd.f32 0.0, %v942
        %v944 = vpop.f32.mrb[0].mxu0
        %945 = vdwg.mxu0
        %v946 = vadd.f32 %v819, %v932
        %v947 = vadd.f32 %v820, %v935
        %v948 = vadd.f32 %v821, %v940
        %v949 = vadd.f32 %v822, %v943
        %vm950 = vcmask 1046528
        %v951 = vrot.slane %v718, 1
        %v952 = vrot.slane %v719, 1
        %v953 = vsel %vm950, %v951, %v952
        %v954 = vrot.slane %v825, 1
        %v955 = vsel %vm950, %v952, %v954
        %v974 = vunpack.c.l.b16 %v456
        %v975 = vunpack.c.l.b16 %v457
        %v976 = vunpack.c.l.b16 %v458
        %v977 = vunpack.c.l.b16 %v459
        %v978 = vunpack.c.l.b16 %v460
        %v979 = vunpack.c.l.b16 %v461
        %v980 = vunpack.c.l.b16 %v462
        %v981 = vunpack.c.l.b16 %v463
        %v982 = vunpack.c.l.b16 %v464
        %v983 = vunpack.c.l.b16 %v465
        %v984 = vunpack.c.l.b16 %v466
        %v985 = vunpack.c.l.b16 %v467
        %v986 = vunpack.c.l.b16 %v468
        %v987 = vunpack.c.l.b16 %v469
        %v988 = vunpack.c.l.b16 %v470
        %v989 = vunpack.c.l.b16 %v471
        %v990 = vpack.c.b16 %v975, %v974
        %v991 = vpack.c.b16 %v977, %v976
        %v992 = vpack.c.b16 %v979, %v978
        %v993 = vpack.c.b16 %v981, %v980
        %v994 = vpack.c.b16 %v983, %v982
        %v995 = vpack.c.b16 %v985, %v984
        %v996 = vpack.c.b16 %v987, %v986
        %v997 = vpack.c.b16 %v989, %v988
        %1006 = vmatprep.subr.bf16.mxu0 0
        %1007 = vmatpush1.bf16.msra.mxu0 %v990
        %1008 = vmatprep.subr.bf16.mxu0 0
        %1009 = vmatpush1.bf16.msra.mxu0 %v991
        %1010 = vmatprep.subr.bf16.mxu0 0
        %1011 = vmatpush1.bf16.msra.mxu0 %v992
        %1012 = vmatprep.subr.bf16.mxu0 0
        %1013 = vmatpush1.bf16.msra.mxu0 %v993
        %1014 = vmatprep.subr.bf16.mxu0 0
        %1015 = vmatpush1.bf16.msra.mxu0 %v994
        %1016 = vmatprep.subr.bf16.mxu0 0
        %1017 = vmatpush1.bf16.msra.mxu0 %v995
        %1018 = vmatprep.subr.bf16.mxu0 0
        %1019 = vmatpush1.bf16.msra.mxu0 %v996
        %1020 = vmatprep.subr.bf16.mxu0 0
        %1021 = vmatpush1.bf16.msra.mxu0 %v997
        %1022 = vmatprep.subr.bf16.mxu0 0
        %1023 = vmatpush1.bf16.msra.mxu0 0
        %1024 = vmatprep.subr.bf16.mxu0 0
        %1025 = vmatpush1.bf16.msra.mxu0 0
        %1026 = vmatprep.subr.bf16.mxu0 0
        %1027 = vmatpush1.bf16.msra.mxu0 0
        %1028 = vmatprep.subr.bf16.mxu0 0
        %1029 = vmatpush1.bf16.msra.mxu0 0
        %1030 = vmatprep.subr.bf16.mxu0 0
        %1031 = vmatpush1.bf16.msra.mxu0 0
        %1032 = vmatprep.subr.bf16.mxu0 0
        %1033 = vmatpush1.bf16.msra.mxu0 0
        %1034 = vmatprep.subr.bf16.mxu0 0
        %1035 = vmatpush1.bf16.msra.mxu0 0
        %1036 = vmatprep.subr.bf16.mxu0 0
        %1037 = vmatpush1.bf16.msra.mxu0 0
        %1038 = vmatprep.mubr.bf16.mxu0 0
        %1039 = vmatmul.mubr.bf16.gmra.mrb[0].mxu0 %v953
        %v1040 = vpop.f32.mrb[0].mxu0
        %v1041 = vadd.f32 0.0, %v1040
        %v1042 = vpop.f32.mrb[0].mxu0
        %v1043 = vpop.f32.mrb[0].mxu0
        %v1044 = vadd.f32 0.0, %v1043
        %v1045 = vpop.f32.mrb[0].mxu0
        %1046 = vmatprep.mubr.bf16.mxu0 0
        %1047 = vmatmul.mubr.bf16.gmra.mrb[0].mxu0 %v955
        %v1048 = vpop.f32.mrb[0].mxu0
        %v1049 = vadd.f32 0.0, %v1048
        %v1050 = vpop.f32.mrb[0].mxu0
        %v1051 = vpop.f32.mrb[0].mxu0
        %v1052 = vadd.f32 0.0, %v1051
        %v1053 = vpop.f32.mrb[0].mxu0
        %1054 = vdwg.mxu0
        %v1055 = vadd.f32 %v946, %v1041
        %v1056 = vadd.f32 %v947, %v1044
        %v1057 = vadd.f32 %v948, %v1049
        %v1058 = vadd.f32 %v949, %v1052
        %v1060 = vlaneseq
        %v1061 = vshrl.u32 %v1060, 7
        %v1062 = vsub.s32 0, %v1061
        %v1063 = vrot.slane %v472, %v1062
        %v1065 = vmul.f32 %v1055, %v1063
        %v1066 = vmul.f32 %v1056, %v1063
        %v1067 = vmul.f32 %v1057, %v1063
        %v1068 = vmul.f32 %v1058, %v1063
        %v1070 = vlaneseq
        %v1071 = vshrl.u32 %v1070, 7
        %v1072 = vsub.s32 0, %v1071
        %v1073 = vrot.slane %v473, %v1072
        %v1075 = vadd.f32 %v1065, %v1073
        %v1076 = vadd.f32 %v1066, %v1073
        %v1077 = vadd.f32 %v1067, %v1073
        %v1078 = vadd.f32 %v1068, %v1073
        %v1079 = vtanh.pop %v1075
        %v1080 = vtanh.pop %v1076
        %v1081 = vtanh.pop %v1077
        %v1082 = vtanh.pop %v1078
        %v1083 = vsel %vm378, 1, 0
        %v1084 = vsel %vm379, 1, 0
        %v1085 = vsel %vm380, 1, 0
        %v1086 = vsel %vm381, 1, 0
        %vm1087 = vcmp.eq.s32.totalorder %v1083, 1
        %vm1088 = vcmp.eq.s32.totalorder %v1084, 1
        %vm1089 = vcmp.eq.s32.totalorder %v1085, 1
        %vm1090 = vcmp.eq.s32.totalorder %v1086, 1
        %v1091 = vsel %vm1087, %v1079, 0.0
        %v1092 = vsel %vm1088, %v1080, 0.0
        %v1093 = vsel %vm1089, %v1081, 0.0
        %v1094 = vsel %vm1090, %v1082, 0.0
        %v1095 = vpack.c.bf16 %v1092, %v1091
        %v1096 = vpack.c.bf16 %v1094, %v1093
        %1097 = vst [vmem:[#allocation2 + $0x8] sm:$0xff] %v1095
        %1098 = vst [vmem:[#allocation2 + $0x10] sm:$0xff] %v1096
        %v1099 = vld [vmem:[#allocation2] sm:$0xff]
        %v1100 = vld [vmem:[#allocation2 + $0x8] sm:$0xff]
        %v1101 = vld [vmem:[#allocation2 + $0x10] sm:$0xff]
        %v1102 = vld [vmem:[#allocation2 + $0x18] sm:$0xff]
        %v1103 = vld [vmem:[#allocation9] sm:$0xf]
        %v1104 = vld [vmem:[#allocation9 + $0x4] sm:$0xf]
        %v1105 = vld [vmem:[#allocation9 + $0x8] sm:$0xf]
        %v1106 = vld [vmem:[#allocation9 + $0xc] sm:$0xf]
        %v1107 = vld [vmem:[#allocation9 + $0x10] sm:$0xf]
        %v1108 = vld [vmem:[#allocation9 + $0x14] sm:$0xf]
        %v1109 = vld [vmem:[#allocation9 + $0x18] sm:$0xf]
        %v1110 = vld [vmem:[#allocation9 + $0x1c] sm:$0xf]
        %v1111 = vld [vmem:[#allocation9 + $0x20] sm:$0xf]
        %v1112 = vld [vmem:[#allocation9 + $0x24] sm:$0xf]
        %v1113 = vld [vmem:[#allocation9 + $0x28] sm:$0xf]
        %v1114 = vld [vmem:[#allocation9 + $0x2c] sm:$0xf]
        %v1115 = vld [vmem:[#allocation9 + $0x30] sm:$0xf]
        %v1116 = vld [vmem:[#allocation9 + $0x34] sm:$0xf]
        %v1117 = vld [vmem:[#allocation9 + $0x38] sm:$0xf]
        %v1118 = vld [vmem:[#allocation9 + $0x3c] sm:$0xf]
        %s1119 = scalar_lea.vmem [#allocation9], 64
        %v1120 = vld [vmem:[%s1119] sm:$0xf]
        %v1121 = vld [vmem:[%s1119 + $0x4] sm:$0xf]
        %v1122 = vld [vmem:[%s1119 + $0x8] sm:$0xf]
        %v1123 = vld [vmem:[%s1119 + $0xc] sm:$0xf]
        %v1124 = vld [vmem:[%s1119 + $0x10] sm:$0xf]
        %v1125 = vld [vmem:[%s1119 + $0x14] sm:$0xf]
        %v1126 = vld [vmem:[%s1119 + $0x18] sm:$0xf]
        %v1127 = vld [vmem:[%s1119 + $0x1c] sm:$0xf]
        %v1128 = vld [vmem:[%s1119 + $0x20] sm:$0xf]
        %v1129 = vld [vmem:[%s1119 + $0x24] sm:$0xf]
        %v1130 = vld [vmem:[%s1119 + $0x28] sm:$0xf]
        %v1131 = vld [vmem:[%s1119 + $0x2c] sm:$0xf]
        %v1132 = vld [vmem:[%s1119 + $0x30] sm:$0xf]
        %v1133 = vld [vmem:[%s1119 + $0x34] sm:$0xf]
        %v1134 = vld [vmem:[%s1119 + $0x38] sm:$0xf]
        %v1135 = vld [vmem:[%s1119 + $0x3c] sm:$0xf]
        %s1136 = scalar_lea.vmem [#allocation9], 128
        %v1137 = vld [vmem:[%s1136] sm:$0xf]
        %v1138 = vld [vmem:[%s1136 + $0x4] sm:$0xf]
        %v1139 = vld [vmem:[%s1136 + $0x8] sm:$0xf]
        %v1140 = vld [vmem:[%s1136 + $0xc] sm:$0xf]
        %v1141 = vld [vmem:[%s1136 + $0x10] sm:$0xf]
        %v1142 = vld [vmem:[%s1136 + $0x14] sm:$0xf]
        %v1143 = vld [vmem:[%s1136 + $0x18] sm:$0xf]
        %v1144 = vld [vmem:[%s1136 + $0x1c] sm:$0xf]
        %v1145 = vld [vmem:[%s1136 + $0x20] sm:$0xf]
        %v1146 = vld [vmem:[%s1136 + $0x24] sm:$0xf]
        %v1147 = vld [vmem:[%s1136 + $0x28] sm:$0xf]
        %v1148 = vld [vmem:[%s1136 + $0x2c] sm:$0xf]
        %v1149 = vld [vmem:[%s1136 + $0x30] sm:$0xf]
        %v1150 = vld [vmem:[%s1136 + $0x34] sm:$0xf]
        %v1151 = vld [vmem:[%s1136 + $0x38] sm:$0xf]
        %v1152 = vld [vmem:[%s1136 + $0x3c] sm:$0xf]
        %s1153 = scalar_lea.vmem [#allocation9], 192
        %v1154 = vld [vmem:[%s1153] sm:$0xf]
        %v1155 = vld [vmem:[%s1153 + $0x4] sm:$0xf]
        %v1156 = vld [vmem:[%s1153 + $0x8] sm:$0xf]
        %v1157 = vld [vmem:[%s1153 + $0xc] sm:$0xf]
        %v1158 = vld [vmem:[%s1153 + $0x10] sm:$0xf]
        %v1159 = vld [vmem:[%s1153 + $0x14] sm:$0xf]
        %v1160 = vld [vmem:[%s1153 + $0x18] sm:$0xf]
        %v1161 = vld [vmem:[%s1153 + $0x1c] sm:$0xf]
        %v1162 = vld [vmem:[%s1153 + $0x20] sm:$0xf]
        %v1163 = vld [vmem:[%s1153 + $0x24] sm:$0xf]
        %v1164 = vld [vmem:[%s1153 + $0x28] sm:$0xf]
        %v1165 = vld [vmem:[%s1153 + $0x2c] sm:$0xf]
        %v1166 = vld [vmem:[%s1153 + $0x30] sm:$0xf]
        %v1167 = vld [vmem:[%s1153 + $0x34] sm:$0xf]
        %v1168 = vld [vmem:[%s1153 + $0x38] sm:$0xf]
        %v1169 = vld [vmem:[%s1153 + $0x3c] sm:$0xf]
        %s1170 = scalar_lea.vmem [#allocation9], 256
        %v1171 = vld [vmem:[%s1170] sm:$0xf]
        %v1172 = vld [vmem:[%s1170 + $0x4] sm:$0xf]
        %v1173 = vld [vmem:[%s1170 + $0x8] sm:$0xf]
        %v1174 = vld [vmem:[%s1170 + $0xc] sm:$0xf]
        %v1175 = vld [vmem:[%s1170 + $0x10] sm:$0xf]
        %v1176 = vld [vmem:[%s1170 + $0x14] sm:$0xf]
        %v1177 = vld [vmem:[%s1170 + $0x18] sm:$0xf]
        %v1178 = vld [vmem:[%s1170 + $0x1c] sm:$0xf]
        %v1179 = vld [vmem:[%s1170 + $0x20] sm:$0xf]
        %v1180 = vld [vmem:[%s1170 + $0x24] sm:$0xf]
        %v1181 = vld [vmem:[%s1170 + $0x28] sm:$0xf]
        %v1182 = vld [vmem:[%s1170 + $0x2c] sm:$0xf]
        %v1183 = vld [vmem:[%s1170 + $0x30] sm:$0xf]
        %v1184 = vld [vmem:[%s1170 + $0x34] sm:$0xf]
        %v1185 = vld [vmem:[%s1170 + $0x38] sm:$0xf]
        %v1186 = vld [vmem:[%s1170 + $0x3c] sm:$0xf]
        %s1187 = scalar_lea.vmem %s4, 1
        %v1188 = vld [vmem:[%s1187] sm:$0x1]
        %s1189 = scalar_lea.vmem %s5, 1
        %v1190 = vld [vmem:[%s1189] sm:$0x1]
        %vm1191 = vsmask.f32 256
        %v1193 = vshrl.u32 %v1099, 16
        %v1195 = vrot.slane %v1193, 7
        %v1197 = vshrl.u32 %v1100, 16
        %v1199 = vrot.slane %v1197, 7
        %v1200 = vshll.u32 %v1100, 16
        %v1202 = vor.u32 %v1199, %v1200
        %v1203 = vsel %vm1191, %v1195, %v1202
        %v1205 = vshrl.u32 %v1101, 16
        %v1207 = vrot.slane %v1205, 7
        %v1208 = vshll.u32 %v1101, 16
        %v1210 = vor.u32 %v1207, %v1208
        %v1211 = vsel %vm1191, %v1199, %v1210
        %v1230 = vunpack.c.l.b16 %v1120
        %v1231 = vunpack.c.l.b16 %v1121
        %v1232 = vunpack.c.l.b16 %v1122
        %v1233 = vunpack.c.l.b16 %v1123
        %v1234 = vunpack.c.l.b16 %v1124
        %v1235 = vunpack.c.l.b16 %v1125
        %v1236 = vunpack.c.l.b16 %v1126
        %v1237 = vunpack.c.l.b16 %v1127
        %v1238 = vunpack.c.l.b16 %v1128
        %v1239 = vunpack.c.l.b16 %v1129
        %v1240 = vunpack.c.l.b16 %v1130
        %v1241 = vunpack.c.l.b16 %v1131
        %v1242 = vunpack.c.l.b16 %v1132
        %v1243 = vunpack.c.l.b16 %v1133
        %v1244 = vunpack.c.l.b16 %v1134
        %v1245 = vunpack.c.l.b16 %v1135
        %v1246 = vpack.c.b16 %v1231, %v1230
        %v1247 = vpack.c.b16 %v1233, %v1232
        %v1248 = vpack.c.b16 %v1235, %v1234
        %v1249 = vpack.c.b16 %v1237, %v1236
        %v1250 = vpack.c.b16 %v1239, %v1238
        %v1251 = vpack.c.b16 %v1241, %v1240
        %v1252 = vpack.c.b16 %v1243, %v1242
        %v1253 = vpack.c.b16 %v1245, %v1244
        %1262 = vmatprep.subr.bf16.mxu0 0
        %1263 = vmatpush1.bf16.msra.mxu0 %v1246
        %1264 = vmatprep.subr.bf16.mxu0 0
        %1265 = vmatpush1.bf16.msra.mxu0 %v1247
        %1266 = vmatprep.subr.bf16.mxu0 0
        %1267 = vmatpush1.bf16.msra.mxu0 %v1248
        %1268 = vmatprep.subr.bf16.mxu0 0
        %1269 = vmatpush1.bf16.msra.mxu0 %v1249
        %1270 = vmatprep.subr.bf16.mxu0 0
        %1271 = vmatpush1.bf16.msra.mxu0 %v1250
        %1272 = vmatprep.subr.bf16.mxu0 0
        %1273 = vmatpush1.bf16.msra.mxu0 %v1251
        %1274 = vmatprep.subr.bf16.mxu0 0
        %1275 = vmatpush1.bf16.msra.mxu0 %v1252
        %1276 = vmatprep.subr.bf16.mxu0 0
        %1277 = vmatpush1.bf16.msra.mxu0 %v1253
        %1278 = vmatprep.subr.bf16.mxu0 0
        %1279 = vmatpush1.bf16.msra.mxu0 0
        %1280 = vmatprep.subr.bf16.mxu0 0
        %1281 = vmatpush1.bf16.msra.mxu0 0
        %1282 = vmatprep.subr.bf16.mxu0 0
        %1283 = vmatpush1.bf16.msra.mxu0 0
        %1284 = vmatprep.subr.bf16.mxu0 0
        %1285 = vmatpush1.bf16.msra.mxu0 0
        %1286 = vmatprep.subr.bf16.mxu0 0
        %1287 = vmatpush1.bf16.msra.mxu0 0
        %1288 = vmatprep.subr.bf16.mxu0 0
        %1289 = vmatpush1.bf16.msra.mxu0 0
        %1290 = vmatprep.subr.bf16.mxu0 0
        %1291 = vmatpush1.bf16.msra.mxu0 0
        %1292 = vmatprep.subr.bf16.mxu0 0
        %1293 = vmatpush1.bf16.msra.mxu0 0
        %1294 = vmatprep.mubr.bf16.mxu0 0
        %1295 = vmatmul.mubr.bf16.gmra.mrb[0].mxu0 %v1203
        %v1296 = vpop.f32.mrb[0].mxu0
        %v1297 = vadd.f32 0.0, %v1296
        %v1298 = vpop.f32.mrb[0].mxu0
        %v1299 = vpop.f32.mrb[0].mxu0
        %v1300 = vadd.f32 0.0, %v1299
        %v1301 = vpop.f32.mrb[0].mxu0
        %1302 = vmatprep.mubr.bf16.mxu0 0
        %1303 = vmatmul.mubr.bf16.gmra.mrb[0].mxu0 %v1211
        %v1304 = vpop.f32.mrb[0].mxu0
        %v1305 = vadd.f32 0.0, %v1304
        %v1306 = vpop.f32.mrb[0].mxu0
        %v1307 = vpop.f32.mrb[0].mxu0
        %v1308 = vadd.f32 0.0, %v1307
        %v1309 = vpop.f32.mrb[0].mxu0
        %1310 = vdwg.mxu0
        %vm1314 = vcmask 1040384
        %v1315 = vrot.slane %v1099, 7
        %v1316 = vrot.slane %v1100, 7
        %v1317 = vsel %vm1314, %v1315, %v1316
        %v1318 = vrot.slane %v1101, 7
        %v1319 = vsel %vm1314, %v1316, %v1318
        %v1338 = vunpack.c.l.b16 %v1103
        %v1339 = vunpack.c.l.b16 %v1104
        %v1340 = vunpack.c.l.b16 %v1105
        %v1341 = vunpack.c.l.b16 %v1106
        %v1342 = vunpack.c.l.b16 %v1107
        %v1343 = vunpack.c.l.b16 %v1108
        %v1344 = vunpack.c.l.b16 %v1109
        %v1345 = vunpack.c.l.b16 %v1110
        %v1346 = vunpack.c.l.b16 %v1111
        %v1347 = vunpack.c.l.b16 %v1112
        %v1348 = vunpack.c.l.b16 %v1113
        %v1349 = vunpack.c.l.b16 %v1114
        %v1350 = vunpack.c.l.b16 %v1115
        %v1351 = vunpack.c.l.b16 %v1116
        %v1352 = vunpack.c.l.b16 %v1117
        %v1353 = vunpack.c.l.b16 %v1118
        %v1354 = vpack.c.b16 %v1339, %v1338
        %v1355 = vpack.c.b16 %v1341, %v1340
        %v1356 = vpack.c.b16 %v1343, %v1342
        %v1357 = vpack.c.b16 %v1345, %v1344
        %v1358 = vpack.c.b16 %v1347, %v1346
        %v1359 = vpack.c.b16 %v1349, %v1348
        %v1360 = vpack.c.b16 %v1351, %v1350
        %v1361 = vpack.c.b16 %v1353, %v1352
        %1370 = vmatprep.subr.bf16.mxu0 0
        %1371 = vmatpush1.bf16.msra.mxu0 %v1354
        %1372 = vmatprep.subr.bf16.mxu0 0
        %1373 = vmatpush1.bf16.msra.mxu0 %v1355
        %1374 = vmatprep.subr.bf16.mxu0 0
        %1375 = vmatpush1.bf16.msra.mxu0 %v1356
        %1376 = vmatprep.subr.bf16.mxu0 0
        %1377 = vmatpush1.bf16.msra.mxu0 %v1357
        %1378 = vmatprep.subr.bf16.mxu0 0
        %1379 = vmatpush1.bf16.msra.mxu0 %v1358
        %1380 = vmatprep.subr.bf16.mxu0 0
        %1381 = vmatpush1.bf16.msra.mxu0 %v1359
        %1382 = vmatprep.subr.bf16.mxu0 0
        %1383 = vmatpush1.bf16.msra.mxu0 %v1360
        %1384 = vmatprep.subr.bf16.mxu0 0
        %1385 = vmatpush1.bf16.msra.mxu0 %v1361
        %1386 = vmatprep.subr.bf16.mxu0 0
        %1387 = vmatpush1.bf16.msra.mxu0 0
        %1388 = vmatprep.subr.bf16.mxu0 0
        %1389 = vmatpush1.bf16.msra.mxu0 0
        %1390 = vmatprep.subr.bf16.mxu0 0
        %1391 = vmatpush1.bf16.msra.mxu0 0
        %1392 = vmatprep.subr.bf16.mxu0 0
        %1393 = vmatpush1.bf16.msra.mxu0 0
        %1394 = vmatprep.subr.bf16.mxu0 0
        %1395 = vmatpush1.bf16.msra.mxu0 0
        %1396 = vmatprep.subr.bf16.mxu0 0
        %1397 = vmatpush1.bf16.msra.mxu0 0
        %1398 = vmatprep.subr.bf16.mxu0 0
        %1399 = vmatpush1.bf16.msra.mxu0 0
        %1400 = vmatprep.subr.bf16.mxu0 0
        %1401 = vmatpush1.bf16.msra.mxu0 0
        %1402 = vmatprep.mubr.bf16.mxu0 0
        %1403 = vmatmul.mubr.bf16.gmra.mrb[0].mxu0 %v1317
        %v1404 = vpop.f32.mrb[0].mxu0
        %v1405 = vadd.f32 %v1297, %v1404
        %v1406 = vpop.f32.mrb[0].mxu0
        %v1407 = vpop.f32.mrb[0].mxu0
        %v1408 = vadd.f32 %v1300, %v1407
        %v1409 = vpop.f32.mrb[0].mxu0
        %1410 = vmatprep.mubr.bf16.mxu0 0
        %1411 = vmatmul.mubr.bf16.gmra.mrb[0].mxu0 %v1319
        %v1412 = vpop.f32.mrb[0].mxu0
        %v1413 = vadd.f32 %v1305, %v1412
        %v1414 = vpop.f32.mrb[0].mxu0
        %v1415 = vpop.f32.mrb[0].mxu0
        %v1416 = vadd.f32 %v1308, %v1415
        %v1417 = vpop.f32.mrb[0].mxu0
        %1418 = vdwg.mxu0
        %v1435 = vunpack.c.l.b16 %v1137
        %v1436 = vunpack.c.l.b16 %v1138
        %v1437 = vunpack.c.l.b16 %v1139
        %v1438 = vunpack.c.l.b16 %v1140
        %v1439 = vunpack.c.l.b16 %v1141
        %v1440 = vunpack.c.l.b16 %v1142
        %v1441 = vunpack.c.l.b16 %v1143
        %v1442 = vunpack.c.l.b16 %v1144
        %v1443 = vunpack.c.l.b16 %v1145
        %v1444 = vunpack.c.l.b16 %v1146
        %v1445 = vunpack.c.l.b16 %v1147
        %v1446 = vunpack.c.l.b16 %v1148
        %v1447 = vunpack.c.l.b16 %v1149
        %v1448 = vunpack.c.l.b16 %v1150
        %v1449 = vunpack.c.l.b16 %v1151
        %v1450 = vunpack.c.l.b16 %v1152
        %v1451 = vpack.c.b16 %v1436, %v1435
        %v1452 = vpack.c.b16 %v1438, %v1437
        %v1453 = vpack.c.b16 %v1440, %v1439
        %v1454 = vpack.c.b16 %v1442, %v1441
        %v1455 = vpack.c.b16 %v1444, %v1443
        %v1456 = vpack.c.b16 %v1446, %v1445
        %v1457 = vpack.c.b16 %v1448, %v1447
        %v1458 = vpack.c.b16 %v1450, %v1449
        %1467 = vmatprep.subr.bf16.mxu0 0
        %1468 = vmatpush1.bf16.msra.mxu0 %v1451
        %1469 = vmatprep.subr.bf16.mxu0 0
        %1470 = vmatpush1.bf16.msra.mxu0 %v1452
        %1471 = vmatprep.subr.bf16.mxu0 0
        %1472 = vmatpush1.bf16.msra.mxu0 %v1453
        %1473 = vmatprep.subr.bf16.mxu0 0
        %1474 = vmatpush1.bf16.msra.mxu0 %v1454
        %1475 = vmatprep.subr.bf16.mxu0 0
        %1476 = vmatpush1.bf16.msra.mxu0 %v1455
        %1477 = vmatprep.subr.bf16.mxu0 0
        %1478 = vmatpush1.bf16.msra.mxu0 %v1456
        %1479 = vmatprep.subr.bf16.mxu0 0
        %1480 = vmatpush1.bf16.msra.mxu0 %v1457
        %1481 = vmatprep.subr.bf16.mxu0 0
        %1482 = vmatpush1.bf16.msra.mxu0 %v1458
        %1483 = vmatprep.subr.bf16.mxu0 0
        %1484 = vmatpush1.bf16.msra.mxu0 0
        %1485 = vmatprep.subr.bf16.mxu0 0
        %1486 = vmatpush1.bf16.msra.mxu0 0
        %1487 = vmatprep.subr.bf16.mxu0 0
        %1488 = vmatpush1.bf16.msra.mxu0 0
        %1489 = vmatprep.subr.bf16.mxu0 0
        %1490 = vmatpush1.bf16.msra.mxu0 0
        %1491 = vmatprep.subr.bf16.mxu0 0
        %1492 = vmatpush1.bf16.msra.mxu0 0
        %1493 = vmatprep.subr.bf16.mxu0 0
        %1494 = vmatpush1.bf16.msra.mxu0 0
        %1495 = vmatprep.subr.bf16.mxu0 0
        %1496 = vmatpush1.bf16.msra.mxu0 0
        %1497 = vmatprep.subr.bf16.mxu0 0
        %1498 = vmatpush1.bf16.msra.mxu0 0
        %1499 = vmatprep.mubr.bf16.mxu0 0
        %1500 = vmatmul.mubr.bf16.gmra.mrb[0].mxu0 %v1100
        %v1501 = vpop.f32.mrb[0].mxu0
        %v1502 = vadd.f32 0.0, %v1501
        %v1503 = vpop.f32.mrb[0].mxu0
        %v1504 = vpop.f32.mrb[0].mxu0
        %v1505 = vadd.f32 0.0, %v1504
        %v1506 = vpop.f32.mrb[0].mxu0
        %1507 = vmatprep.mubr.bf16.mxu0 0
        %1508 = vmatmul.mubr.bf16.gmra.mrb[0].mxu0 %v1101
        %v1509 = vpop.f32.mrb[0].mxu0
        %v1510 = vadd.f32 0.0, %v1509
        %v1511 = vpop.f32.mrb[0].mxu0
        %v1512 = vpop.f32.mrb[0].mxu0
        %v1513 = vadd.f32 0.0, %v1512
        %v1514 = vpop.f32.mrb[0].mxu0
        %1515 = vdwg.mxu0
        %v1516 = vadd.f32 %v1405, %v1502
        %v1517 = vadd.f32 %v1408, %v1505
        %v1518 = vadd.f32 %v1413, %v1510
        %v1519 = vadd.f32 %v1416, %v1513
        %v1520 = vrot.slane %v1200, 1
        %v1521 = vor.u32 %v1197, %v1520
        %v1522 = vrot.slane %v1208, 1
        %v1523 = vsel %vm826, %v1521, %v1522
        %v1524 = vor.u32 %v1205, %v1522
        %v1526 = vshll.u32 %v1102, 16
        %v1528 = vrot.slane %v1526, 1
        %v1529 = vsel %vm826, %v1524, %v1528
        %v1548 = vunpack.c.l.b16 %v1154
        %v1549 = vunpack.c.l.b16 %v1155
        %v1550 = vunpack.c.l.b16 %v1156
        %v1551 = vunpack.c.l.b16 %v1157
        %v1552 = vunpack.c.l.b16 %v1158
        %v1553 = vunpack.c.l.b16 %v1159
        %v1554 = vunpack.c.l.b16 %v1160
        %v1555 = vunpack.c.l.b16 %v1161
        %v1556 = vunpack.c.l.b16 %v1162
        %v1557 = vunpack.c.l.b16 %v1163
        %v1558 = vunpack.c.l.b16 %v1164
        %v1559 = vunpack.c.l.b16 %v1165
        %v1560 = vunpack.c.l.b16 %v1166
        %v1561 = vunpack.c.l.b16 %v1167
        %v1562 = vunpack.c.l.b16 %v1168
        %v1563 = vunpack.c.l.b16 %v1169
        %v1564 = vpack.c.b16 %v1549, %v1548
        %v1565 = vpack.c.b16 %v1551, %v1550
        %v1566 = vpack.c.b16 %v1553, %v1552
        %v1567 = vpack.c.b16 %v1555, %v1554
        %v1568 = vpack.c.b16 %v1557, %v1556
        %v1569 = vpack.c.b16 %v1559, %v1558
        %v1570 = vpack.c.b16 %v1561, %v1560
        %v1571 = vpack.c.b16 %v1563, %v1562
        %1580 = vmatprep.subr.bf16.mxu0 0
        %1581 = vmatpush1.bf16.msra.mxu0 %v1564
        %1582 = vmatprep.subr.bf16.mxu0 0
        %1583 = vmatpush1.bf16.msra.mxu0 %v1565
        %1584 = vmatprep.subr.bf16.mxu0 0
        %1585 = vmatpush1.bf16.msra.mxu0 %v1566
        %1586 = vmatprep.subr.bf16.mxu0 0
        %1587 = vmatpush1.bf16.msra.mxu0 %v1567
        %1588 = vmatprep.subr.bf16.mxu0 0
        %1589 = vmatpush1.bf16.msra.mxu0 %v1568
        %1590 = vmatprep.subr.bf16.mxu0 0
        %1591 = vmatpush1.bf16.msra.mxu0 %v1569
        %1592 = vmatprep.subr.bf16.mxu0 0
        %1593 = vmatpush1.bf16.msra.mxu0 %v1570
        %1594 = vmatprep.subr.bf16.mxu0 0
        %1595 = vmatpush1.bf16.msra.mxu0 %v1571
        %1596 = vmatprep.subr.bf16.mxu0 0
        %1597 = vmatpush1.bf16.msra.mxu0 0
        %1598 = vmatprep.subr.bf16.mxu0 0
        %1599 = vmatpush1.bf16.msra.mxu0 0
        %1600 = vmatprep.subr.bf16.mxu0 0
        %1601 = vmatpush1.bf16.msra.mxu0 0
        %1602 = vmatprep.subr.bf16.mxu0 0
        %1603 = vmatpush1.bf16.msra.mxu0 0
        %1604 = vmatprep.subr.bf16.mxu0 0
        %1605 = vmatpush1.bf16.msra.mxu0 0
        %1606 = vmatprep.subr.bf16.mxu0 0
        %1607 = vmatpush1.bf16.msra.mxu0 0
        %1608 = vmatprep.subr.bf16.mxu0 0
        %1609 = vmatpush1.bf16.msra.mxu0 0
        %1610 = vmatprep.subr.bf16.mxu0 0
        %1611 = vmatpush1.bf16.msra.mxu0 0
        %1612 = vmatprep.mubr.bf16.mxu0 0
        %1613 = vmatmul.mubr.bf16.gmra.mrb[0].mxu0 %v1523
        %v1614 = vpop.f32.mrb[0].mxu0
        %v1615 = vadd.f32 0.0, %v1614
        %v1616 = vpop.f32.mrb[0].mxu0
        %v1617 = vpop.f32.mrb[0].mxu0
        %v1618 = vadd.f32 0.0, %v1617
        %v1619 = vpop.f32.mrb[0].mxu0
        %1620 = vmatprep.mubr.bf16.mxu0 0
        %1621 = vmatmul.mubr.bf16.gmra.mrb[0].mxu0 %v1529
        %v1622 = vpop.f32.mrb[0].mxu0
        %v1623 = vadd.f32 0.0, %v1622
        %v1624 = vpop.f32.mrb[0].mxu0
        %v1625 = vpop.f32.mrb[0].mxu0
        %v1626 = vadd.f32 0.0, %v1625
        %v1627 = vpop.f32.mrb[0].mxu0
        %1628 = vdwg.mxu0
        %v1629 = vadd.f32 %v1516, %v1615
        %v1630 = vadd.f32 %v1517, %v1618
        %v1631 = vadd.f32 %v1518, %v1623
        %v1632 = vadd.f32 %v1519, %v1626
        %v1634 = vrot.slane %v1100, 1
        %v1635 = vrot.slane %v1101, 1
        %v1636 = vsel %vm950, %v1634, %v1635
        %v1637 = vrot.slane %v1102, 1
        %v1638 = vsel %vm950, %v1635, %v1637
        %v1657 = vunpack.c.l.b16 %v1171
        %v1658 = vunpack.c.l.b16 %v1172
        %v1659 = vunpack.c.l.b16 %v1173
        %v1660 = vunpack.c.l.b16 %v1174
        %v1661 = vunpack.c.l.b16 %v1175
        %v1662 = vunpack.c.l.b16 %v1176
        %v1663 = vunpack.c.l.b16 %v1177
        %v1664 = vunpack.c.l.b16 %v1178
        %v1665 = vunpack.c.l.b16 %v1179
        %v1666 = vunpack.c.l.b16 %v1180
        %v1667 = vunpack.c.l.b16 %v1181
        %v1668 = vunpack.c.l.b16 %v1182
        %v1669 = vunpack.c.l.b16 %v1183
        %v1670 = vunpack.c.l.b16 %v1184
        %v1671 = vunpack.c.l.b16 %v1185
        %v1672 = vunpack.c.l.b16 %v1186
        %v1673 = vpack.c.b16 %v1658, %v1657
        %v1674 = vpack.c.b16 %v1660, %v1659
        %v1675 = vpack.c.b16 %v1662, %v1661
        %v1676 = vpack.c.b16 %v1664, %v1663
        %v1677 = vpack.c.b16 %v1666, %v1665
        %v1678 = vpack.c.b16 %v1668, %v1667
        %v1679 = vpack.c.b16 %v1670, %v1669
        %v1680 = vpack.c.b16 %v1672, %v1671
        %1689 = vmatprep.subr.bf16.mxu0 0
        %1690 = vmatpush1.bf16.msra.mxu0 %v1673
        %1691 = vmatprep.subr.bf16.mxu0 0
        %1692 = vmatpush1.bf16.msra.mxu0 %v1674
        %1693 = vmatprep.subr.bf16.mxu0 0
        %1694 = vmatpush1.bf16.msra.mxu0 %v1675
        %1695 = vmatprep.subr.bf16.mxu0 0
        %1696 = vmatpush1.bf16.msra.mxu0 %v1676
        %1697 = vmatprep.subr.bf16.mxu0 0
        %1698 = vmatpush1.bf16.msra.mxu0 %v1677
        %1699 = vmatprep.subr.bf16.mxu0 0
        %1700 = vmatpush1.bf16.msra.mxu0 %v1678
        %1701 = vmatprep.subr.bf16.mxu0 0
        %1702 = vmatpush1.bf16.msra.mxu0 %v1679
        %1703 = vmatprep.subr.bf16.mxu0 0
        %1704 = vmatpush1.bf16.msra.mxu0 %v1680
        %1705 = vmatprep.subr.bf16.mxu0 0
        %1706 = vmatpush1.bf16.msra.mxu0 0
        %1707 = vmatprep.subr.bf16.mxu0 0
        %1708 = vmatpush1.bf16.msra.mxu0 0
        %1709 = vmatprep.subr.bf16.mxu0 0
        %1710 = vmatpush1.bf16.msra.mxu0 0
        %1711 = vmatprep.subr.bf16.mxu0 0
        %1712 = vmatpush1.bf16.msra.mxu0 0
        %1713 = vmatprep.subr.bf16.mxu0 0
        %1714 = vmatpush1.bf16.msra.mxu0 0
        %1715 = vmatprep.subr.bf16.mxu0 0
        %1716 = vmatpush1.bf16.msra.mxu0 0
        %1717 = vmatprep.subr.bf16.mxu0 0
        %1718 = vmatpush1.bf16.msra.mxu0 0
        %1719 = vmatprep.subr.bf16.mxu0 0
        %1720 = vmatpush1.bf16.msra.mxu0 0
        %1721 = vmatprep.mubr.bf16.mxu0 0
        %1722 = vmatmul.mubr.bf16.gmra.mrb[0].mxu0 %v1636
        %v1723 = vpop.f32.mrb[0].mxu0
        %v1724 = vadd.f32 0.0, %v1723
        %v1725 = vpop.f32.mrb[0].mxu0
        %v1726 = vpop.f32.mrb[0].mxu0
        %v1727 = vadd.f32 0.0, %v1726
        %v1728 = vpop.f32.mrb[0].mxu0
        %1729 = vmatprep.mubr.bf16.mxu0 0
        %1730 = vmatmul.mubr.bf16.gmra.mrb[0].mxu0 %v1638
        %v1731 = vpop.f32.mrb[0].mxu0
        %v1732 = vadd.f32 0.0, %v1731
        %v1733 = vpop.f32.mrb[0].mxu0
        %v1734 = vpop.f32.mrb[0].mxu0
        %v1735 = vadd.f32 0.0, %v1734
        %v1736 = vpop.f32.mrb[0].mxu0
        %1737 = vdwg.mxu0
        %v1738 = vadd.f32 %v1629, %v1724
        %v1739 = vadd.f32 %v1630, %v1727
        %v1740 = vadd.f32 %v1631, %v1732
        %v1741 = vadd.f32 %v1632, %v1735
        %v1743 = vlaneseq
        %v1744 = vshrl.u32 %v1743, 7
        %v1745 = vsub.s32 0, %v1744
        %v1746 = vrot.slane %v1188, %v1745
        %v1748 = vmul.f32 %v1738, %v1746
        %v1749 = vmul.f32 %v1739, %v1746
        %v1750 = vmul.f32 %v1740, %v1746
        %v1751 = vmul.f32 %v1741, %v1746
        %v1753 = vlaneseq
        %v1754 = vshrl.u32 %v1753, 7
        %v1755 = vsub.s32 0, %v1754
        %v1756 = vrot.slane %v1190, %v1755
        %v1758 = vadd.f32 %v1748, %v1756
        %v1759 = vadd.f32 %v1749, %v1756
        %v1760 = vadd.f32 %v1750, %v1756
        %v1761 = vadd.f32 %v1751, %v1756
        %v1762 = vtanh.pop %v1758
        %v1763 = vtanh.pop %v1759
        %v1764 = vtanh.pop %v1760
        %v1765 = vtanh.pop %v1761
        %v1766 = vsel %vm1087, %v1762, 0.0
        %v1767 = vsel %vm1088, %v1763, 0.0
        %v1768 = vsel %vm1089, %v1764, 0.0
        %v1769 = vsel %vm1090, %v1765, 0.0
        %v1770 = vpack.c.bf16 %v1767, %v1766
        %v1771 = vpack.c.bf16 %v1769, %v1768
        %1772 = vst [vmem:[#allocation3 + $0x8] sm:$0xff] %v1770
        %1773 = vst [vmem:[#allocation3 + $0x10] sm:$0xff] %v1771
        %v1774 = vld [vmem:[#allocation3] sm:$0xff]
        %v1775 = vld [vmem:[#allocation3 + $0x8] sm:$0xff]
        %v1776 = vld [vmem:[#allocation3 + $0x10] sm:$0xff]
        %v1777 = vld [vmem:[#allocation3 + $0x18] sm:$0xff]
        %s1778 = scalar_lea.vmem [#allocation9], 320
        %v1779 = vld [vmem:[%s1778] sm:$0xf]
        %v1780 = vld [vmem:[%s1778 + $0x4] sm:$0xf]
        %v1781 = vld [vmem:[%s1778 + $0x8] sm:$0xf]
        %v1782 = vld [vmem:[%s1778 + $0xc] sm:$0xf]
        %v1783 = vld [vmem:[%s1778 + $0x10] sm:$0xf]
        %v1784 = vld [vmem:[%s1778 + $0x14] sm:$0xf]
        %v1785 = vld [vmem:[%s1778 + $0x18] sm:$0xf]
        %v1786 = vld [vmem:[%s1778 + $0x1c] sm:$0xf]
        %v1787 = vld [vmem:[%s1778 + $0x20] sm:$0xf]
        %v1788 = vld [vmem:[%s1778 + $0x24] sm:$0xf]
        %v1789 = vld [vmem:[%s1778 + $0x28] sm:$0xf]
        %v1790 = vld [vmem:[%s1778 + $0x2c] sm:$0xf]
        %v1791 = vld [vmem:[%s1778 + $0x30] sm:$0xf]
        %v1792 = vld [vmem:[%s1778 + $0x34] sm:$0xf]
        %v1793 = vld [vmem:[%s1778 + $0x38] sm:$0xf]
        %v1794 = vld [vmem:[%s1778 + $0x3c] sm:$0xf]
        %s1795 = scalar_lea.vmem [#allocation9], 384
        %v1796 = vld [vmem:[%s1795] sm:$0xf]
        %v1797 = vld [vmem:[%s1795 + $0x4] sm:$0xf]
        %v1798 = vld [vmem:[%s1795 + $0x8] sm:$0xf]
        %v1799 = vld [vmem:[%s1795 + $0xc] sm:$0xf]
        %v1800 = vld [vmem:[%s1795 + $0x10] sm:$0xf]
        %v1801 = vld [vmem:[%s1795 + $0x14] sm:$0xf]
        %v1802 = vld [vmem:[%s1795 + $0x18] sm:$0xf]
        %v1803 = vld [vmem:[%s1795 + $0x1c] sm:$0xf]
        %v1804 = vld [vmem:[%s1795 + $0x20] sm:$0xf]
        %v1805 = vld [vmem:[%s1795 + $0x24] sm:$0xf]
        %v1806 = vld [vmem:[%s1795 + $0x28] sm:$0xf]
        %v1807 = vld [vmem:[%s1795 + $0x2c] sm:$0xf]
        %v1808 = vld [vmem:[%s1795 + $0x30] sm:$0xf]
        %v1809 = vld [vmem:[%s1795 + $0x34] sm:$0xf]
        %v1810 = vld [vmem:[%s1795 + $0x38] sm:$0xf]
        %v1811 = vld [vmem:[%s1795 + $0x3c] sm:$0xf]
        %s1812 = scalar_lea.vmem [#allocation9], 448
        %v1813 = vld [vmem:[%s1812] sm:$0xf]
        %v1814 = vld [vmem:[%s1812 + $0x4] sm:$0xf]
        %v1815 = vld [vmem:[%s1812 + $0x8] sm:$0xf]
        %v1816 = vld [vmem:[%s1812 + $0xc] sm:$0xf]
        %v1817 = vld [vmem:[%s1812 + $0x10] sm:$0xf]
        %v1818 = vld [vmem:[%s1812 + $0x14] sm:$0xf]
        %v1819 = vld [vmem:[%s1812 + $0x18] sm:$0xf]
        %v1820 = vld [vmem:[%s1812 + $0x1c] sm:$0xf]
        %v1821 = vld [vmem:[%s1812 + $0x20] sm:$0xf]
        %v1822 = vld [vmem:[%s1812 + $0x24] sm:$0xf]
        %v1823 = vld [vmem:[%s1812 + $0x28] sm:$0xf]
        %v1824 = vld [vmem:[%s1812 + $0x2c] sm:$0xf]
        %v1825 = vld [vmem:[%s1812 + $0x30] sm:$0xf]
        %v1826 = vld [vmem:[%s1812 + $0x34] sm:$0xf]
        %v1827 = vld [vmem:[%s1812 + $0x38] sm:$0xf]
        %v1828 = vld [vmem:[%s1812 + $0x3c] sm:$0xf]
        %s1829 = scalar_lea.vmem [#allocation9], 512
        %v1830 = vld [vmem:[%s1829] sm:$0xf]
        %v1831 = vld [vmem:[%s1829 + $0x4] sm:$0xf]
        %v1832 = vld [vmem:[%s1829 + $0x8] sm:$0xf]
        %v1833 = vld [vmem:[%s1829 + $0xc] sm:$0xf]
        %v1834 = vld [vmem:[%s1829 + $0x10] sm:$0xf]
        %v1835 = vld [vmem:[%s1829 + $0x14] sm:$0xf]
        %v1836 = vld [vmem:[%s1829 + $0x18] sm:$0xf]
        %v1837 = vld [vmem:[%s1829 + $0x1c] sm:$0xf]
        %v1838 = vld [vmem:[%s1829 + $0x20] sm:$0xf]
        %v1839 = vld [vmem:[%s1829 + $0x24] sm:$0xf]
        %v1840 = vld [vmem:[%s1829 + $0x28] sm:$0xf]
        %v1841 = vld [vmem:[%s1829 + $0x2c] sm:$0xf]
        %v1842 = vld [vmem:[%s1829 + $0x30] sm:$0xf]
        %v1843 = vld [vmem:[%s1829 + $0x34] sm:$0xf]
        %v1844 = vld [vmem:[%s1829 + $0x38] sm:$0xf]
        %v1845 = vld [vmem:[%s1829 + $0x3c] sm:$0xf]
        %s1846 = scalar_lea.vmem [#allocation9], 576
        %v1847 = vld [vmem:[%s1846] sm:$0xf]
        %v1848 = vld [vmem:[%s1846 + $0x4] sm:$0xf]
        %v1849 = vld [vmem:[%s1846 + $0x8] sm:$0xf]
        %v1850 = vld [vmem:[%s1846 + $0xc] sm:$0xf]
        %v1851 = vld [vmem:[%s1846 + $0x10] sm:$0xf]
        %v1852 = vld [vmem:[%s1846 + $0x14] sm:$0xf]
        %v1853 = vld [vmem:[%s1846 + $0x18] sm:$0xf]
        %v1854 = vld [vmem:[%s1846 + $0x1c] sm:$0xf]
        %v1855 = vld [vmem:[%s1846 + $0x20] sm:$0xf]
        %v1856 = vld [vmem:[%s1846 + $0x24] sm:$0xf]
        %v1857 = vld [vmem:[%s1846 + $0x28] sm:$0xf]
        %v1858 = vld [vmem:[%s1846 + $0x2c] sm:$0xf]
        %v1859 = vld [vmem:[%s1846 + $0x30] sm:$0xf]
        %v1860 = vld [vmem:[%s1846 + $0x34] sm:$0xf]
        %v1861 = vld [vmem:[%s1846 + $0x38] sm:$0xf]
        %v1862 = vld [vmem:[%s1846 + $0x3c] sm:$0xf]
        %s1863 = scalar_lea.vmem %s4, 2
        %v1864 = vld [vmem:[%s1863] sm:$0x1]
        %s1865 = scalar_lea.vmem %s5, 2
        %v1866 = vld [vmem:[%s1865] sm:$0x1]
        %v1868 = vshrl.u32 %v1774, 16
        %v1870 = vrot.slane %v1868, 7
        %v1872 = vshrl.u32 %v1775, 16
        %v1874 = vrot.slane %v1872, 7
        %v1875 = vshll.u32 %v1775, 16
        %v1877 = vor.u32 %v1874, %v1875
        %v1878 = vsel %vm1191, %v1870, %v1877
        %v1880 = vshrl.u32 %v1776, 16
        %v1882 = vrot.slane %v1880, 7
        %v1883 = vshll.u32 %v1776, 16
        %v1885 = vor.u32 %v1882, %v1883
        %v1886 = vsel %vm1191, %v1874, %v1885
        %v1905 = vunpack.c.l.b16 %v1796
        %v1906 = vunpack.c.l.b16 %v1797
        %v1907 = vunpack.c.l.b16 %v1798
        %v1908 = vunpack.c.l.b16 %v1799
        %v1909 = vunpack.c.l.b16 %v1800
        %v1910 = vunpack.c.l.b16 %v1801
        %v1911 = vunpack.c.l.b16 %v1802
        %v1912 = vunpack.c.l.b16 %v1803
        %v1913 = vunpack.c.l.b16 %v1804
        %v1914 = vunpack.c.l.b16 %v1805
        %v1915 = vunpack.c.l.b16 %v1806
        %v1916 = vunpack.c.l.b16 %v1807
        %v1917 = vunpack.c.l.b16 %v1808
        %v1918 = vunpack.c.l.b16 %v1809
        %v1919 = vunpack.c.l.b16 %v1810
        %v1920 = vunpack.c.l.b16 %v1811
        %v1921 = vpack.c.b16 %v1906, %v1905
        %v1922 = vpack.c.b16 %v1908, %v1907
        %v1923 = vpack.c.b16 %v1910, %v1909
        %v1924 = vpack.c.b16 %v1912, %v1911
        %v1925 = vpack.c.b16 %v1914, %v1913
        %v1926 = vpack.c.b16 %v1916, %v1915
        %v1927 = vpack.c.b16 %v1918, %v1917
        %v1928 = vpack.c.b16 %v1920, %v1919
        %1937 = vmatprep.subr.bf16.mxu0 0
        %1938 = vmatpush1.bf16.msra.mxu0 %v1921
        %1939 = vmatprep.subr.bf16.mxu0 0
        %1940 = vmatpush1.bf16.msra.mxu0 %v1922
        %1941 = vmatprep.subr.bf16.mxu0 0
        %1942 = vmatpush1.bf16.msra.mxu0 %v1923
        %1943 = vmatprep.subr.bf16.mxu0 0
        %1944 = vmatpush1.bf16.msra.mxu0 %v1924
        %1945 = vmatprep.subr.bf16.mxu0 0
        %1946 = vmatpush1.bf16.msra.mxu0 %v1925
        %1947 = vmatprep.subr.bf16.mxu0 0
        %1948 = vmatpush1.bf16.msra.mxu0 %v1926
        %1949 = vmatprep.subr.bf16.mxu0 0
        %1950 = vmatpush1.bf16.msra.mxu0 %v1927
        %1951 = vmatprep.subr.bf16.mxu0 0
        %1952 = vmatpush1.bf16.msra.mxu0 %v1928
        %1953 = vmatprep.subr.bf16.mxu0 0
        %1954 = vmatpush1.bf16.msra.mxu0 0
        %1955 = vmatprep.subr.bf16.mxu0 0
        %1956 = vmatpush1.bf16.msra.mxu0 0
        %1957 = vmatprep.subr.bf16.mxu0 0
        %1958 = vmatpush1.bf16.msra.mxu0 0
        %1959 = vmatprep.subr.bf16.mxu0 0
        %1960 = vmatpush1.bf16.msra.mxu0 0
        %1961 = vmatprep.subr.bf16.mxu0 0
        %1962 = vmatpush1.bf16.msra.mxu0 0
        %1963 = vmatprep.subr.bf16.mxu0 0
        %1964 = vmatpush1.bf16.msra.mxu0 0
        %1965 = vmatprep.subr.bf16.mxu0 0
        %1966 = vmatpush1.bf16.msra.mxu0 0
        %1967 = vmatprep.subr.bf16.mxu0 0
        %1968 = vmatpush1.bf16.msra.mxu0 0
        %1969 = vmatprep.mubr.bf16.mxu0 0
        %1970 = vmatmul.mubr.bf16.gmra.mrb[0].mxu0 %v1878
        %v1971 = vpop.f32.mrb[0].mxu0
        %v1972 = vadd.f32 0.0, %v1971
        %v1973 = vpop.f32.mrb[0].mxu0
        %v1974 = vpop.f32.mrb[0].mxu0
        %v1975 = vadd.f32 0.0, %v1974
        %v1976 = vpop.f32.mrb[0].mxu0
        %1977 = vmatprep.mubr.bf16.mxu0 0
        %1978 = vmatmul.mubr.bf16.gmra.mrb[0].mxu0 %v1886
        %v1979 = vpop.f32.mrb[0].mxu0
        %v1980 = vadd.f32 0.0, %v1979
        %v1981 = vpop.f32.mrb[0].mxu0
        %v1982 = vpop.f32.mrb[0].mxu0
        %v1983 = vadd.f32 0.0, %v1982
        %v1984 = vpop.f32.mrb[0].mxu0
        %1985 = vdwg.mxu0
        %v1989 = vrot.slane %v1774, 7
        %v1990 = vrot.slane %v1775, 7
        %v1991 = vsel %vm1314, %v1989, %v1990
        %v1992 = vrot.slane %v1776, 7
        %v1993 = vsel %vm1314, %v1990, %v1992
        %v2012 = vunpack.c.l.b16 %v1779
        %v2013 = vunpack.c.l.b16 %v1780
        %v2014 = vunpack.c.l.b16 %v1781
        %v2015 = vunpack.c.l.b16 %v1782
        %v2016 = vunpack.c.l.b16 %v1783
        %v2017 = vunpack.c.l.b16 %v1784
        %v2018 = vunpack.c.l.b16 %v1785
        %v2019 = vunpack.c.l.b16 %v1786
        %v2020 = vunpack.c.l.b16 %v1787
        %v2021 = vunpack.c.l.b16 %v1788
        %v2022 = vunpack.c.l.b16 %v1789
        %v2023 = vunpack.c.l.b16 %v1790
        %v2024 = vunpack.c.l.b16 %v1791
        %v2025 = vunpack.c.l.b16 %v1792
        %v2026 = vunpack.c.l.b16 %v1793
        %v2027 = vunpack.c.l.b16 %v1794
        %v2028 = vpack.c.b16 %v2013, %v2012
        %v2029 = vpack.c.b16 %v2015, %v2014
        %v2030 = vpack.c.b16 %v2017, %v2016
        %v2031 = vpack.c.b16 %v2019, %v2018
        %v2032 = vpack.c.b16 %v2021, %v2020
        %v2033 = vpack.c.b16 %v2023, %v2022
        %v2034 = vpack.c.b16 %v2025, %v2024
        %v2035 = vpack.c.b16 %v2027, %v2026
        %2044 = vmatprep.subr.bf16.mxu0 0
        %2045 = vmatpush1.bf16.msra.mxu0 %v2028
        %2046 = vmatprep.subr.bf16.mxu0 0
        %2047 = vmatpush1.bf16.msra.mxu0 %v2029
        %2048 = vmatprep.subr.bf16.mxu0 0
        %2049 = vmatpush1.bf16.msra.mxu0 %v2030
        %2050 = vmatprep.subr.bf16.mxu0 0
        %2051 = vmatpush1.bf16.msra.mxu0 %v2031
        %2052 = vmatprep.subr.bf16.mxu0 0
        %2053 = vmatpush1.bf16.msra.mxu0 %v2032
        %2054 = vmatprep.subr.bf16.mxu0 0
        %2055 = vmatpush1.bf16.msra.mxu0 %v2033
        %2056 = vmatprep.subr.bf16.mxu0 0
        %2057 = vmatpush1.bf16.msra.mxu0 %v2034
        %2058 = vmatprep.subr.bf16.mxu0 0
        %2059 = vmatpush1.bf16.msra.mxu0 %v2035
        %2060 = vmatprep.subr.bf16.mxu0 0
        %2061 = vmatpush1.bf16.msra.mxu0 0
        %2062 = vmatprep.subr.bf16.mxu0 0
        %2063 = vmatpush1.bf16.msra.mxu0 0
        %2064 = vmatprep.subr.bf16.mxu0 0
        %2065 = vmatpush1.bf16.msra.mxu0 0
        %2066 = vmatprep.subr.bf16.mxu0 0
        %2067 = vmatpush1.bf16.msra.mxu0 0
        %2068 = vmatprep.subr.bf16.mxu0 0
        %2069 = vmatpush1.bf16.msra.mxu0 0
        %2070 = vmatprep.subr.bf16.mxu0 0
        %2071 = vmatpush1.bf16.msra.mxu0 0
        %2072 = vmatprep.subr.bf16.mxu0 0
        %2073 = vmatpush1.bf16.msra.mxu0 0
        %2074 = vmatprep.subr.bf16.mxu0 0
        %2075 = vmatpush1.bf16.msra.mxu0 0
        %2076 = vmatprep.mubr.bf16.mxu0 0
        %2077 = vmatmul.mubr.bf16.gmra.mrb[0].mxu0 %v1991
        %v2078 = vpop.f32.mrb[0].mxu0
        %v2079 = vadd.f32 %v1972, %v2078
        %v2080 = vpop.f32.mrb[0].mxu0
        %v2081 = vpop.f32.mrb[0].mxu0
        %v2082 = vadd.f32 %v1975, %v2081
        %v2083 = vpop.f32.mrb[0].mxu0
        %2084 = vmatprep.mubr.bf16.mxu0 0
        %2085 = vmatmul.mubr.bf16.gmra.mrb[0].mxu0 %v1993
        %v2086 = vpop.f32.mrb[0].mxu0
        %v2087 = vadd.f32 %v1980, %v2086
        %v2088 = vpop.f32.mrb[0].mxu0
        %v2089 = vpop.f32.mrb[0].mxu0
        %v2090 = vadd.f32 %v1983, %v2089
        %v2091 = vpop.f32.mrb[0].mxu0
        %2092 = vdwg.mxu0
        %v2109 = vunpack.c.l.b16 %v1813
        %v2110 = vunpack.c.l.b16 %v1814
        %v2111 = vunpack.c.l.b16 %v1815
        %v2112 = vunpack.c.l.b16 %v1816
        %v2113 = vunpack.c.l.b16 %v1817
        %v2114 = vunpack.c.l.b16 %v1818
        %v2115 = vunpack.c.l.b16 %v1819
        %v2116 = vunpack.c.l.b16 %v1820
        %v2117 = vunpack.c.l.b16 %v1821
        %v2118 = vunpack.c.l.b16 %v1822
        %v2119 = vunpack.c.l.b16 %v1823
        %v2120 = vunpack.c.l.b16 %v1824
        %v2121 = vunpack.c.l.b16 %v1825
        %v2122 = vunpack.c.l.b16 %v1826
        %v2123 = vunpack.c.l.b16 %v1827
        %v2124 = vunpack.c.l.b16 %v1828
        %v2125 = vpack.c.b16 %v2110, %v2109
        %v2126 = vpack.c.b16 %v2112, %v2111
        %v2127 = vpack.c.b16 %v2114, %v2113
        %v2128 = vpack.c.b16 %v2116, %v2115
        %v2129 = vpack.c.b16 %v2118, %v2117
        %v2130 = vpack.c.b16 %v2120, %v2119
        %v2131 = vpack.c.b16 %v2122, %v2121
        %v2132 = vpack.c.b16 %v2124, %v2123
        %2141 = vmatprep.subr.bf16.mxu0 0
        %2142 = vmatpush1.bf16.msra.mxu0 %v2125
        %2143 = vmatprep.subr.bf16.mxu0 0
        %2144 = vmatpush1.bf16.msra.mxu0 %v2126
        %2145 = vmatprep.subr.bf16.mxu0 0
        %2146 = vmatpush1.bf16.msra.mxu0 %v2127
        %2147 = vmatprep.subr.bf16.mxu0 0
        %2148 = vmatpush1.bf16.msra.mxu0 %v2128
        %2149 = vmatprep.subr.bf16.mxu0 0
        %2150 = vmatpush1.bf16.msra.mxu0 %v2129
        %2151 = vmatprep.subr.bf16.mxu0 0
        %2152 = vmatpush1.bf16.msra.mxu0 %v2130
        %2153 = vmatprep.subr.bf16.mxu0 0
        %2154 = vmatpush1.bf16.msra.mxu0 %v2131
        %2155 = vmatprep.subr.bf16.mxu0 0
        %2156 = vmatpush1.bf16.msra.mxu0 %v2132
        %2157 = vmatprep.subr.bf16.mxu0 0
        %2158 = vmatpush1.bf16.msra.mxu0 0
        %2159 = vmatprep.subr.bf16.mxu0 0
        %2160 = vmatpush1.bf16.msra.mxu0 0
        %2161 = vmatprep.subr.bf16.mxu0 0
        %2162 = vmatpush1.bf16.msra.mxu0 0
        %2163 = vmatprep.subr.bf16.mxu0 0
        %2164 = vmatpush1.bf16.msra.mxu0 0
        %2165 = vmatprep.subr.bf16.mxu0 0
        %2166 = vmatpush1.bf16.msra.mxu0 0
        %2167 = vmatprep.subr.bf16.mxu0 0
        %2168 = vmatpush1.bf16.msra.mxu0 0
        %2169 = vmatprep.subr.bf16.mxu0 0
        %2170 = vmatpush1.bf16.msra.mxu0 0
        %2171 = vmatprep.subr.bf16.mxu0 0
        %2172 = vmatpush1.bf16.msra.mxu0 0
        %2173 = vmatprep.mubr.bf16.mxu0 0
        %2174 = vmatmul.mubr.bf16.gmra.mrb[0].mxu0 %v1775
        %v2175 = vpop.f32.mrb[0].mxu0
        %v2176 = vadd.f32 0.0, %v2175
        %v2177 = vpop.f32.mrb[0].mxu0
        %v2178 = vpop.f32.mrb[0].mxu0
        %v2179 = vadd.f32 0.0, %v2178
        %v2180 = vpop.f32.mrb[0].mxu0
        %2181 = vmatprep.mubr.bf16.mxu0 0
        %2182 = vmatmul.mubr.bf16.gmra.mrb[0].mxu0 %v1776
        %v2183 = vpop.f32.mrb[0].mxu0
        %v2184 = vadd.f32 0.0, %v2183
        %v2185 = vpop.f32.mrb[0].mxu0
        %v2186 = vpop.f32.mrb[0].mxu0
        %v2187 = vadd.f32 0.0, %v2186
        %v2188 = vpop.f32.mrb[0].mxu0
        %2189 = vdwg.mxu0
        %v2190 = vadd.f32 %v2079, %v2176
        %v2191 = vadd.f32 %v2082, %v2179
        %v2192 = vadd.f32 %v2087, %v2184
        %v2193 = vadd.f32 %v2090, %v2187
        %v2194 = vrot.slane %v1875, 1
        %v2195 = vor.u32 %v1872, %v2194
        %v2196 = vrot.slane %v1883, 1
        %v2197 = vsel %vm826, %v2195, %v2196
        %v2198 = vor.u32 %v1880, %v2196
        %v2200 = vshll.u32 %v1777, 16
        %v2202 = vrot.slane %v2200, 1
        %v2203 = vsel %vm826, %v2198, %v2202
        %v2222 = vunpack.c.l.b16 %v1830
        %v2223 = vunpack.c.l.b16 %v1831
        %v2224 = vunpack.c.l.b16 %v1832
        %v2225 = vunpack.c.l.b16 %v1833
        %v2226 = vunpack.c.l.b16 %v1834
        %v2227 = vunpack.c.l.b16 %v1835
        %v2228 = vunpack.c.l.b16 %v1836
        %v2229 = vunpack.c.l.b16 %v1837
        %v2230 = vunpack.c.l.b16 %v1838
        %v2231 = vunpack.c.l.b16 %v1839
        %v2232 = vunpack.c.l.b16 %v1840
        %v2233 = vunpack.c.l.b16 %v1841
        %v2234 = vunpack.c.l.b16 %v1842
        %v2235 = vunpack.c.l.b16 %v1843
        %v2236 = vunpack.c.l.b16 %v1844
        %v2237 = vunpack.c.l.b16 %v1845
        %v2238 = vpack.c.b16 %v2223, %v2222
        %v2239 = vpack.c.b16 %v2225, %v2224
        %v2240 = vpack.c.b16 %v2227, %v2226
        %v2241 = vpack.c.b16 %v2229, %v2228
        %v2242 = vpack.c.b16 %v2231, %v2230
        %v2243 = vpack.c.b16 %v2233, %v2232
        %v2244 = vpack.c.b16 %v2235, %v2234
        %v2245 = vpack.c.b16 %v2237, %v2236
        %2254 = vmatprep.subr.bf16.mxu0 0
        %2255 = vmatpush1.bf16.msra.mxu0 %v2238
        %2256 = vmatprep.subr.bf16.mxu0 0
        %2257 = vmatpush1.bf16.msra.mxu0 %v2239
        %2258 = vmatprep.subr.bf16.mxu0 0
        %2259 = vmatpush1.bf16.msra.mxu0 %v2240
        %2260 = vmatprep.subr.bf16.mxu0 0
        %2261 = vmatpush1.bf16.msra.mxu0 %v2241
        %2262 = vmatprep.subr.bf16.mxu0 0
        %2263 = vmatpush1.bf16.msra.mxu0 %v2242
        %2264 = vmatprep.subr.bf16.mxu0 0
        %2265 = vmatpush1.bf16.msra.mxu0 %v2243
        %2266 = vmatprep.subr.bf16.mxu0 0
        %2267 = vmatpush1.bf16.msra.mxu0 %v2244
        %2268 = vmatprep.subr.bf16.mxu0 0
        %2269 = vmatpush1.bf16.msra.mxu0 %v2245
        %2270 = vmatprep.subr.bf16.mxu0 0
        %2271 = vmatpush1.bf16.msra.mxu0 0
        %2272 = vmatprep.subr.bf16.mxu0 0
        %2273 = vmatpush1.bf16.msra.mxu0 0
        %2274 = vmatprep.subr.bf16.mxu0 0
        %2275 = vmatpush1.bf16.msra.mxu0 0
        %2276 = vmatprep.subr.bf16.mxu0 0
        %2277 = vmatpush1.bf16.msra.mxu0 0
        %2278 = vmatprep.subr.bf16.mxu0 0
        %2279 = vmatpush1.bf16.msra.mxu0 0
        %2280 = vmatprep.subr.bf16.mxu0 0
        %2281 = vmatpush1.bf16.msra.mxu0 0
        %2282 = vmatprep.subr.bf16.mxu0 0
        %2283 = vmatpush1.bf16.msra.mxu0 0
        %2284 = vmatprep.subr.bf16.mxu0 0
        %2285 = vmatpush1.bf16.msra.mxu0 0
        %2286 = vmatprep.mubr.bf16.mxu0 0
        %2287 = vmatmul.mubr.bf16.gmra.mrb[0].mxu0 %v2197
        %v2288 = vpop.f32.mrb[0].mxu0
        %v2289 = vadd.f32 0.0, %v2288
        %v2290 = vpop.f32.mrb[0].mxu0
        %v2291 = vpop.f32.mrb[0].mxu0
        %v2292 = vadd.f32 0.0, %v2291
        %v2293 = vpop.f32.mrb[0].mxu0
        %2294 = vmatprep.mubr.bf16.mxu0 0
        %2295 = vmatmul.mubr.bf16.gmra.mrb[0].mxu0 %v2203
        %v2296 = vpop.f32.mrb[0].mxu0
        %v2297 = vadd.f32 0.0, %v2296
        %v2298 = vpop.f32.mrb[0].mxu0
        %v2299 = vpop.f32.mrb[0].mxu0
        %v2300 = vadd.f32 0.0, %v2299
        %v2301 = vpop.f32.mrb[0].mxu0
        %2302 = vdwg.mxu0
        %v2303 = vadd.f32 %v2190, %v2289
        %v2304 = vadd.f32 %v2191, %v2292
        %v2305 = vadd.f32 %v2192, %v2297
        %v2306 = vadd.f32 %v2193, %v2300
        %v2308 = vrot.slane %v1775, 1
        %v2309 = vrot.slane %v1776, 1
        %v2310 = vsel %vm950, %v2308, %v2309
        %v2311 = vrot.slane %v1777, 1
        %v2312 = vsel %vm950, %v2309, %v2311
        %v2331 = vunpack.c.l.b16 %v1847
        %v2332 = vunpack.c.l.b16 %v1848
        %v2333 = vunpack.c.l.b16 %v1849
        %v2334 = vunpack.c.l.b16 %v1850
        %v2335 = vunpack.c.l.b16 %v1851
        %v2336 = vunpack.c.l.b16 %v1852
        %v2337 = vunpack.c.l.b16 %v1853
        %v2338 = vunpack.c.l.b16 %v1854
        %v2339 = vunpack.c.l.b16 %v1855
        %v2340 = vunpack.c.l.b16 %v1856
        %v2341 = vunpack.c.l.b16 %v1857
        %v2342 = vunpack.c.l.b16 %v1858
        %v2343 = vunpack.c.l.b16 %v1859
        %v2344 = vunpack.c.l.b16 %v1860
        %v2345 = vunpack.c.l.b16 %v1861
        %v2346 = vunpack.c.l.b16 %v1862
        %v2347 = vpack.c.b16 %v2332, %v2331
        %v2348 = vpack.c.b16 %v2334, %v2333
        %v2349 = vpack.c.b16 %v2336, %v2335
        %v2350 = vpack.c.b16 %v2338, %v2337
        %v2351 = vpack.c.b16 %v2340, %v2339
        %v2352 = vpack.c.b16 %v2342, %v2341
        %v2353 = vpack.c.b16 %v2344, %v2343
        %v2354 = vpack.c.b16 %v2346, %v2345
        %2363 = vmatprep.subr.bf16.mxu0 0
        %2364 = vmatpush1.bf16.msra.mxu0 %v2347
        %2365 = vmatprep.subr.bf16.mxu0 0
        %2366 = vmatpush1.bf16.msra.mxu0 %v2348
        %2367 = vmatprep.subr.bf16.mxu0 0
        %2368 = vmatpush1.bf16.msra.mxu0 %v2349
        %2369 = vmatprep.subr.bf16.mxu0 0
        %2370 = vmatpush1.bf16.msra.mxu0 %v2350
        %2371 = vmatprep.subr.bf16.mxu0 0
        %2372 = vmatpush1.bf16.msra.mxu0 %v2351
        %2373 = vmatprep.subr.bf16.mxu0 0
        %2374 = vmatpush1.bf16.msra.mxu0 %v2352
        %2375 = vmatprep.subr.bf16.mxu0 0
        %2376 = vmatpush1.bf16.msra.mxu0 %v2353
        %2377 = vmatprep.subr.bf16.mxu0 0
        %2378 = vmatpush1.bf16.msra.mxu0 %v2354
        %2379 = vmatprep.subr.bf16.mxu0 0
        %2380 = vmatpush1.bf16.msra.mxu0 0
        %2381 = vmatprep.subr.bf16.mxu0 0
        %2382 = vmatpush1.bf16.msra.mxu0 0
        %2383 = vmatprep.subr.bf16.mxu0 0
        %2384 = vmatpush1.bf16.msra.mxu0 0
        %2385 = vmatprep.subr.bf16.mxu0 0
        %2386 = vmatpush1.bf16.msra.mxu0 0
        %2387 = vmatprep.subr.bf16.mxu0 0
        %2388 = vmatpush1.bf16.msra.mxu0 0
        %2389 = vmatprep.subr.bf16.mxu0 0
        %2390 = vmatpush1.bf16.msra.mxu0 0
        %2391 = vmatprep.subr.bf16.mxu0 0
        %2392 = vmatpush1.bf16.msra.mxu0 0
        %2393 = vmatprep.subr.bf16.mxu0 0
        %2394 = vmatpush1.bf16.msra.mxu0 0
        %2395 = vmatprep.mubr.bf16.mxu0 0
        %2396 = vmatmul.mubr.bf16.gmra.mrb[0].mxu0 %v2310
        %v2397 = vpop.f32.mrb[0].mxu0
        %v2398 = vadd.f32 0.0, %v2397
        %v2399 = vpop.f32.mrb[0].mxu0
        %v2400 = vpop.f32.mrb[0].mxu0
        %v2401 = vadd.f32 0.0, %v2400
        %v2402 = vpop.f32.mrb[0].mxu0
        %2403 = vmatprep.mubr.bf16.mxu0 0
        %2404 = vmatmul.mubr.bf16.gmra.mrb[0].mxu0 %v2312
        %v2405 = vpop.f32.mrb[0].mxu0
        %v2406 = vadd.f32 0.0, %v2405
        %v2407 = vpop.f32.mrb[0].mxu0
        %v2408 = vpop.f32.mrb[0].mxu0
        %v2409 = vadd.f32 0.0, %v2408
        %v2410 = vpop.f32.mrb[0].mxu0
        %2411 = vdwg.mxu0
        %v2412 = vadd.f32 %v2303, %v2398
        %v2413 = vadd.f32 %v2304, %v2401
        %v2414 = vadd.f32 %v2305, %v2406
        %v2415 = vadd.f32 %v2306, %v2409
        %v2417 = vlaneseq
        %v2418 = vshrl.u32 %v2417, 7
        %v2419 = vsub.s32 0, %v2418
        %v2420 = vrot.slane %v1864, %v2419
        %v2422 = vmul.f32 %v2412, %v2420
        %v2423 = vmul.f32 %v2413, %v2420
        %v2424 = vmul.f32 %v2414, %v2420
        %v2425 = vmul.f32 %v2415, %v2420
        %v2427 = vlaneseq
        %v2428 = vshrl.u32 %v2427, 7
        %v2429 = vsub.s32 0, %v2428
        %v2430 = vrot.slane %v1866, %v2429
        %v2432 = vadd.f32 %v2422, %v2430
        %v2433 = vadd.f32 %v2423, %v2430
        %v2434 = vadd.f32 %v2424, %v2430
        %v2435 = vadd.f32 %v2425, %v2430
        %v2436 = vtanh.pop %v2432
        %v2437 = vtanh.pop %v2433
        %v2438 = vtanh.pop %v2434
        %v2439 = vtanh.pop %v2435
        %v2440 = vsel %vm1087, %v2436, 0.0
        %v2441 = vsel %vm1088, %v2437, 0.0
        %v2442 = vsel %vm1089, %v2438, 0.0
        %v2443 = vsel %vm1090, %v2439, 0.0
        %v2444 = vpack.c.bf16 %v2441, %v2440
        %v2445 = vpack.c.bf16 %v2443, %v2442
        %2446 = vst [vmem:[#allocation2 + $0x8] sm:$0xff] %v2444
        %2447 = vst [vmem:[#allocation2 + $0x10] sm:$0xff] %v2445
        %v2448 = vld [vmem:[#allocation2] sm:$0xff]
        %v2449 = vld [vmem:[#allocation2 + $0x8] sm:$0xff]
        %v2450 = vld [vmem:[#allocation2 + $0x10] sm:$0xff]
        %v2451 = vld [vmem:[#allocation2 + $0x18] sm:$0xff]
        %s2452 = scalar_lea.vmem [#allocation9], 640
        %v2453 = vld [vmem:[%s2452] sm:$0xf]
        %v2454 = vld [vmem:[%s2452 + $0x4] sm:$0xf]
        %v2455 = vld [vmem:[%s2452 + $0x8] sm:$0xf]
        %v2456 = vld [vmem:[%s2452 + $0xc] sm:$0xf]
        %v2457 = vld [vmem:[%s2452 + $0x10] sm:$0xf]
        %v2458 = vld [vmem:[%s2452 + $0x14] sm:$0xf]
        %v2459 = vld [vmem:[%s2452 + $0x18] sm:$0xf]
        %v2460 = vld [vmem:[%s2452 + $0x1c] sm:$0xf]
        %v2461 = vld [vmem:[%s2452 + $0x20] sm:$0xf]
        %v2462 = vld [vmem:[%s2452 + $0x24] sm:$0xf]
        %v2463 = vld [vmem:[%s2452 + $0x28] sm:$0xf]
        %v2464 = vld [vmem:[%s2452 + $0x2c] sm:$0xf]
        %v2465 = vld [vmem:[%s2452 + $0x30] sm:$0xf]
        %v2466 = vld [vmem:[%s2452 + $0x34] sm:$0xf]
        %v2467 = vld [vmem:[%s2452 + $0x38] sm:$0xf]
        %v2468 = vld [vmem:[%s2452 + $0x3c] sm:$0xf]
        %s2469 = scalar_lea.vmem [#allocation9], 704
        %v2470 = vld [vmem:[%s2469] sm:$0xf]
        %v2471 = vld [vmem:[%s2469 + $0x4] sm:$0xf]
        %v2472 = vld [vmem:[%s2469 + $0x8] sm:$0xf]
        %v2473 = vld [vmem:[%s2469 + $0xc] sm:$0xf]
        %v2474 = vld [vmem:[%s2469 + $0x10] sm:$0xf]
        %v2475 = vld [vmem:[%s2469 + $0x14] sm:$0xf]
        %v2476 = vld [vmem:[%s2469 + $0x18] sm:$0xf]
        %v2477 = vld [vmem:[%s2469 + $0x1c] sm:$0xf]
        %v2478 = vld [vmem:[%s2469 + $0x20] sm:$0xf]
        %v2479 = vld [vmem:[%s2469 + $0x24] sm:$0xf]
        %v2480 = vld [vmem:[%s2469 + $0x28] sm:$0xf]
        %v2481 = vld [vmem:[%s2469 + $0x2c] sm:$0xf]
        %v2482 = vld [vmem:[%s2469 + $0x30] sm:$0xf]
        %v2483 = vld [vmem:[%s2469 + $0x34] sm:$0xf]
        %v2484 = vld [vmem:[%s2469 + $0x38] sm:$0xf]
        %v2485 = vld [vmem:[%s2469 + $0x3c] sm:$0xf]
        %s2486 = scalar_lea.vmem [#allocation9], 768
        %v2487 = vld [vmem:[%s2486] sm:$0xf]
        %v2488 = vld [vmem:[%s2486 + $0x4] sm:$0xf]
        %v2489 = vld [vmem:[%s2486 + $0x8] sm:$0xf]
        %v2490 = vld [vmem:[%s2486 + $0xc] sm:$0xf]
        %v2491 = vld [vmem:[%s2486 + $0x10] sm:$0xf]
        %v2492 = vld [vmem:[%s2486 + $0x14] sm:$0xf]
        %v2493 = vld [vmem:[%s2486 + $0x18] sm:$0xf]
        %v2494 = vld [vmem:[%s2486 + $0x1c] sm:$0xf]
        %v2495 = vld [vmem:[%s2486 + $0x20] sm:$0xf]
        %v2496 = vld [vmem:[%s2486 + $0x24] sm:$0xf]
        %v2497 = vld [vmem:[%s2486 + $0x28] sm:$0xf]
        %v2498 = vld [vmem:[%s2486 + $0x2c] sm:$0xf]
        %v2499 = vld [vmem:[%s2486 + $0x30] sm:$0xf]
        %v2500 = vld [vmem:[%s2486 + $0x34] sm:$0xf]
        %v2501 = vld [vmem:[%s2486 + $0x38] sm:$0xf]
        %v2502 = vld [vmem:[%s2486 + $0x3c] sm:$0xf]
        %s2503 = scalar_lea.vmem [#allocation9], 832
        %v2504 = vld [vmem:[%s2503] sm:$0xf]
        %v2505 = vld [vmem:[%s2503 + $0x4] sm:$0xf]
        %v2506 = vld [vmem:[%s2503 + $0x8] sm:$0xf]
        %v2507 = vld [vmem:[%s2503 + $0xc] sm:$0xf]
        %v2508 = vld [vmem:[%s2503 + $0x10] sm:$0xf]
        %v2509 = vld [vmem:[%s2503 + $0x14] sm:$0xf]
        %v2510 = vld [vmem:[%s2503 + $0x18] sm:$0xf]
        %v2511 = vld [vmem:[%s2503 + $0x1c] sm:$0xf]
        %v2512 = vld [vmem:[%s2503 + $0x20] sm:$0xf]
        %v2513 = vld [vmem:[%s2503 + $0x24] sm:$0xf]
        %v2514 = vld [vmem:[%s2503 + $0x28] sm:$0xf]
        %v2515 = vld [vmem:[%s2503 + $0x2c] sm:$0xf]
        %v2516 = vld [vmem:[%s2503 + $0x30] sm:$0xf]
        %v2517 = vld [vmem:[%s2503 + $0x34] sm:$0xf]
        %v2518 = vld [vmem:[%s2503 + $0x38] sm:$0xf]
        %v2519 = vld [vmem:[%s2503 + $0x3c] sm:$0xf]
        %s2520 = scalar_lea.vmem [#allocation9], 896
        %v2521 = vld [vmem:[%s2520] sm:$0xf]
        %v2522 = vld [vmem:[%s2520 + $0x4] sm:$0xf]
        %v2523 = vld [vmem:[%s2520 + $0x8] sm:$0xf]
        %v2524 = vld [vmem:[%s2520 + $0xc] sm:$0xf]
        %v2525 = vld [vmem:[%s2520 + $0x10] sm:$0xf]
        %v2526 = vld [vmem:[%s2520 + $0x14] sm:$0xf]
        %v2527 = vld [vmem:[%s2520 + $0x18] sm:$0xf]
        %v2528 = vld [vmem:[%s2520 + $0x1c] sm:$0xf]
        %v2529 = vld [vmem:[%s2520 + $0x20] sm:$0xf]
        %v2530 = vld [vmem:[%s2520 + $0x24] sm:$0xf]
        %v2531 = vld [vmem:[%s2520 + $0x28] sm:$0xf]
        %v2532 = vld [vmem:[%s2520 + $0x2c] sm:$0xf]
        %v2533 = vld [vmem:[%s2520 + $0x30] sm:$0xf]
        %v2534 = vld [vmem:[%s2520 + $0x34] sm:$0xf]
        %v2535 = vld [vmem:[%s2520 + $0x38] sm:$0xf]
        %v2536 = vld [vmem:[%s2520 + $0x3c] sm:$0xf]
        %s2537 = scalar_lea.vmem %s4, 3
        %v2538 = vld [vmem:[%s2537] sm:$0x1]
        %s2539 = scalar_lea.vmem %s5, 3
        %v2540 = vld [vmem:[%s2539] sm:$0x1]
        %v2542 = vshrl.u32 %v2448, 16
        %v2544 = vrot.slane %v2542, 7
        %v2546 = vshrl.u32 %v2449, 16
        %v2548 = vrot.slane %v2546, 7
        %v2549 = vshll.u32 %v2449, 16
        %v2551 = vor.u32 %v2548, %v2549
        %v2552 = vsel %vm1191, %v2544, %v2551
        %v2554 = vshrl.u32 %v2450, 16
        %v2556 = vrot.slane %v2554, 7
        %v2557 = vshll.u32 %v2450, 16
        %v2559 = vor.u32 %v2556, %v2557
        %v2560 = vsel %vm1191, %v2548, %v2559
        %v2579 = vunpack.c.l.b16 %v2470
        %v2580 = vunpack.c.l.b16 %v2471
        %v2581 = vunpack.c.l.b16 %v2472
        %v2582 = vunpack.c.l.b16 %v2473
        %v2583 = vunpack.c.l.b16 %v2474
        %v2584 = vunpack.c.l.b16 %v2475
        %v2585 = vunpack.c.l.b16 %v2476
        %v2586 = vunpack.c.l.b16 %v2477
        %v2587 = vunpack.c.l.b16 %v2478
        %v2588 = vunpack.c.l.b16 %v2479
        %v2589 = vunpack.c.l.b16 %v2480
        %v2590 = vunpack.c.l.b16 %v2481
        %v2591 = vunpack.c.l.b16 %v2482
        %v2592 = vunpack.c.l.b16 %v2483
        %v2593 = vunpack.c.l.b16 %v2484
        %v2594 = vunpack.c.l.b16 %v2485
        %v2595 = vpack.c.b16 %v2580, %v2579
        %v2596 = vpack.c.b16 %v2582, %v2581
        %v2597 = vpack.c.b16 %v2584, %v2583
        %v2598 = vpack.c.b16 %v2586, %v2585
        %v2599 = vpack.c.b16 %v2588, %v2587
        %v2600 = vpack.c.b16 %v2590, %v2589
        %v2601 = vpack.c.b16 %v2592, %v2591
        %v2602 = vpack.c.b16 %v2594, %v2593
        %2611 = vmatprep.subr.bf16.mxu0 0
        %2612 = vmatpush1.bf16.msra.mxu0 %v2595
        %2613 = vmatprep.subr.bf16.mxu0 0
        %2614 = vmatpush1.bf16.msra.mxu0 %v2596
        %2615 = vmatprep.subr.bf16.mxu0 0
        %2616 = vmatpush1.bf16.msra.mxu0 %v2597
        %2617 = vmatprep.subr.bf16.mxu0 0
        %2618 = vmatpush1.bf16.msra.mxu0 %v2598
        %2619 = vmatprep.subr.bf16.mxu0 0
        %2620 = vmatpush1.bf16.msra.mxu0 %v2599
        %2621 = vmatprep.subr.bf16.mxu0 0
        %2622 = vmatpush1.bf16.msra.mxu0 %v2600
        %2623 = vmatprep.subr.bf16.mxu0 0
        %2624 = vmatpush1.bf16.msra.mxu0 %v2601
        %2625 = vmatprep.subr.bf16.mxu0 0
        %2626 = vmatpush1.bf16.msra.mxu0 %v2602
        %2627 = vmatprep.subr.bf16.mxu0 0
        %2628 = vmatpush1.bf16.msra.mxu0 0
        %2629 = vmatprep.subr.bf16.mxu0 0
        %2630 = vmatpush1.bf16.msra.mxu0 0
        %2631 = vmatprep.subr.bf16.mxu0 0
        %2632 = vmatpush1.bf16.msra.mxu0 0
        %2633 = vmatprep.subr.bf16.mxu0 0
        %2634 = vmatpush1.bf16.msra.mxu0 0
        %2635 = vmatprep.subr.bf16.mxu0 0
        %2636 = vmatpush1.bf16.msra.mxu0 0
        %2637 = vmatprep.subr.bf16.mxu0 0
        %2638 = vmatpush1.bf16.msra.mxu0 0
        %2639 = vmatprep.subr.bf16.mxu0 0
        %2640 = vmatpush1.bf16.msra.mxu0 0
        %2641 = vmatprep.subr.bf16.mxu0 0
        %2642 = vmatpush1.bf16.msra.mxu0 0
        %2643 = vmatprep.mubr.bf16.mxu0 0
        %2644 = vmatmul.mubr.bf16.gmra.mrb[0].mxu0 %v2552
        %v2645 = vpop.f32.mrb[0].mxu0
        %v2646 = vadd.f32 0.0, %v2645
        %v2647 = vpop.f32.mrb[0].mxu0
        %v2648 = vpop.f32.mrb[0].mxu0
        %v2649 = vadd.f32 0.0, %v2648
        %v2650 = vpop.f32.mrb[0].mxu0
        %2651 = vmatprep.mubr.bf16.mxu0 0
        %2652 = vmatmul.mubr.bf16.gmra.mrb[0].mxu0 %v2560
        %v2653 = vpop.f32.mrb[0].mxu0
        %v2654 = vadd.f32 0.0, %v2653
        %v2655 = vpop.f32.mrb[0].mxu0
        %v2656 = vpop.f32.mrb[0].mxu0
        %v2657 = vadd.f32 0.0, %v2656
        %v2658 = vpop.f32.mrb[0].mxu0
        %2659 = vdwg.mxu0
        %v2663 = vrot.slane %v2448, 7
        %v2664 = vrot.slane %v2449, 7
        %v2665 = vsel %vm1314, %v2663, %v2664
        %v2666 = vrot.slane %v2450, 7
        %v2667 = vsel %vm1314, %v2664, %v2666
        %v2686 = vunpack.c.l.b16 %v2453
        %v2687 = vunpack.c.l.b16 %v2454
        %v2688 = vunpack.c.l.b16 %v2455
        %v2689 = vunpack.c.l.b16 %v2456
        %v2690 = vunpack.c.l.b16 %v2457
        %v2691 = vunpack.c.l.b16 %v2458
        %v2692 = vunpack.c.l.b16 %v2459
        %v2693 = vunpack.c.l.b16 %v2460
        %v2694 = vunpack.c.l.b16 %v2461
        %v2695 = vunpack.c.l.b16 %v2462
        %v2696 = vunpack.c.l.b16 %v2463
        %v2697 = vunpack.c.l.b16 %v2464
        %v2698 = vunpack.c.l.b16 %v2465
        %v2699 = vunpack.c.l.b16 %v2466
        %v2700 = vunpack.c.l.b16 %v2467
        %v2701 = vunpack.c.l.b16 %v2468
        %v2702 = vpack.c.b16 %v2687, %v2686
        %v2703 = vpack.c.b16 %v2689, %v2688
        %v2704 = vpack.c.b16 %v2691, %v2690
        %v2705 = vpack.c.b16 %v2693, %v2692
        %v2706 = vpack.c.b16 %v2695, %v2694
        %v2707 = vpack.c.b16 %v2697, %v2696
        %v2708 = vpack.c.b16 %v2699, %v2698
        %v2709 = vpack.c.b16 %v2701, %v2700
        %2718 = vmatprep.subr.bf16.mxu0 0
        %2719 = vmatpush1.bf16.msra.mxu0 %v2702
        %2720 = vmatprep.subr.bf16.mxu0 0
        %2721 = vmatpush1.bf16.msra.mxu0 %v2703
        %2722 = vmatprep.subr.bf16.mxu0 0
        %2723 = vmatpush1.bf16.msra.mxu0 %v2704
        %2724 = vmatprep.subr.bf16.mxu0 0
        %2725 = vmatpush1.bf16.msra.mxu0 %v2705
        %2726 = vmatprep.subr.bf16.mxu0 0
        %2727 = vmatpush1.bf16.msra.mxu0 %v2706
        %2728 = vmatprep.subr.bf16.mxu0 0
        %2729 = vmatpush1.bf16.msra.mxu0 %v2707
        %2730 = vmatprep.subr.bf16.mxu0 0
        %2731 = vmatpush1.bf16.msra.mxu0 %v2708
        %2732 = vmatprep.subr.bf16.mxu0 0
        %2733 = vmatpush1.bf16.msra.mxu0 %v2709
        %2734 = vmatprep.subr.bf16.mxu0 0
        %2735 = vmatpush1.bf16.msra.mxu0 0
        %2736 = vmatprep.subr.bf16.mxu0 0
        %2737 = vmatpush1.bf16.msra.mxu0 0
        %2738 = vmatprep.subr.bf16.mxu0 0
        %2739 = vmatpush1.bf16.msra.mxu0 0
        %2740 = vmatprep.subr.bf16.mxu0 0
        %2741 = vmatpush1.bf16.msra.mxu0 0
        %2742 = vmatprep.subr.bf16.mxu0 0
        %2743 = vmatpush1.bf16.msra.mxu0 0
        %2744 = vmatprep.subr.bf16.mxu0 0
        %2745 = vmatpush1.bf16.msra.mxu0 0
        %2746 = vmatprep.subr.bf16.mxu0 0
        %2747 = vmatpush1.bf16.msra.mxu0 0
        %2748 = vmatprep.subr.bf16.mxu0 0
        %2749 = vmatpush1.bf16.msra.mxu0 0
        %2750 = vmatprep.mubr.bf16.mxu0 0
        %2751 = vmatmul.mubr.bf16.gmra.mrb[0].mxu0 %v2665
        %v2752 = vpop.f32.mrb[0].mxu0
        %v2753 = vadd.f32 %v2646, %v2752
        %v2754 = vpop.f32.mrb[0].mxu0
        %v2755 = vpop.f32.mrb[0].mxu0
        %v2756 = vadd.f32 %v2649, %v2755
        %v2757 = vpop.f32.mrb[0].mxu0
        %2758 = vmatprep.mubr.bf16.mxu0 0
        %2759 = vmatmul.mubr.bf16.gmra.mrb[0].mxu0 %v2667
        %v2760 = vpop.f32.mrb[0].mxu0
        %v2761 = vadd.f32 %v2654, %v2760
        %v2762 = vpop.f32.mrb[0].mxu0
        %v2763 = vpop.f32.mrb[0].mxu0
        %v2764 = vadd.f32 %v2657, %v2763
        %v2765 = vpop.f32.mrb[0].mxu0
        %2766 = vdwg.mxu0
        %v2783 = vunpack.c.l.b16 %v2487
        %v2784 = vunpack.c.l.b16 %v2488
        %v2785 = vunpack.c.l.b16 %v2489
        %v2786 = vunpack.c.l.b16 %v2490
        %v2787 = vunpack.c.l.b16 %v2491
        %v2788 = vunpack.c.l.b16 %v2492
        %v2789 = vunpack.c.l.b16 %v2493
        %v2790 = vunpack.c.l.b16 %v2494
        %v2791 = vunpack.c.l.b16 %v2495
        %v2792 = vunpack.c.l.b16 %v2496
        %v2793 = vunpack.c.l.b16 %v2497
        %v2794 = vunpack.c.l.b16 %v2498
        %v2795 = vunpack.c.l.b16 %v2499
        %v2796 = vunpack.c.l.b16 %v2500
        %v2797 = vunpack.c.l.b16 %v2501
        %v2798 = vunpack.c.l.b16 %v2502
        %v2799 = vpack.c.b16 %v2784, %v2783
        %v2800 = vpack.c.b16 %v2786, %v2785
        %v2801 = vpack.c.b16 %v2788, %v2787
        %v2802 = vpack.c.b16 %v2790, %v2789
        %v2803 = vpack.c.b16 %v2792, %v2791
        %v2804 = vpack.c.b16 %v2794, %v2793
        %v2805 = vpack.c.b16 %v2796, %v2795
        %v2806 = vpack.c.b16 %v2798, %v2797
        %2815 = vmatprep.subr.bf16.mxu0 0
        %2816 = vmatpush1.bf16.msra.mxu0 %v2799
        %2817 = vmatprep.subr.bf16.mxu0 0
        %2818 = vmatpush1.bf16.msra.mxu0 %v2800
        %2819 = vmatprep.subr.bf16.mxu0 0
        %2820 = vmatpush1.bf16.msra.mxu0 %v2801
        %2821 = vmatprep.subr.bf16.mxu0 0
        %2822 = vmatpush1.bf16.msra.mxu0 %v2802
        %2823 = vmatprep.subr.bf16.mxu0 0
        %2824 = vmatpush1.bf16.msra.mxu0 %v2803
        %2825 = vmatprep.subr.bf16.mxu0 0
        %2826 = vmatpush1.bf16.msra.mxu0 %v2804
        %2827 = vmatprep.subr.bf16.mxu0 0
        %2828 = vmatpush1.bf16.msra.mxu0 %v2805
        %2829 = vmatprep.subr.bf16.mxu0 0
        %2830 = vmatpush1.bf16.msra.mxu0 %v2806
        %2831 = vmatprep.subr.bf16.mxu0 0
        %2832 = vmatpush1.bf16.msra.mxu0 0
        %2833 = vmatprep.subr.bf16.mxu0 0
        %2834 = vmatpush1.bf16.msra.mxu0 0
        %2835 = vmatprep.subr.bf16.mxu0 0
        %2836 = vmatpush1.bf16.msra.mxu0 0
        %2837 = vmatprep.subr.bf16.mxu0 0
        %2838 = vmatpush1.bf16.msra.mxu0 0
        %2839 = vmatprep.subr.bf16.mxu0 0
        %2840 = vmatpush1.bf16.msra.mxu0 0
        %2841 = vmatprep.subr.bf16.mxu0 0
        %2842 = vmatpush1.bf16.msra.mxu0 0
        %2843 = vmatprep.subr.bf16.mxu0 0
        %2844 = vmatpush1.bf16.msra.mxu0 0
        %2845 = vmatprep.subr.bf16.mxu0 0
        %2846 = vmatpush1.bf16.msra.mxu0 0
        %2847 = vmatprep.mubr.bf16.mxu0 0
        %2848 = vmatmul.mubr.bf16.gmra.mrb[0].mxu0 %v2449
        %v2849 = vpop.f32.mrb[0].mxu0
        %v2850 = vadd.f32 0.0, %v2849
        %v2851 = vpop.f32.mrb[0].mxu0
        %v2852 = vpop.f32.mrb[0].mxu0
        %v2853 = vadd.f32 0.0, %v2852
        %v2854 = vpop.f32.mrb[0].mxu0
        %2855 = vmatprep.mubr.bf16.mxu0 0
        %2856 = vmatmul.mubr.bf16.gmra.mrb[0].mxu0 %v2450
        %v2857 = vpop.f32.mrb[0].mxu0
        %v2858 = vadd.f32 0.0, %v2857
        %v2859 = vpop.f32.mrb[0].mxu0
        %v2860 = vpop.f32.mrb[0].mxu0
        %v2861 = vadd.f32 0.0, %v2860
        %v2862 = vpop.f32.mrb[0].mxu0
        %2863 = vdwg.mxu0
        %v2864 = vadd.f32 %v2753, %v2850
        %v2865 = vadd.f32 %v2756, %v2853
        %v2866 = vadd.f32 %v2761, %v2858
        %v2867 = vadd.f32 %v2764, %v2861
        %v2868 = vrot.slane %v2549, 1
        %v2869 = vor.u32 %v2546, %v2868
        %v2870 = vrot.slane %v2557, 1
        %v2871 = vsel %vm826, %v2869, %v2870
        %v2872 = vor.u32 %v2554, %v2870
        %v2874 = vshll.u32 %v2451, 16
        %v2876 = vrot.slane %v2874, 1
        %v2877 = vsel %vm826, %v2872, %v2876
        %v2896 = vunpack.c.l.b16 %v2504
        %v2897 = vunpack.c.l.b16 %v2505
        %v2898 = vunpack.c.l.b16 %v2506
        %v2899 = vunpack.c.l.b16 %v2507
        %v2900 = vunpack.c.l.b16 %v2508
        %v2901 = vunpack.c.l.b16 %v2509
        %v2902 = vunpack.c.l.b16 %v2510
        %v2903 = vunpack.c.l.b16 %v2511
        %v2904 = vunpack.c.l.b16 %v2512
        %v2905 = vunpack.c.l.b16 %v2513
        %v2906 = vunpack.c.l.b16 %v2514
        %v2907 = vunpack.c.l.b16 %v2515
        %v2908 = vunpack.c.l.b16 %v2516
        %v2909 = vunpack.c.l.b16 %v2517
        %v2910 = vunpack.c.l.b16 %v2518
        %v2911 = vunpack.c.l.b16 %v2519
        %v2912 = vpack.c.b16 %v2897, %v2896
        %v2913 = vpack.c.b16 %v2899, %v2898
        %v2914 = vpack.c.b16 %v2901, %v2900
        %v2915 = vpack.c.b16 %v2903, %v2902
        %v2916 = vpack.c.b16 %v2905, %v2904
        %v2917 = vpack.c.b16 %v2907, %v2906
        %v2918 = vpack.c.b16 %v2909, %v2908
        %v2919 = vpack.c.b16 %v2911, %v2910
        %2928 = vmatprep.subr.bf16.mxu0 0
        %2929 = vmatpush1.bf16.msra.mxu0 %v2912
        %2930 = vmatprep.subr.bf16.mxu0 0
        %2931 = vmatpush1.bf16.msra.mxu0 %v2913
        %2932 = vmatprep.subr.bf16.mxu0 0
        %2933 = vmatpush1.bf16.msra.mxu0 %v2914
        %2934 = vmatprep.subr.bf16.mxu0 0
        %2935 = vmatpush1.bf16.msra.mxu0 %v2915
        %2936 = vmatprep.subr.bf16.mxu0 0
        %2937 = vmatpush1.bf16.msra.mxu0 %v2916
        %2938 = vmatprep.subr.bf16.mxu0 0
        %2939 = vmatpush1.bf16.msra.mxu0 %v2917
        %2940 = vmatprep.subr.bf16.mxu0 0
        %2941 = vmatpush1.bf16.msra.mxu0 %v2918
        %2942 = vmatprep.subr.bf16.mxu0 0
        %2943 = vmatpush1.bf16.msra.mxu0 %v2919
        %2944 = vmatprep.subr.bf16.mxu0 0
        %2945 = vmatpush1.bf16.msra.mxu0 0
        %2946 = vmatprep.subr.bf16.mxu0 0
        %2947 = vmatpush1.bf16.msra.mxu0 0
        %2948 = vmatprep.subr.bf16.mxu0 0
        %2949 = vmatpush1.bf16.msra.mxu0 0
        %2950 = vmatprep.subr.bf16.mxu0 0
        %2951 = vmatpush1.bf16.msra.mxu0 0
        %2952 = vmatprep.subr.bf16.mxu0 0
        %2953 = vmatpush1.bf16.msra.mxu0 0
        %2954 = vmatprep.subr.bf16.mxu0 0
        %2955 = vmatpush1.bf16.msra.mxu0 0
        %2956 = vmatprep.subr.bf16.mxu0 0
        %2957 = vmatpush1.bf16.msra.mxu0 0
        %2958 = vmatprep.subr.bf16.mxu0 0
        %2959 = vmatpush1.bf16.msra.mxu0 0
        %2960 = vmatprep.mubr.bf16.mxu0 0
        %2961 = vmatmul.mubr.bf16.gmra.mrb[0].mxu0 %v2871
        %v2962 = vpop.f32.mrb[0].mxu0
        %v2963 = vadd.f32 0.0, %v2962
        %v2964 = vpop.f32.mrb[0].mxu0
        %v2965 = vpop.f32.mrb[0].mxu0
        %v2966 = vadd.f32 0.0, %v2965
        %v2967 = vpop.f32.mrb[0].mxu0
        %2968 = vmatprep.mubr.bf16.mxu0 0
        %2969 = vmatmul.mubr.bf16.gmra.mrb[0].mxu0 %v2877
        %v2970 = vpop.f32.mrb[0].mxu0
        %v2971 = vadd.f32 0.0, %v2970
        %v2972 = vpop.f32.mrb[0].mxu0
        %v2973 = vpop.f32.mrb[0].mxu0
        %v2974 = vadd.f32 0.0, %v2973
        %v2975 = vpop.f32.mrb[0].mxu0
        %2976 = vdwg.mxu0
        %v2977 = vadd.f32 %v2864, %v2963
        %v2978 = vadd.f32 %v2865, %v2966
        %v2979 = vadd.f32 %v2866, %v2971
        %v2980 = vadd.f32 %v2867, %v2974
        %v2982 = vrot.slane %v2449, 1
        %v2983 = vrot.slane %v2450, 1
        %v2984 = vsel %vm950, %v2982, %v2983
        %v2985 = vrot.slane %v2451, 1
        %v2986 = vsel %vm950, %v2983, %v2985
        %v3005 = vunpack.c.l.b16 %v2521
        %v3006 = vunpack.c.l.b16 %v2522
        %v3007 = vunpack.c.l.b16 %v2523
        %v3008 = vunpack.c.l.b16 %v2524
        %v3009 = vunpack.c.l.b16 %v2525
        %v3010 = vunpack.c.l.b16 %v2526
        %v3011 = vunpack.c.l.b16 %v2527
        %v3012 = vunpack.c.l.b16 %v2528
        %v3013 = vunpack.c.l.b16 %v2529
        %v3014 = vunpack.c.l.b16 %v2530
        %v3015 = vunpack.c.l.b16 %v2531
        %v3016 = vunpack.c.l.b16 %v2532
        %v3017 = vunpack.c.l.b16 %v2533
        %v3018 = vunpack.c.l.b16 %v2534
        %v3019 = vunpack.c.l.b16 %v2535
        %v3020 = vunpack.c.l.b16 %v2536
        %v3021 = vpack.c.b16 %v3006, %v3005
        %v3022 = vpack.c.b16 %v3008, %v3007
        %v3023 = vpack.c.b16 %v3010, %v3009
        %v3024 = vpack.c.b16 %v3012, %v3011
        %v3025 = vpack.c.b16 %v3014, %v3013
        %v3026 = vpack.c.b16 %v3016, %v3015
        %v3027 = vpack.c.b16 %v3018, %v3017
        %v3028 = vpack.c.b16 %v3020, %v3019
        %3037 = vmatprep.subr.bf16.mxu0 0
        %3038 = vmatpush1.bf16.msra.mxu0 %v3021
        %3039 = vmatprep.subr.bf16.mxu0 0
        %3040 = vmatpush1.bf16.msra.mxu0 %v3022
        %3041 = vmatprep.subr.bf16.mxu0 0
        %3042 = vmatpush1.bf16.msra.mxu0 %v3023
        %3043 = vmatprep.subr.bf16.mxu0 0
        %3044 = vmatpush1.bf16.msra.mxu0 %v3024
        %3045 = vmatprep.subr.bf16.mxu0 0
        %3046 = vmatpush1.bf16.msra.mxu0 %v3025
        %3047 = vmatprep.subr.bf16.mxu0 0
        %3048 = vmatpush1.bf16.msra.mxu0 %v3026
        %3049 = vmatprep.subr.bf16.mxu0 0
        %3050 = vmatpush1.bf16.msra.mxu0 %v3027
        %3051 = vmatprep.subr.bf16.mxu0 0
        %3052 = vmatpush1.bf16.msra.mxu0 %v3028
        %3053 = vmatprep.subr.bf16.mxu0 0
        %3054 = vmatpush1.bf16.msra.mxu0 0
        %3055 = vmatprep.subr.bf16.mxu0 0
        %3056 = vmatpush1.bf16.msra.mxu0 0
        %3057 = vmatprep.subr.bf16.mxu0 0
        %3058 = vmatpush1.bf16.msra.mxu0 0
        %3059 = vmatprep.subr.bf16.mxu0 0
        %3060 = vmatpush1.bf16.msra.mxu0 0
        %3061 = vmatprep.subr.bf16.mxu0 0
        %3062 = vmatpush1.bf16.msra.mxu0 0
        %3063 = vmatprep.subr.bf16.mxu0 0
        %3064 = vmatpush1.bf16.msra.mxu0 0
        %3065 = vmatprep.subr.bf16.mxu0 0
        %3066 = vmatpush1.bf16.msra.mxu0 0
        %3067 = vmatprep.subr.bf16.mxu0 0
        %3068 = vmatpush1.bf16.msra.mxu0 0
        %3069 = vmatprep.mubr.bf16.mxu0 0
        %3070 = vmatmul.mubr.bf16.gmra.mrb[0].mxu0 %v2984
        %v3071 = vpop.f32.mrb[0].mxu0
        %v3072 = vadd.f32 0.0, %v3071
        %v3073 = vpop.f32.mrb[0].mxu0
        %v3074 = vpop.f32.mrb[0].mxu0
        %v3075 = vadd.f32 0.0, %v3074
        %v3076 = vpop.f32.mrb[0].mxu0
        %3077 = vmatprep.mubr.bf16.mxu0 0
        %3078 = vmatmul.mubr.bf16.gmra.mrb[0].mxu0 %v2986
        %v3079 = vpop.f32.mrb[0].mxu0
        %v3080 = vadd.f32 0.0, %v3079
        %v3081 = vpop.f32.mrb[0].mxu0
        %v3082 = vpop.f32.mrb[0].mxu0
        %v3083 = vadd.f32 0.0, %v3082
        %v3084 = vpop.f32.mrb[0].mxu0
        %3085 = vdwg.mxu0
        %v3086 = vadd.f32 %v2977, %v3072
        %v3087 = vadd.f32 %v2978, %v3075
        %v3088 = vadd.f32 %v2979, %v3080
        %v3089 = vadd.f32 %v2980, %v3083
        %v3091 = vlaneseq
        %v3092 = vshrl.u32 %v3091, 7
        %v3093 = vsub.s32 0, %v3092
        %v3094 = vrot.slane %v2538, %v3093
        %v3096 = vmul.f32 %v3086, %v3094
        %v3097 = vmul.f32 %v3087, %v3094
        %v3098 = vmul.f32 %v3088, %v3094
        %v3099 = vmul.f32 %v3089, %v3094
        %v3101 = vlaneseq
        %v3102 = vshrl.u32 %v3101, 7
        %v3103 = vsub.s32 0, %v3102
        %v3104 = vrot.slane %v2540, %v3103
        %v3106 = vadd.f32 %v3096, %v3104
        %v3107 = vadd.f32 %v3097, %v3104
        %v3108 = vadd.f32 %v3098, %v3104
        %v3109 = vadd.f32 %v3099, %v3104
        %v3110 = vtanh.pop %v3106
        %v3111 = vtanh.pop %v3107
        %v3112 = vtanh.pop %v3108
        %v3113 = vtanh.pop %v3109
        %v3114 = vsel %vm1087, %v3110, 0.0
        %v3115 = vsel %vm1088, %v3111, 0.0
        %v3116 = vsel %vm1089, %v3112, 0.0
        %v3117 = vsel %vm1090, %v3113, 0.0
        %v3118 = vpack.c.bf16 %v3115, %v3114
        %v3119 = vpack.c.bf16 %v3117, %v3116
        %3120 = vst [vmem:[#allocation3 + $0x8] sm:$0xff] %v3118
        %3121 = vst [vmem:[#allocation3 + $0x10] sm:$0xff] %v3119
        %v3122 = vld [vmem:[#allocation3] sm:$0xff]
        %v3123 = vld [vmem:[#allocation3 + $0x8] sm:$0xff]
        %v3124 = vld [vmem:[#allocation3 + $0x10] sm:$0xff]
        %v3125 = vld [vmem:[#allocation3 + $0x18] sm:$0xff]
        %v3126 = vld [vmem:[#allocation10] sm:$0xf]
        %v3127 = vld [vmem:[#allocation10 + $0x4] sm:$0xf]
        %v3128 = vld [vmem:[#allocation10 + $0x8] sm:$0xf]
        %v3129 = vld [vmem:[#allocation10 + $0xc] sm:$0xf]
        %v3130 = vld [vmem:[#allocation10 + $0x10] sm:$0xf]
        %v3131 = vld [vmem:[#allocation10 + $0x14] sm:$0xf]
        %v3132 = vld [vmem:[#allocation10 + $0x18] sm:$0xf]
        %v3133 = vld [vmem:[#allocation10 + $0x1c] sm:$0xf]
        %v3134 = vld [vmem:[#allocation10 + $0x20] sm:$0xf]
        %v3135 = vld [vmem:[#allocation10 + $0x24] sm:$0xf]
        %v3136 = vld [vmem:[#allocation10 + $0x28] sm:$0xf]
        %v3137 = vld [vmem:[#allocation10 + $0x2c] sm:$0xf]
        %v3138 = vld [vmem:[#allocation10 + $0x30] sm:$0xf]
        %v3139 = vld [vmem:[#allocation10 + $0x34] sm:$0xf]
        %v3140 = vld [vmem:[#allocation10 + $0x38] sm:$0xf]
        %v3141 = vld [vmem:[#allocation10 + $0x3c] sm:$0xf]
        %s3142 = scalar_lea.vmem [#allocation10], 64
        %v3143 = vld [vmem:[%s3142] sm:$0xf]
        %v3144 = vld [vmem:[%s3142 + $0x4] sm:$0xf]
        %v3145 = vld [vmem:[%s3142 + $0x8] sm:$0xf]
        %v3146 = vld [vmem:[%s3142 + $0xc] sm:$0xf]
        %v3147 = vld [vmem:[%s3142 + $0x10] sm:$0xf]
        %v3148 = vld [vmem:[%s3142 + $0x14] sm:$0xf]
        %v3149 = vld [vmem:[%s3142 + $0x18] sm:$0xf]
        %v3150 = vld [vmem:[%s3142 + $0x1c] sm:$0xf]
        %v3151 = vld [vmem:[%s3142 + $0x20] sm:$0xf]
        %v3152 = vld [vmem:[%s3142 + $0x24] sm:$0xf]
        %v3153 = vld [vmem:[%s3142 + $0x28] sm:$0xf]
        %v3154 = vld [vmem:[%s3142 + $0x2c] sm:$0xf]
        %v3155 = vld [vmem:[%s3142 + $0x30] sm:$0xf]
        %v3156 = vld [vmem:[%s3142 + $0x34] sm:$0xf]
        %v3157 = vld [vmem:[%s3142 + $0x38] sm:$0xf]
        %v3158 = vld [vmem:[%s3142 + $0x3c] sm:$0xf]
        %s3159 = scalar_lea.vmem [#allocation10], 128
        %v3160 = vld [vmem:[%s3159] sm:$0xf]
        %v3161 = vld [vmem:[%s3159 + $0x4] sm:$0xf]
        %v3162 = vld [vmem:[%s3159 + $0x8] sm:$0xf]
        %v3163 = vld [vmem:[%s3159 + $0xc] sm:$0xf]
        %v3164 = vld [vmem:[%s3159 + $0x10] sm:$0xf]
        %v3165 = vld [vmem:[%s3159 + $0x14] sm:$0xf]
        %v3166 = vld [vmem:[%s3159 + $0x18] sm:$0xf]
        %v3167 = vld [vmem:[%s3159 + $0x1c] sm:$0xf]
        %v3168 = vld [vmem:[%s3159 + $0x20] sm:$0xf]
        %v3169 = vld [vmem:[%s3159 + $0x24] sm:$0xf]
        %v3170 = vld [vmem:[%s3159 + $0x28] sm:$0xf]
        %v3171 = vld [vmem:[%s3159 + $0x2c] sm:$0xf]
        %v3172 = vld [vmem:[%s3159 + $0x30] sm:$0xf]
        %v3173 = vld [vmem:[%s3159 + $0x34] sm:$0xf]
        %v3174 = vld [vmem:[%s3159 + $0x38] sm:$0xf]
        %v3175 = vld [vmem:[%s3159 + $0x3c] sm:$0xf]
        %s3176 = scalar_lea.vmem [#allocation10], 192
        %v3177 = vld [vmem:[%s3176] sm:$0xf]
        %v3178 = vld [vmem:[%s3176 + $0x4] sm:$0xf]
        %v3179 = vld [vmem:[%s3176 + $0x8] sm:$0xf]
        %v3180 = vld [vmem:[%s3176 + $0xc] sm:$0xf]
        %v3181 = vld [vmem:[%s3176 + $0x10] sm:$0xf]
        %v3182 = vld [vmem:[%s3176 + $0x14] sm:$0xf]
        %v3183 = vld [vmem:[%s3176 + $0x18] sm:$0xf]
        %v3184 = vld [vmem:[%s3176 + $0x1c] sm:$0xf]
        %v3185 = vld [vmem:[%s3176 + $0x20] sm:$0xf]
        %v3186 = vld [vmem:[%s3176 + $0x24] sm:$0xf]
        %v3187 = vld [vmem:[%s3176 + $0x28] sm:$0xf]
        %v3188 = vld [vmem:[%s3176 + $0x2c] sm:$0xf]
        %v3189 = vld [vmem:[%s3176 + $0x30] sm:$0xf]
        %v3190 = vld [vmem:[%s3176 + $0x34] sm:$0xf]
        %v3191 = vld [vmem:[%s3176 + $0x38] sm:$0xf]
        %v3192 = vld [vmem:[%s3176 + $0x3c] sm:$0xf]
        %s3193 = scalar_lea.vmem [#allocation10], 256
        %v3194 = vld [vmem:[%s3193] sm:$0xf]
        %v3195 = vld [vmem:[%s3193 + $0x4] sm:$0xf]
        %v3196 = vld [vmem:[%s3193 + $0x8] sm:$0xf]
        %v3197 = vld [vmem:[%s3193 + $0xc] sm:$0xf]
        %v3198 = vld [vmem:[%s3193 + $0x10] sm:$0xf]
        %v3199 = vld [vmem:[%s3193 + $0x14] sm:$0xf]
        %v3200 = vld [vmem:[%s3193 + $0x18] sm:$0xf]
        %v3201 = vld [vmem:[%s3193 + $0x1c] sm:$0xf]
        %v3202 = vld [vmem:[%s3193 + $0x20] sm:$0xf]
        %v3203 = vld [vmem:[%s3193 + $0x24] sm:$0xf]
        %v3204 = vld [vmem:[%s3193 + $0x28] sm:$0xf]
        %v3205 = vld [vmem:[%s3193 + $0x2c] sm:$0xf]
        %v3206 = vld [vmem:[%s3193 + $0x30] sm:$0xf]
        %v3207 = vld [vmem:[%s3193 + $0x34] sm:$0xf]
        %v3208 = vld [vmem:[%s3193 + $0x38] sm:$0xf]
        %v3209 = vld [vmem:[%s3193 + $0x3c] sm:$0xf]
        %v3210 = vld [vmem:[%s6] sm:$0x1]
        %v3211 = vld [vmem:[%s7] sm:$0x1]
        %v3213 = vshrl.u32 %v3122, 16
        %v3215 = vrot.slane %v3213, 7
        %v3217 = vshrl.u32 %v3123, 16
        %v3219 = vrot.slane %v3217, 7
        %v3220 = vshll.u32 %v3123, 16
        %v3222 = vor.u32 %v3219, %v3220
        %v3223 = vsel %vm1191, %v3215, %v3222
        %v3225 = vshrl.u32 %v3124, 16
        %v3227 = vrot.slane %v3225, 7
        %v3228 = vshll.u32 %v3124, 16
        %v3230 = vor.u32 %v3227, %v3228
        %v3231 = vsel %vm1191, %v3219, %v3230
        %v3250 = vunpack.c.l.b16 %v3143
        %v3251 = vunpack.c.l.b16 %v3144
        %v3252 = vunpack.c.l.b16 %v3145
        %v3253 = vunpack.c.l.b16 %v3146
        %v3254 = vunpack.c.l.b16 %v3147
        %v3255 = vunpack.c.l.b16 %v3148
        %v3256 = vunpack.c.l.b16 %v3149
        %v3257 = vunpack.c.l.b16 %v3150
        %v3258 = vunpack.c.l.b16 %v3151
        %v3259 = vunpack.c.l.b16 %v3152
        %v3260 = vunpack.c.l.b16 %v3153
        %v3261 = vunpack.c.l.b16 %v3154
        %v3262 = vunpack.c.l.b16 %v3155
        %v3263 = vunpack.c.l.b16 %v3156
        %v3264 = vunpack.c.l.b16 %v3157
        %v3265 = vunpack.c.l.b16 %v3158
        %v3266 = vpack.c.b16 %v3251, %v3250
        %v3267 = vpack.c.b16 %v3253, %v3252
        %v3268 = vpack.c.b16 %v3255, %v3254
        %v3269 = vpack.c.b16 %v3257, %v3256
        %v3270 = vpack.c.b16 %v3259, %v3258
        %v3271 = vpack.c.b16 %v3261, %v3260
        %v3272 = vpack.c.b16 %v3263, %v3262
        %v3273 = vpack.c.b16 %v3265, %v3264
        %3282 = vmatprep.subr.bf16.mxu0 0
        %3283 = vmatpush1.bf16.msra.mxu0 %v3266
        %3284 = vmatprep.subr.bf16.mxu0 0
        %3285 = vmatpush1.bf16.msra.mxu0 %v3267
        %3286 = vmatprep.subr.bf16.mxu0 0
        %3287 = vmatpush1.bf16.msra.mxu0 %v3268
        %3288 = vmatprep.subr.bf16.mxu0 0
        %3289 = vmatpush1.bf16.msra.mxu0 %v3269
        %3290 = vmatprep.subr.bf16.mxu0 0
        %3291 = vmatpush1.bf16.msra.mxu0 %v3270
        %3292 = vmatprep.subr.bf16.mxu0 0
        %3293 = vmatpush1.bf16.msra.mxu0 %v3271
        %3294 = vmatprep.subr.bf16.mxu0 0
        %3295 = vmatpush1.bf16.msra.mxu0 %v3272
        %3296 = vmatprep.subr.bf16.mxu0 0
        %3297 = vmatpush1.bf16.msra.mxu0 %v3273
        %3298 = vmatprep.subr.bf16.mxu0 0
        %3299 = vmatpush1.bf16.msra.mxu0 0
        %3300 = vmatprep.subr.bf16.mxu0 0
        %3301 = vmatpush1.bf16.msra.mxu0 0
        %3302 = vmatprep.subr.bf16.mxu0 0
        %3303 = vmatpush1.bf16.msra.mxu0 0
        %3304 = vmatprep.subr.bf16.mxu0 0
        %3305 = vmatpush1.bf16.msra.mxu0 0
        %3306 = vmatprep.subr.bf16.mxu0 0
        %3307 = vmatpush1.bf16.msra.mxu0 0
        %3308 = vmatprep.subr.bf16.mxu0 0
        %3309 = vmatpush1.bf16.msra.mxu0 0
        %3310 = vmatprep.subr.bf16.mxu0 0
        %3311 = vmatpush1.bf16.msra.mxu0 0
        %3312 = vmatprep.subr.bf16.mxu0 0
        %3313 = vmatpush1.bf16.msra.mxu0 0
        %3314 = vmatprep.mubr.bf16.mxu0 0
        %3315 = vmatmul.mubr.bf16.gmra.mrb[0].mxu0 %v3223
        %v3316 = vpop.f32.mrb[0].mxu0
        %v3317 = vadd.f32 0.0, %v3316
        %v3318 = vpop.f32.mrb[0].mxu0
        %v3319 = vpop.f32.mrb[0].mxu0
        %v3320 = vadd.f32 0.0, %v3319
        %v3321 = vpop.f32.mrb[0].mxu0
        %3322 = vmatprep.mubr.bf16.mxu0 0
        %3323 = vmatmul.mubr.bf16.gmra.mrb[0].mxu0 %v3231
        %v3324 = vpop.f32.mrb[0].mxu0
        %v3325 = vadd.f32 0.0, %v3324
        %v3326 = vpop.f32.mrb[0].mxu0
        %v3327 = vpop.f32.mrb[0].mxu0
        %v3328 = vadd.f32 0.0, %v3327
        %v3329 = vpop.f32.mrb[0].mxu0
        %3330 = vdwg.mxu0
        %v3334 = vrot.slane %v3122, 7
        %v3335 = vrot.slane %v3123, 7
        %v3336 = vsel %vm1314, %v3334, %v3335
        %v3337 = vrot.slane %v3124, 7
        %v3338 = vsel %vm1314, %v3335, %v3337
        %v3357 = vunpack.c.l.b16 %v3126
        %v3358 = vunpack.c.l.b16 %v3127
        %v3359 = vunpack.c.l.b16 %v3128
        %v3360 = vunpack.c.l.b16 %v3129
        %v3361 = vunpack.c.l.b16 %v3130
        %v3362 = vunpack.c.l.b16 %v3131
        %v3363 = vunpack.c.l.b16 %v3132
        %v3364 = vunpack.c.l.b16 %v3133
        %v3365 = vunpack.c.l.b16 %v3134
        %v3366 = vunpack.c.l.b16 %v3135
        %v3367 = vunpack.c.l.b16 %v3136
        %v3368 = vunpack.c.l.b16 %v3137
        %v3369 = vunpack.c.l.b16 %v3138
        %v3370 = vunpack.c.l.b16 %v3139
        %v3371 = vunpack.c.l.b16 %v3140
        %v3372 = vunpack.c.l.b16 %v3141
        %v3373 = vpack.c.b16 %v3358, %v3357
        %v3374 = vpack.c.b16 %v3360, %v3359
        %v3375 = vpack.c.b16 %v3362, %v3361
        %v3376 = vpack.c.b16 %v3364, %v3363
        %v3377 = vpack.c.b16 %v3366, %v3365
        %v3378 = vpack.c.b16 %v3368, %v3367
        %v3379 = vpack.c.b16 %v3370, %v3369
        %v3380 = vpack.c.b16 %v3372, %v3371
        %3389 = vmatprep.subr.bf16.mxu0 0
        %3390 = vmatpush1.bf16.msra.mxu0 %v3373
        %3391 = vmatprep.subr.bf16.mxu0 0
        %3392 = vmatpush1.bf16.msra.mxu0 %v3374
        %3393 = vmatprep.subr.bf16.mxu0 0
        %3394 = vmatpush1.bf16.msra.mxu0 %v3375
        %3395 = vmatprep.subr.bf16.mxu0 0
        %3396 = vmatpush1.bf16.msra.mxu0 %v3376
        %3397 = vmatprep.subr.bf16.mxu0 0
        %3398 = vmatpush1.bf16.msra.mxu0 %v3377
        %3399 = vmatprep.subr.bf16.mxu0 0
        %3400 = vmatpush1.bf16.msra.mxu0 %v3378
        %3401 = vmatprep.subr.bf16.mxu0 0
        %3402 = vmatpush1.bf16.msra.mxu0 %v3379
        %3403 = vmatprep.subr.bf16.mxu0 0
        %3404 = vmatpush1.bf16.msra.mxu0 %v3380
        %3405 = vmatprep.subr.bf16.mxu0 0
        %3406 = vmatpush1.bf16.msra.mxu0 0
        %3407 = vmatprep.subr.bf16.mxu0 0
        %3408 = vmatpush1.bf16.msra.mxu0 0
        %3409 = vmatprep.subr.bf16.mxu0 0
        %3410 = vmatpush1.bf16.msra.mxu0 0
        %3411 = vmatprep.subr.bf16.mxu0 0
        %3412 = vmatpush1.bf16.msra.mxu0 0
        %3413 = vmatprep.subr.bf16.mxu0 0
        %3414 = vmatpush1.bf16.msra.mxu0 0
        %3415 = vmatprep.subr.bf16.mxu0 0
        %3416 = vmatpush1.bf16.msra.mxu0 0
        %3417 = vmatprep.subr.bf16.mxu0 0
        %3418 = vmatpush1.bf16.msra.mxu0 0
        %3419 = vmatprep.subr.bf16.mxu0 0
        %3420 = vmatpush1.bf16.msra.mxu0 0
        %3421 = vmatprep.mubr.bf16.mxu0 0
        %3422 = vmatmul.mubr.bf16.gmra.mrb[0].mxu0 %v3336
        %v3423 = vpop.f32.mrb[0].mxu0
        %v3424 = vadd.f32 %v3317, %v3423
        %v3425 = vpop.f32.mrb[0].mxu0
        %v3426 = vpop.f32.mrb[0].mxu0
        %v3427 = vadd.f32 %v3320, %v3426
        %v3428 = vpop.f32.mrb[0].mxu0
        %3429 = vmatprep.mubr.bf16.mxu0 0
        %3430 = vmatmul.mubr.bf16.gmra.mrb[0].mxu0 %v3338
        %v3431 = vpop.f32.mrb[0].mxu0
        %v3432 = vadd.f32 %v3325, %v3431
        %v3433 = vpop.f32.mrb[0].mxu0
        %v3434 = vpop.f32.mrb[0].mxu0
        %v3435 = vadd.f32 %v3328, %v3434
        %v3436 = vpop.f32.mrb[0].mxu0
        %3437 = vdwg.mxu0
        %v3454 = vunpack.c.l.b16 %v3160
        %v3455 = vunpack.c.l.b16 %v3161
        %v3456 = vunpack.c.l.b16 %v3162
        %v3457 = vunpack.c.l.b16 %v3163
        %v3458 = vunpack.c.l.b16 %v3164
        %v3459 = vunpack.c.l.b16 %v3165
        %v3460 = vunpack.c.l.b16 %v3166
        %v3461 = vunpack.c.l.b16 %v3167
        %v3462 = vunpack.c.l.b16 %v3168
        %v3463 = vunpack.c.l.b16 %v3169
        %v3464 = vunpack.c.l.b16 %v3170
        %v3465 = vunpack.c.l.b16 %v3171
        %v3466 = vunpack.c.l.b16 %v3172
        %v3467 = vunpack.c.l.b16 %v3173
        %v3468 = vunpack.c.l.b16 %v3174
        %v3469 = vunpack.c.l.b16 %v3175
        %v3470 = vpack.c.b16 %v3455, %v3454
        %v3471 = vpack.c.b16 %v3457, %v3456
        %v3472 = vpack.c.b16 %v3459, %v3458
        %v3473 = vpack.c.b16 %v3461, %v3460
        %v3474 = vpack.c.b16 %v3463, %v3462
        %v3475 = vpack.c.b16 %v3465, %v3464
        %v3476 = vpack.c.b16 %v3467, %v3466
        %v3477 = vpack.c.b16 %v3469, %v3468
        %3486 = vmatprep.subr.bf16.mxu0 0
        %3487 = vmatpush1.bf16.msra.mxu0 %v3470
        %3488 = vmatprep.subr.bf16.mxu0 0
        %3489 = vmatpush1.bf16.msra.mxu0 %v3471
        %3490 = vmatprep.subr.bf16.mxu0 0
        %3491 = vmatpush1.bf16.msra.mxu0 %v3472
        %3492 = vmatprep.subr.bf16.mxu0 0
        %3493 = vmatpush1.bf16.msra.mxu0 %v3473
        %3494 = vmatprep.subr.bf16.mxu0 0
        %3495 = vmatpush1.bf16.msra.mxu0 %v3474
        %3496 = vmatprep.subr.bf16.mxu0 0
        %3497 = vmatpush1.bf16.msra.mxu0 %v3475
        %3498 = vmatprep.subr.bf16.mxu0 0
        %3499 = vmatpush1.bf16.msra.mxu0 %v3476
        %3500 = vmatprep.subr.bf16.mxu0 0
        %3501 = vmatpush1.bf16.msra.mxu0 %v3477
        %3502 = vmatprep.subr.bf16.mxu0 0
        %3503 = vmatpush1.bf16.msra.mxu0 0
        %3504 = vmatprep.subr.bf16.mxu0 0
        %3505 = vmatpush1.bf16.msra.mxu0 0
        %3506 = vmatprep.subr.bf16.mxu0 0
        %3507 = vmatpush1.bf16.msra.mxu0 0
        %3508 = vmatprep.subr.bf16.mxu0 0
        %3509 = vmatpush1.bf16.msra.mxu0 0
        %3510 = vmatprep.subr.bf16.mxu0 0
        %3511 = vmatpush1.bf16.msra.mxu0 0
        %3512 = vmatprep.subr.bf16.mxu0 0
        %3513 = vmatpush1.bf16.msra.mxu0 0
        %3514 = vmatprep.subr.bf16.mxu0 0
        %3515 = vmatpush1.bf16.msra.mxu0 0
        %3516 = vmatprep.subr.bf16.mxu0 0
        %3517 = vmatpush1.bf16.msra.mxu0 0
        %3518 = vmatprep.mubr.bf16.mxu0 0
        %3519 = vmatmul.mubr.bf16.gmra.mrb[0].mxu0 %v3123
        %v3520 = vpop.f32.mrb[0].mxu0
        %v3521 = vadd.f32 0.0, %v3520
        %v3522 = vpop.f32.mrb[0].mxu0
        %v3523 = vpop.f32.mrb[0].mxu0
        %v3524 = vadd.f32 0.0, %v3523
        %v3525 = vpop.f32.mrb[0].mxu0
        %3526 = vmatprep.mubr.bf16.mxu0 0
        %3527 = vmatmul.mubr.bf16.gmra.mrb[0].mxu0 %v3124
        %v3528 = vpop.f32.mrb[0].mxu0
        %v3529 = vadd.f32 0.0, %v3528
        %v3530 = vpop.f32.mrb[0].mxu0
        %v3531 = vpop.f32.mrb[0].mxu0
        %v3532 = vadd.f32 0.0, %v3531
        %v3533 = vpop.f32.mrb[0].mxu0
        %3534 = vdwg.mxu0
        %v3535 = vadd.f32 %v3424, %v3521
        %v3536 = vadd.f32 %v3427, %v3524
        %v3537 = vadd.f32 %v3432, %v3529
        %v3538 = vadd.f32 %v3435, %v3532
        %v3539 = vrot.slane %v3220, 1
        %v3540 = vor.u32 %v3217, %v3539
        %v3541 = vrot.slane %v3228, 1
        %v3542 = vsel %vm826, %v3540, %v3541
        %v3543 = vor.u32 %v3225, %v3541
        %v3545 = vshll.u32 %v3125, 16
        %v3547 = vrot.slane %v3545, 1
        %v3548 = vsel %vm826, %v3543, %v3547
        %v3567 = vunpack.c.l.b16 %v3177
        %v3568 = vunpack.c.l.b16 %v3178
        %v3569 = vunpack.c.l.b16 %v3179
        %v3570 = vunpack.c.l.b16 %v3180
        %v3571 = vunpack.c.l.b16 %v3181
        %v3572 = vunpack.c.l.b16 %v3182
        %v3573 = vunpack.c.l.b16 %v3183
        %v3574 = vunpack.c.l.b16 %v3184
        %v3575 = vunpack.c.l.b16 %v3185
        %v3576 = vunpack.c.l.b16 %v3186
        %v3577 = vunpack.c.l.b16 %v3187
        %v3578 = vunpack.c.l.b16 %v3188
        %v3579 = vunpack.c.l.b16 %v3189
        %v3580 = vunpack.c.l.b16 %v3190
        %v3581 = vunpack.c.l.b16 %v3191
        %v3582 = vunpack.c.l.b16 %v3192
        %v3583 = vpack.c.b16 %v3568, %v3567
        %v3584 = vpack.c.b16 %v3570, %v3569
        %v3585 = vpack.c.b16 %v3572, %v3571
        %v3586 = vpack.c.b16 %v3574, %v3573
        %v3587 = vpack.c.b16 %v3576, %v3575
        %v3588 = vpack.c.b16 %v3578, %v3577
        %v3589 = vpack.c.b16 %v3580, %v3579
        %v3590 = vpack.c.b16 %v3582, %v3581
        %3599 = vmatprep.subr.bf16.mxu0 0
        %3600 = vmatpush1.bf16.msra.mxu0 %v3583
        %3601 = vmatprep.subr.bf16.mxu0 0
        %3602 = vmatpush1.bf16.msra.mxu0 %v3584
        %3603 = vmatprep.subr.bf16.mxu0 0
        %3604 = vmatpush1.bf16.msra.mxu0 %v3585
        %3605 = vmatprep.subr.bf16.mxu0 0
        %3606 = vmatpush1.bf16.msra.mxu0 %v3586
        %3607 = vmatprep.subr.bf16.mxu0 0
        %3608 = vmatpush1.bf16.msra.mxu0 %v3587
        %3609 = vmatprep.subr.bf16.mxu0 0
        %3610 = vmatpush1.bf16.msra.mxu0 %v3588
        %3611 = vmatprep.subr.bf16.mxu0 0
        %3612 = vmatpush1.bf16.msra.mxu0 %v3589
        %3613 = vmatprep.subr.bf16.mxu0 0
        %3614 = vmatpush1.bf16.msra.mxu0 %v3590
        %3615 = vmatprep.subr.bf16.mxu0 0
        %3616 = vmatpush1.bf16.msra.mxu0 0
        %3617 = vmatprep.subr.bf16.mxu0 0
        %3618 = vmatpush1.bf16.msra.mxu0 0
        %3619 = vmatprep.subr.bf16.mxu0 0
        %3620 = vmatpush1.bf16.msra.mxu0 0
        %3621 = vmatprep.subr.bf16.mxu0 0
        %3622 = vmatpush1.bf16.msra.mxu0 0
        %3623 = vmatprep.subr.bf16.mxu0 0
        %3624 = vmatpush1.bf16.msra.mxu0 0
        %3625 = vmatprep.subr.bf16.mxu0 0
        %3626 = vmatpush1.bf16.msra.mxu0 0
        %3627 = vmatprep.subr.bf16.mxu0 0
        %3628 = vmatpush1.bf16.msra.mxu0 0
        %3629 = vmatprep.subr.bf16.mxu0 0
        %3630 = vmatpush1.bf16.msra.mxu0 0
        %3631 = vmatprep.mubr.bf16.mxu0 0
        %3632 = vmatmul.mubr.bf16.gmra.mrb[0].mxu0 %v3542
        %v3633 = vpop.f32.mrb[0].mxu0
        %v3634 = vadd.f32 0.0, %v3633
        %v3635 = vpop.f32.mrb[0].mxu0
        %v3636 = vpop.f32.mrb[0].mxu0
        %v3637 = vadd.f32 0.0, %v3636
        %v3638 = vpop.f32.mrb[0].mxu0
        %3639 = vmatprep.mubr.bf16.mxu0 0
        %3640 = vmatmul.mubr.bf16.gmra.mrb[0].mxu0 %v3548
        %v3641 = vpop.f32.mrb[0].mxu0
        %v3642 = vadd.f32 0.0, %v3641
        %v3643 = vpop.f32.mrb[0].mxu0
        %v3644 = vpop.f32.mrb[0].mxu0
        %v3645 = vadd.f32 0.0, %v3644
        %v3646 = vpop.f32.mrb[0].mxu0
        %3647 = vdwg.mxu0
        %v3648 = vadd.f32 %v3535, %v3634
        %v3649 = vadd.f32 %v3536, %v3637
        %v3650 = vadd.f32 %v3537, %v3642
        %v3651 = vadd.f32 %v3538, %v3645
        %v3653 = vrot.slane %v3123, 1
        %v3654 = vrot.slane %v3124, 1
        %v3655 = vsel %vm950, %v3653, %v3654
        %v3656 = vrot.slane %v3125, 1
        %v3657 = vsel %vm950, %v3654, %v3656
        %v3676 = vunpack.c.l.b16 %v3194
        %v3677 = vunpack.c.l.b16 %v3195
        %v3678 = vunpack.c.l.b16 %v3196
        %v3679 = vunpack.c.l.b16 %v3197
        %v3680 = vunpack.c.l.b16 %v3198
        %v3681 = vunpack.c.l.b16 %v3199
        %v3682 = vunpack.c.l.b16 %v3200
        %v3683 = vunpack.c.l.b16 %v3201
        %v3684 = vunpack.c.l.b16 %v3202
        %v3685 = vunpack.c.l.b16 %v3203
        %v3686 = vunpack.c.l.b16 %v3204
        %v3687 = vunpack.c.l.b16 %v3205
        %v3688 = vunpack.c.l.b16 %v3206
        %v3689 = vunpack.c.l.b16 %v3207
        %v3690 = vunpack.c.l.b16 %v3208
        %v3691 = vunpack.c.l.b16 %v3209
        %v3692 = vpack.c.b16 %v3677, %v3676
        %v3693 = vpack.c.b16 %v3679, %v3678
        %v3694 = vpack.c.b16 %v3681, %v3680
        %v3695 = vpack.c.b16 %v3683, %v3682
        %v3696 = vpack.c.b16 %v3685, %v3684
        %v3697 = vpack.c.b16 %v3687, %v3686
        %v3698 = vpack.c.b16 %v3689, %v3688
        %v3699 = vpack.c.b16 %v3691, %v3690
        %3708 = vmatprep.subr.bf16.mxu0 0
        %3709 = vmatpush1.bf16.msra.mxu0 %v3692
        %3710 = vmatprep.subr.bf16.mxu0 0
        %3711 = vmatpush1.bf16.msra.mxu0 %v3693
        %3712 = vmatprep.subr.bf16.mxu0 0
        %3713 = vmatpush1.bf16.msra.mxu0 %v3694
        %3714 = vmatprep.subr.bf16.mxu0 0
        %3715 = vmatpush1.bf16.msra.mxu0 %v3695
        %3716 = vmatprep.subr.bf16.mxu0 0
        %3717 = vmatpush1.bf16.msra.mxu0 %v3696
        %3718 = vmatprep.subr.bf16.mxu0 0
        %3719 = vmatpush1.bf16.msra.mxu0 %v3697
        %3720 = vmatprep.subr.bf16.mxu0 0
        %3721 = vmatpush1.bf16.msra.mxu0 %v3698
        %3722 = vmatprep.subr.bf16.mxu0 0
        %3723 = vmatpush1.bf16.msra.mxu0 %v3699
        %3724 = vmatprep.subr.bf16.mxu0 0
        %3725 = vmatpush1.bf16.msra.mxu0 0
        %3726 = vmatprep.subr.bf16.mxu0 0
        %3727 = vmatpush1.bf16.msra.mxu0 0
        %3728 = vmatprep.subr.bf16.mxu0 0
        %3729 = vmatpush1.bf16.msra.mxu0 0
        %3730 = vmatprep.subr.bf16.mxu0 0
        %3731 = vmatpush1.bf16.msra.mxu0 0
        %3732 = vmatprep.subr.bf16.mxu0 0
        %3733 = vmatpush1.bf16.msra.mxu0 0
        %3734 = vmatprep.subr.bf16.mxu0 0
        %3735 = vmatpush1.bf16.msra.mxu0 0
        %3736 = vmatprep.subr.bf16.mxu0 0
        %3737 = vmatpush1.bf16.msra.mxu0 0
        %3738 = vmatprep.subr.bf16.mxu0 0
        %3739 = vmatpush1.bf16.msra.mxu0 0
        %3740 = vmatprep.mubr.bf16.mxu0 0
        %3741 = vmatmul.mubr.bf16.gmra.mrb[0].mxu0 %v3655
        %v3742 = vpop.f32.mrb[0].mxu0
        %v3743 = vadd.f32 0.0, %v3742
        %v3744 = vpop.f32.mrb[0].mxu0
        %v3745 = vpop.f32.mrb[0].mxu0
        %v3746 = vadd.f32 0.0, %v3745
        %v3747 = vpop.f32.mrb[0].mxu0
        %3748 = vmatprep.mubr.bf16.mxu0 0
        %3749 = vmatmul.mubr.bf16.gmra.mrb[0].mxu0 %v3657
        %v3750 = vpop.f32.mrb[0].mxu0
        %v3751 = vadd.f32 0.0, %v3750
        %v3752 = vpop.f32.mrb[0].mxu0
        %v3753 = vpop.f32.mrb[0].mxu0
        %v3754 = vadd.f32 0.0, %v3753
        %v3755 = vpop.f32.mrb[0].mxu0
        %3756 = vdwg.mxu0
        %v3757 = vadd.f32 %v3648, %v3743
        %v3758 = vadd.f32 %v3649, %v3746
        %v3759 = vadd.f32 %v3650, %v3751
        %v3760 = vadd.f32 %v3651, %v3754
        %v3762 = vlaneseq
        %v3763 = vshrl.u32 %v3762, 7
        %v3764 = vsub.s32 0, %v3763
        %v3765 = vrot.slane %v3210, %v3764
        %v3767 = vmul.f32 %v3757, %v3765
        %v3768 = vmul.f32 %v3758, %v3765
        %v3769 = vmul.f32 %v3759, %v3765
        %v3770 = vmul.f32 %v3760, %v3765
        %v3772 = vlaneseq
        %v3773 = vshrl.u32 %v3772, 7
        %v3774 = vsub.s32 0, %v3773
        %v3775 = vrot.slane %v3211, %v3774
        %v3777 = vadd.f32 %v3767, %v3775
        %v3778 = vadd.f32 %v3768, %v3775
        %v3779 = vadd.f32 %v3769, %v3775
        %v3780 = vadd.f32 %v3770, %v3775
        %3781 = vst [vmem:[%s367] sm:$0xff] %v3777
        %3782 = vst [vmem:[%s367 + $0x8] sm:$0xff] %v3778
        %3783 = vst [vmem:[%s367 + $0x10] sm:$0xff] %v3779
        %3784 = vst [vmem:[%s367 + $0x18] sm:$0xff] %v3780
        %s3785 = sand.u32 %s208, 1
        %s3786 = scalar_lea.sflag [#allocation6], %s3785
        %s3787 = sand.u32 %s208, 1
        %s3788 = smul.addr %s3787, 32
        %s3789 = scalar_lea.vmem [#allocation12], %s3788
        // Predicated region
        $region69: #{tpu_custom_call.1} parent=51 // pred_check
          %p3790 = pneg %p218
        $region70: #{tpu_custom_call.1} parent=51 // pred_check_branch
          %3792 = sbr.rel (%p3790) target = $region72
        $region71: #{tpu_custom_call.1} parent=51 // pred_region
          %s3794 = ssub.s32 512, 512
          %3795 = vsyncadd %s3786, %s3794
          %s3796 = smul.addr %s27, 4
          %s3797 = smul.addr %s3796, 128
          %s3798 = scalar_lea.hbm %s8, %s3797
          %s3799 = sshll.u32 %s3789, 4
          %s3800 = int_to_ptr.vmem [resolvable:$true] %s3799
          %3805 = dma.vmem_to_hbm [thread:$0]  %s3800, 512, %s3798, %s3786, 128, 128, 8
        $region72: #{tpu_custom_call.1} parent=51 // pred_fallthru
          _
      $region52: #{tpu_custom_call.1} parent=5 // pred_fallthru
        _
      %p3806 = scmp.le.s32.totalorder 2, %s22
      // Predicated region
      $region73: #{tpu_custom_call.1} parent=5 // pred_check
        %p3807 = pneg %p3806
      $region74: #{tpu_custom_call.1} parent=5 // pred_check_branch
        %3809 = sbr.rel (%p3807) target = $region76
      $region75: #{tpu_custom_call.1} parent=5 // pred_region
        %s3810 = ssub.s32 %s22, 2
        // Predicated region
        $region77: #{tpu_custom_call.1} parent=75 // pred_check
          %p3811 = pneg %p224
        $region78: #{tpu_custom_call.1} parent=75 // pred_check_branch
          %3813 = sbr.rel (%p3811) target = $region80
        $region79: #{tpu_custom_call.1} parent=75 // pred_region
          %s3814 = sand.u32 %s209, 1
          %s3815 = scalar_lea.sflag [#allocation6], %s3814
          %s3816 = sand.u32 %s209, 1
          %s3817 = smul.addr %s3816, 32
          %s3818 = scalar_lea.vmem [#allocation12], %s3817
          %3819 = dma.done %s3815, 512
        $region80: #{tpu_custom_call.1} parent=75 // pred_fallthru
          _
      $region76: #{tpu_custom_call.1} parent=5 // pred_fallthru
        _
    $region6: #{tpu_custom_call.1} parent=1 // loop_footer
      %s26 = sadd.s32 1, %s22
    $region7: #{tpu_custom_call.1} parent=1 // loop_footer_branch
      %21 = sbr.rel target = $region3
    $region8: #{tpu_custom_call.1} parent=1 // loop_exit
      _
    %3820 = vsyncpa [#allocation5], 1
    %s3821 = scalar_lea.sflag [#allocation5], 1
    %3822 = vsyncpa %s3821, 1
    %3823 = vsyncpa [#allocation8], 1
    %3824 = vsyncpa [#allocation11], 1
    %3825 = vsyncpa [#allocation6], 1
    %s3826 = scalar_lea.sflag [#allocation6], 1
    %3827 = vsyncpa %s3826, 1

</llo_original>
